<compile_context>
chip_gen: v7x
topology: tpu7x:2x2x1
jax: 0.10.0
libtpu: 0.0.40
codegen_flags: <defaults>
</compile_context>

<pallas_src>
import functools

import jax
import jax.numpy as jnp
from jax.experimental import pallas as pl
from jax.experimental.pallas import tpu as pltpu


def _round_up(x, m):
    return -(-x // m) * m


def _sclstm_kernel(x_ref, dt_ref,
                   wx_hbm, wh_hbm, b_hbm, wdc_hbm, wout_hbm, bout_hbm,
                   out_ref,
                   wx_v, wh_v, b_v, wdc_v, wout_v, bout_v,
                   h_sc, c_sc, d_sc, gx_sc, hid_sc, w_sem,
                   *, hidden_pad, d_pad):
    t = pl.program_id(1)
    Hp, Dp = hidden_pad, d_pad
    Tt, Bb, V = x_ref.shape
    Wf = 4 * Hp + Dp
    mm_dtype = wx_v.dtype

    @pl.when(t == 0)
    def _init():
        # Start all weight DMAs (HBM -> VMEM, single-buffered, resident for the
        # whole sequence); wait only on what the recurrence needs now, the
        # output-projection weights are awaited right before their first use.
        pltpu.make_async_copy(wx_hbm, wx_v, w_sem.at[0]).start()
        pltpu.make_async_copy(wh_hbm, wh_v, w_sem.at[1]).start()
        pltpu.make_async_copy(b_hbm, b_v, w_sem.at[2]).start()
        pltpu.make_async_copy(wdc_hbm, wdc_v, w_sem.at[3]).start()
        pltpu.make_async_copy(wout_hbm, wout_v, w_sem.at[4]).start()
        pltpu.make_async_copy(bout_hbm, bout_v, w_sem.at[5]).start()
        # Recurrent state init (overlapped with the DMAs).
        h_sc[...] = jnp.zeros_like(h_sc)
        c_sc[...] = jnp.zeros_like(c_sc)
        d_sc[...] = dt_ref[...].astype(d_sc.dtype)
        pltpu.make_async_copy(wx_hbm, wx_v, w_sem.at[0]).wait()
        pltpu.make_async_copy(wh_hbm, wh_v, w_sem.at[1]).wait()
        pltpu.make_async_copy(b_hbm, b_v, w_sem.at[2]).wait()
        pltpu.make_async_copy(wdc_hbm, wdc_v, w_sem.at[3]).wait()

    # ---- block-hoisted, recurrence-independent x-side matmul -----------------
    # Input arrives pre-shifted (teacher forcing) and time-major: (Tt, Bb, V).
    x2d = x_ref[...].reshape(Tt * Bb, V)                 # layout-preserving (Bb % 8 == 0)
    gx = jnp.dot(x2d.astype(mm_dtype), wx_v[...],
                 preferred_element_type=jnp.float32) + b_v[...]   # fused bias, once/block
    gx_sc[...] = gx.reshape(Tt, Bb, Wf)

    # ---- serial recurrence: only the h-side matmul on the critical path ------
    def step(j, carry):
        h, c, d = carry
        g = gx_sc[j] + jnp.dot(h.astype(mm_dtype), wh_v[...],
                               preferred_element_type=jnp.float32)
        gate_i = jax.nn.sigmoid(g[:, 0 * Hp:1 * Hp])
        gate_f = jax.nn.sigmoid(g[:, 1 * Hp:2 * Hp])
        gate_o = jax.nn.sigmoid(g[:, 2 * Hp:3 * Hp])
        cell_hat = jnp.tanh(g[:, 3 * Hp:4 * Hp])
        gate_r = jax.nn.sigmoid(g[:, 4 * Hp:4 * Hp + Dp])
        d = gate_r * d
        c = (gate_f * c + gate_i * cell_hat
             + jnp.dot(d.astype(mm_dtype), wdc_v[...],
                       preferred_element_type=jnp.float32))
        h = gate_o * jnp.tanh(c)
        # TODO(synk): training-mode F.dropout(p=0.5) on `h` is stochastic; omitted
        # (matches eval / generation semantics).
        hid_sc[j] = h
        return (h, c, d)

    h, c, d = jax.lax.fori_loop(0, Tt, step,
                                (h_sc[...], c_sc[...], d_sc[...]), unroll=True)
    h_sc[...] = h
    c_sc[...] = c
    d_sc[...] = d

    # ---- deferred output projection + single lane-dense block store ----------
    @pl.when(t == 0)
    def _wait_out_proj_weights():
        pltpu.make_async_copy(wout_hbm, wout_v, w_sem.at[4]).wait()
        pltpu.make_async_copy(bout_hbm, bout_v, w_sem.at[5]).wait()

    hid2d = hid_sc[...].reshape(Tt * Bb, Hp)
    logits = (jnp.dot(hid2d.astype(mm_dtype), wout_v[...],
                      preferred_element_type=jnp.float32) + bout_v[...])
    out_ref[...] = logits.reshape(Tt, Bb, V).astype(out_ref.dtype)


def sclstm_forward(input_seq, last_dt, params, sos_index=0,
                   time_block=16, batch_blocks=1,
                   compute_dtype=jnp.float32):
    """input_seq: (B, T, V); last_dt: (B, D) -> logits (B, T, V), teacher forcing.

    compute_dtype=jnp.bfloat16 halves resident weight VMEM / input HBM traffic and
    runs the MXU at bf16 rate (gate math stays f32).  batch_blocks>1 adds a
    leading "parallel" grid axis — only useful on 2-TensorCore parts (v7x).
    """
    B, T, V = input_seq.shape
    D = last_dt.shape[1]
    H = params["wh"].shape[0]
    alpha = 0.5
    f32 = jnp.float32

    # ---- padding: sublane-aligned batch, lane-aligned gate segments ----------
    nb = batch_blocks
    Bb = _round_up(-(-B // nb), 8)          # per-core batch block (multiple of 8)
    Bp = Bb * nb
    Tt = min(_round_up(T, 8), _round_up(time_block, 8))
    T_pad = _round_up(T, Tt)
    nt = T_pad // Tt
    Hp = _round_up(H, 128)
    Dp = _round_up(D, 128)
    Wf = 4 * Hp + Dp

    # ---- fused, segment-aligned weights (alpha folded into h-side r weights) --
    ww, bw = params["ww"].astype(f32), params["bw"].astype(f32)
    whh, bh = params["wh"].astype(f32), params["bh"].astype(f32)
    wr, br = params["wr"].astype(f32), params["br"].astype(f32)
    whr, bhr = params["whr"].astype(f32), params["bhr"].astype(f32)

    def place_gates(w4, wr_, rows, rows_pad):
        out = jnp.zeros((rows_pad, Wf), f32)
        for k in range(4):
            out = out.at[:rows, k * Hp:k * Hp + H].set(w4[:, k * H:(k + 1) * H])
        out = out.at[:rows, 4 * Hp:4 * Hp + D].set(wr_)
        return out

    wx_f = place_gates(ww, wr, V, V).astype(compute_dtype)
    wh_f = place_gates(whh, alpha * whr, H, Hp).astype(compute_dtype)

    b4 = bw + bh
    brr = br + alpha * bhr
    b_f = jnp.zeros((1, Wf), f32)
    for k in range(4):
        b_f = b_f.at[:, k * Hp:k * Hp + H].set(b4[:, k * H:(k + 1) * H])
    b_f = b_f.at[:, 4 * Hp:4 * Hp + D].set(brr)

    wdc_f = jnp.zeros((Dp, Hp), f32).at[:D, :H].set(params["wdc"].astype(f32)).astype(compute_dtype)
    wout_f = jnp.zeros((Hp, V), f32).at[:H, :].set(params["wout"].astype(f32)).astype(compute_dtype)
    bout_f = params["bout"].astype(f32)

    # ---- pre-shifted, time-major input block (teacher forcing, SOS at t=0) ---
    sos = jnp.zeros((Bp, V), f32).at[:, sos_index].set(1.0)
    x_tm = jnp.transpose(input_seq.astype(f32), (1, 0, 2))          # (T, B, V)
    x_tm = jnp.pad(x_tm, ((0, T_pad - T), (0, Bp - B), (0, 0)))
    x_shift = jnp.concatenate([sos[None], x_tm[:T_pad - 1]], axis=0)  # (T_pad, Bp, V)
    x_shift = x_shift.astype(compute_dtype)
    # TODO(synk): if inputs are genuinely one-hot token ids, a row gather from wx
    # (scalar-prefetched ids) would remove the dense x-matmul entirely.

    dt0 = jnp.zeros((Bp, Dp), f32).at[:B, :D].set(last_dt.astype(f32))

    # ---- VMEM budget (derived, capped by physical VMEM) -----------------------
    w_item = jnp.dtype(compute_dtype).itemsize
    x_item = jnp.dtype(compute_dtype).itemsize
    weight_bytes = (V * Wf + Hp * Wf + Dp * Hp + Hp * V) * w_item + (Wf + V) * 4
    state_bytes = Bb * (2 * Hp + Dp) * 4
    blk_scratch = Tt * Bb * (Wf + Hp) * 4
    io_bytes = 2 * Tt * Bb * V * (x_item + 4) + 2 * Bb * Dp * 4   # double-buffered in/out
    vmem_need = weight_bytes + state_bytes + blk_scratch + io_bytes + (1 << 20)
    try:
        phys_vmem = pltpu.get_tpu_info().vmem_capacity_bytes
    except Exception:
        phys_vmem = 64 * 1024 * 1024
    vmem_limit = int(min(int(phys_vmem * 0.9),
                         max(32 * 1024 * 1024, int(1.25 * vmem_need))))

    cost = pl.CostEstimate(
        flops=int(2 * Bp * T_pad * (V * Wf + Hp * Wf + Dp * Hp + Hp * V)),
        transcendentals=int(Bp * T_pad * (4 * Hp + Dp + Hp)),
        bytes_accessed=int(weight_bytes + Bp * T_pad * V * (x_item + 4) + Bp * Dp * 4),
    )

    kernel = functools.partial(_sclstm_kernel, hidden_pad=Hp, d_pad=Dp)

    out_tm = pl.pallas_call(
        kernel,
        out_shape=jax.ShapeDtypeStruct((T_pad, Bp, V), jnp.float32),
        grid_spec=pltpu.PrefetchScalarGridSpec(
            num_scalar_prefetch=0,
            grid=(nb, nt),
            in_specs=[
                pl.BlockSpec((Tt, Bb, V), lambda b, t: (t, b, 0)),   # shifted input (time-major)
                pl.BlockSpec((Bb, Dp), lambda b, t: (b, 0)),          # last_dt (used at t==0)
                pl.BlockSpec(memory_space=pl.ANY),                    # fused x-weights (HBM)
                pl.BlockSpec(memory_space=pl.ANY),                    # fused h-weights (HBM)
                pl.BlockSpec(memory_space=pl.ANY),                    # fused bias
                pl.BlockSpec(memory_space=pl.ANY),                    # dc weight
                pl.BlockSpec(memory_space=pl.ANY),                    # output projection
                pl.BlockSpec(memory_space=pl.ANY),                    # output bias
            ],
            out_specs=pl.BlockSpec((Tt, Bb, V), lambda b, t: (t, b, 0)),
            scratch_shapes=[
                pltpu.VMEM((V, Wf), compute_dtype),     # resident fused x-weights
                pltpu.VMEM((Hp, Wf), compute_dtype),    # resident fused h-weights
                pltpu.VMEM((1, Wf), jnp.float32),       # fused bias row
                pltpu.VMEM((Dp, Hp), compute_dtype),    # dc weight
                pltpu.VMEM((Hp, V), compute_dtype),     # output projection
                pltpu.VMEM((1, V), jnp.float32),        # output bias row
                pltpu.VMEM((Bb, Hp), jnp.float32),      # hidden carry
                pltpu.VMEM((Bb, Hp), jnp.float32),      # cell carry
                pltpu.VMEM((Bb, Dp), jnp.float32),      # dt carry
                pltpu.VMEM((Tt, Bb, Wf), jnp.float32),  # block-hoisted g_x
                pltpu.VMEM((Tt, Bb, Hp), jnp.float32),  # per-block hidden states
                pltpu.SemaphoreType.DMA((6,)),          # weight-load semaphores
            ],
        ),
        compiler_params=pltpu.CompilerParams(
            dimension_semantics=("parallel", "arbitrary"),
            vmem_limit_bytes=vmem_limit),
        cost_estimate=cost,
    )(x_shift, dt0, wx_f, wh_f, b_f, wdc_f, wout_f, bout_f)

    return jnp.transpose(out_tm, (1, 0, 2))[:B, :T, :]


def _init_params(key, hidden_size, vocab_size, d_size):
    """Deterministic param init; weights stored as (in_features, out_features)."""
    ks = jax.random.split(key, 7)
    s = 0.1
    return {
        "ww":   s * jax.random.normal(ks[0], (vocab_size, 4 * hidden_size), jnp.float32),
        "bw":   jnp.zeros((1, 4 * hidden_size), jnp.float32),
        "wh":   s * jax.random.normal(ks[1], (hidden_size, 4 * hidden_size), jnp.float32),
        "bh":   jnp.zeros((1, 4 * hidden_size), jnp.float32),
        "wr":   s * jax.random.normal(ks[2], (vocab_size, d_size), jnp.float32),
        "br":   jnp.zeros((1, d_size), jnp.float32),
        "whr":  s * jax.random.normal(ks[3], (hidden_size, d_size), jnp.float32),
        "bhr":  jnp.zeros((1, d_size), jnp.float32),
        "wdc":  s * jax.random.normal(ks[4], (d_size, hidden_size), jnp.float32),
        "wout": s * jax.random.normal(ks[5], (hidden_size, vocab_size), jnp.float32),
        "bout": 0.01 * jax.random.normal(ks[6], (1, vocab_size), jnp.float32),
    }


def _reference_forward(input_seq, last_dt, params, sos_index=0):
    """Pure-JAX reference of the same recurrence (unfused, unpadded weights)."""
    B, T, V = input_seq.shape
    H = params["wh"].shape[0]
    sos = jnp.zeros((B, V), jnp.float32).at[:, sos_index].set(1.0)
    x_tm = jnp.transpose(input_seq, (1, 0, 2))
    x_in = jnp.concatenate([sos[None], x_tm[:-1]], axis=0)

    def step(carry, x):
        h, c, d = carry
        g = x @ params["ww"] + params["bw"] + h @ params["wh"] + params["bh"]
        gi = jax.nn.sigmoid(g[:, 0*H:1*H])
        gf = jax.nn.sigmoid(g[:, 1*H:2*H])
        go = jax.nn.sigmoid(g[:, 2*H:3*H])
        ch = jnp.tanh(g[:, 3*H:4*H])
        gr = jax.nn.sigmoid(x @ params["wr"] + params["br"]
                            + 0.5 * (h @ params["whr"] + params["bhr"]))
        d = gr * d
        c = gf * c + gi * ch + d @ params["wdc"]
        h = go * jnp.tanh(c)
        out = h @ params["wout"] + params["bout"]
        return (h, c, d), out

    init = (jnp.zeros((B, H)), jnp.zeros((B, H)), last_dt)
    _, outs = jax.lax.scan(step, init, x_in)
    return jnp.transpose(outs, (1, 0, 2))


if __name__ == "__main__":
    B, T, V, H, D = 2, 8, 16, 32, 8
    key = jax.random.PRNGKey(0)
    k_in, k_dt, k_p = jax.random.split(key, 3)

    input_seq = jax.random.uniform(k_in, (B, T, V), jnp.float32)
    last_dt = jax.random.uniform(k_dt, (B, D), jnp.float32)
    params = _init_params(k_p, H, V, D)

    ref = _reference_forward(input_seq, last_dt, params)

    # f32 path: exact (within f32) vs the pure-JAX reference.
    out = jax.block_until_ready(sclstm_forward(input_seq, last_dt, params))
    assert out.shape == (B, T, V)
    assert jnp.allclose(out, ref, rtol=1e-3, atol=1e-3), "f32 mismatch vs reference"

    # bf16 matmul path (v6e/v7x recommendation): tolerance-checked vs reference.
    out_bf16 = jax.block_until_ready(
        sclstm_forward(input_seq, last_dt, params, compute_dtype=jnp.bfloat16))
    assert out_bf16.shape == (B, T, V)
    assert bool(jnp.all(jnp.isfinite(out_bf16)))
    assert float(jnp.max(jnp.abs(out_bf16 - ref))) < 0.15, "bf16 mismatch vs reference"

    print("KERNEL_OK")
</pallas_src>

<mosaic_0001>
module attributes {stable_mosaic.version = 11 : i64} {
  func.func @_sclstm_kernel(%arg0: i32, %arg1: i32, %arg2: memref<8x8x16xf32, #tpu.memory_space<vmem>>, %arg3: memref<8x128xf32, #tpu.memory_space<vmem>>, %arg4: memref<16x640xf32, #tpu.memory_space<any>>, %arg5: memref<128x640xf32, #tpu.memory_space<any>>, %arg6: memref<1x640xf32, #tpu.memory_space<any>>, %arg7: memref<128x128xf32, #tpu.memory_space<any>>, %arg8: memref<128x16xf32, #tpu.memory_space<any>>, %arg9: memref<1x16xf32, #tpu.memory_space<any>>, %arg10: memref<8x8x16xf32, #tpu.memory_space<vmem>>, %arg11: memref<16x640xf32, #tpu.memory_space<vmem>>, %arg12: memref<128x640xf32, #tpu.memory_space<vmem>>, %arg13: memref<1x640xf32, #tpu.memory_space<vmem>>, %arg14: memref<128x128xf32, #tpu.memory_space<vmem>>, %arg15: memref<128x16xf32, #tpu.memory_space<vmem>>, %arg16: memref<1x16xf32, #tpu.memory_space<vmem>>, %arg17: memref<8x128xf32, #tpu.memory_space<vmem>>, %arg18: memref<8x128xf32, #tpu.memory_space<vmem>>, %arg19: memref<8x128xf32, #tpu.memory_space<vmem>>, %arg20: memref<8x8x640xf32, #tpu.memory_space<vmem>>, %arg21: memref<8x8x128xf32, #tpu.memory_space<vmem>>, %arg22: memref<6x!tpu.dma_semaphore, #tpu.memory_space<semaphore_mem>>) attributes {dimension_semantics = [#tpu.dimension_semantics<parallel>, #tpu.dimension_semantics<arbitrary>], iteration_bounds = array<i64: 1, 1>, scalar_prefetch = 0 : i64, scratch_operands = 12 : i64, tpu.core_type = #tpu.core_type<tc>, window_params = [{transform_indices = @transform_0, window_bounds = array<i64: 8, 8, 16>}, {transform_indices = @transform_1, window_bounds = array<i64: 8, 128>}, {}, {}, {}, {}, {}, {}, {transform_indices = @transform_8, window_bounds = array<i64: 8, 8, 16>}]} {
    %c0_i32 = arith.constant 0 : i32
    %0 = arith.cmpi eq, %arg1, %c0_i32 : i32
    %1 = arith.extui %0 : i1 to i32
    %c0_i32_0 = arith.constant 0 : i32
    %2 = arith.cmpi ne, %1, %c0_i32_0 : i32
    scf.if %2 {
      %c0_i32_148 = arith.constant 0 : i32
      %390 = tpu.memref_slice %arg22[%c0_i32_148] : memref<6x!tpu.dma_semaphore, #tpu.memory_space<semaphore_mem>> -> memref<1x!tpu.dma_semaphore, #tpu.memory_space<semaphore_mem>>
      %391 = tpu.memref_squeeze %390 : memref<1x!tpu.dma_semaphore, #tpu.memory_space<semaphore_mem>> -> memref<!tpu.dma_semaphore, #tpu.memory_space<semaphore_mem>>
      tpu.enqueue_dma source(%arg4 : memref<16x640xf32, #tpu.memory_space<any>>) target(%arg11 : memref<16x640xf32, #tpu.memory_space<vmem>>) target_semaphore(%391 : memref<!tpu.dma_semaphore, #tpu.memory_space<semaphore_mem>>)
      %c1_i32_149 = arith.constant 1 : i32
      %392 = tpu.memref_slice %arg22[%c1_i32_149] : memref<6x!tpu.dma_semaphore, #tpu.memory_space<semaphore_mem>> -> memref<1x!tpu.dma_semaphore, #tpu.memory_space<semaphore_mem>>
      %393 = tpu.memref_squeeze %392 : memref<1x!tpu.dma_semaphore, #tpu.memory_space<semaphore_mem>> -> memref<!tpu.dma_semaphore, #tpu.memory_space<semaphore_mem>>
      tpu.enqueue_dma source(%arg5 : memref<128x640xf32, #tpu.memory_space<any>>) target(%arg12 : memref<128x640xf32, #tpu.memory_space<vmem>>) target_semaphore(%393 : memref<!tpu.dma_semaphore, #tpu.memory_space<semaphore_mem>>)
      %c2_i32_150 = arith.constant 2 : i32
      %394 = tpu.memref_slice %arg22[%c2_i32_150] : memref<6x!tpu.dma_semaphore, #tpu.memory_space<semaphore_mem>> -> memref<1x!tpu.dma_semaphore, #tpu.memory_space<semaphore_mem>>
      %395 = tpu.memref_squeeze %394 : memref<1x!tpu.dma_semaphore, #tpu.memory_space<semaphore_mem>> -> memref<!tpu.dma_semaphore, #tpu.memory_space<semaphore_mem>>
      tpu.enqueue_dma source(%arg6 : memref<1x640xf32, #tpu.memory_space<any>>) target(%arg13 : memref<1x640xf32, #tpu.memory_space<vmem>>) target_semaphore(%395 : memref<!tpu.dma_semaphore, #tpu.memory_space<semaphore_mem>>)
      %c3_i32_151 = arith.constant 3 : i32
      %396 = tpu.memref_slice %arg22[%c3_i32_151] : memref<6x!tpu.dma_semaphore, #tpu.memory_space<semaphore_mem>> -> memref<1x!tpu.dma_semaphore, #tpu.memory_space<semaphore_mem>>
      %397 = tpu.memref_squeeze %396 : memref<1x!tpu.dma_semaphore, #tpu.memory_space<semaphore_mem>> -> memref<!tpu.dma_semaphore, #tpu.memory_space<semaphore_mem>>
      tpu.enqueue_dma source(%arg7 : memref<128x128xf32, #tpu.memory_space<any>>) target(%arg14 : memref<128x128xf32, #tpu.memory_space<vmem>>) target_semaphore(%397 : memref<!tpu.dma_semaphore, #tpu.memory_space<semaphore_mem>>)
      %c4_i32_152 = arith.constant 4 : i32
      %398 = tpu.memref_slice %arg22[%c4_i32_152] : memref<6x!tpu.dma_semaphore, #tpu.memory_space<semaphore_mem>> -> memref<1x!tpu.dma_semaphore, #tpu.memory_space<semaphore_mem>>
      %399 = tpu.memref_squeeze %398 : memref<1x!tpu.dma_semaphore, #tpu.memory_space<semaphore_mem>> -> memref<!tpu.dma_semaphore, #tpu.memory_space<semaphore_mem>>
      tpu.enqueue_dma source(%arg8 : memref<128x16xf32, #tpu.memory_space<any>>) target(%arg15 : memref<128x16xf32, #tpu.memory_space<vmem>>) target_semaphore(%399 : memref<!tpu.dma_semaphore, #tpu.memory_space<semaphore_mem>>)
      %c5_i32_153 = arith.constant 5 : i32
      %400 = tpu.memref_slice %arg22[%c5_i32_153] : memref<6x!tpu.dma_semaphore, #tpu.memory_space<semaphore_mem>> -> memref<1x!tpu.dma_semaphore, #tpu.memory_space<semaphore_mem>>
      %401 = tpu.memref_squeeze %400 : memref<1x!tpu.dma_semaphore, #tpu.memory_space<semaphore_mem>> -> memref<!tpu.dma_semaphore, #tpu.memory_space<semaphore_mem>>
      tpu.enqueue_dma source(%arg9 : memref<1x16xf32, #tpu.memory_space<any>>) target(%arg16 : memref<1x16xf32, #tpu.memory_space<vmem>>) target_semaphore(%401 : memref<!tpu.dma_semaphore, #tpu.memory_space<semaphore_mem>>)
      %cst_154 = arith.constant 0.000000e+00 : f32
      %402 = vector.broadcast %cst_154 : f32 to vector<8x128xf32>
      %c0_155 = arith.constant 0 : index
      %c0_156 = arith.constant 0 : index
      %403 = vector.load %arg17[%c0_155, %c0_156] : memref<8x128xf32, #tpu.memory_space<vmem>>, vector<8x128xf32>
      tpu.vector_store %arg17[%c0_155, %c0_156], %402 {strides = array<i32>} : memref<8x128xf32, #tpu.memory_space<vmem>>, vector<8x128xf32>,
      %cst_157 = arith.constant 0.000000e+00 : f32
      %404 = vector.broadcast %cst_157 : f32 to vector<8x128xf32>
      %c0_158 = arith.constant 0 : index
      %c0_159 = arith.constant 0 : index
      %405 = vector.load %arg18[%c0_158, %c0_159] : memref<8x128xf32, #tpu.memory_space<vmem>>, vector<8x128xf32>
      tpu.vector_store %arg18[%c0_158, %c0_159], %404 {strides = array<i32>} : memref<8x128xf32, #tpu.memory_space<vmem>>, vector<8x128xf32>,
      %c0_160 = arith.constant 0 : index
      %c0_161 = arith.constant 0 : index
      %406 = vector.load %arg3[%c0_160, %c0_161] : memref<8x128xf32, #tpu.memory_space<vmem>>, vector<8x128xf32>
      %c0_162 = arith.constant 0 : index
      %c0_163 = arith.constant 0 : index
      %407 = vector.load %arg19[%c0_162, %c0_163] : memref<8x128xf32, #tpu.memory_space<vmem>>, vector<8x128xf32>
      tpu.vector_store %arg19[%c0_162, %c0_163], %406 {strides = array<i32>} : memref<8x128xf32, #tpu.memory_space<vmem>>, vector<8x128xf32>,
      %c0_i32_164 = arith.constant 0 : i32
      %408 = tpu.memref_slice %arg22[%c0_i32_164] : memref<6x!tpu.dma_semaphore, #tpu.memory_space<semaphore_mem>> -> memref<1x!tpu.dma_semaphore, #tpu.memory_space<semaphore_mem>>
      %409 = tpu.memref_squeeze %408 : memref<1x!tpu.dma_semaphore, #tpu.memory_space<semaphore_mem>> -> memref<!tpu.dma_semaphore, #tpu.memory_space<semaphore_mem>>
      tpu.wait_dma2 semaphore(%409 : memref<!tpu.dma_semaphore, #tpu.memory_space<semaphore_mem>>) src(%arg4 : memref<16x640xf32, #tpu.memory_space<any>>) dst(%arg11 : memref<16x640xf32, #tpu.memory_space<vmem>>)
      %c1_i32_165 = arith.constant 1 : i32
      %410 = tpu.memref_slice %arg22[%c1_i32_165] : memref<6x!tpu.dma_semaphore, #tpu.memory_space<semaphore_mem>> -> memref<1x!tpu.dma_semaphore, #tpu.memory_space<semaphore_mem>>
      %411 = tpu.memref_squeeze %410 : memref<1x!tpu.dma_semaphore, #tpu.memory_space<semaphore_mem>> -> memref<!tpu.dma_semaphore, #tpu.memory_space<semaphore_mem>>
      tpu.wait_dma2 semaphore(%411 : memref<!tpu.dma_semaphore, #tpu.memory_space<semaphore_mem>>) src(%arg5 : memref<128x640xf32, #tpu.memory_space<any>>) dst(%arg12 : memref<128x640xf32, #tpu.memory_space<vmem>>)
      %c2_i32_166 = arith.constant 2 : i32
      %412 = tpu.memref_slice %arg22[%c2_i32_166] : memref<6x!tpu.dma_semaphore, #tpu.memory_space<semaphore_mem>> -> memref<1x!tpu.dma_semaphore, #tpu.memory_space<semaphore_mem>>
      %413 = tpu.memref_squeeze %412 : memref<1x!tpu.dma_semaphore, #tpu.memory_space<semaphore_mem>> -> memref<!tpu.dma_semaphore, #tpu.memory_space<semaphore_mem>>
      tpu.wait_dma2 semaphore(%413 : memref<!tpu.dma_semaphore, #tpu.memory_space<semaphore_mem>>) src(%arg6 : memref<1x640xf32, #tpu.memory_space<any>>) dst(%arg13 : memref<1x640xf32, #tpu.memory_space<vmem>>)
      %c3_i32_167 = arith.constant 3 : i32
      %414 = tpu.memref_slice %arg22[%c3_i32_167] : memref<6x!tpu.dma_semaphore, #tpu.memory_space<semaphore_mem>> -> memref<1x!tpu.dma_semaphore, #tpu.memory_space<semaphore_mem>>
      %415 = tpu.memref_squeeze %414 : memref<1x!tpu.dma_semaphore, #tpu.memory_space<semaphore_mem>> -> memref<!tpu.dma_semaphore, #tpu.memory_space<semaphore_mem>>
      tpu.wait_dma2 semaphore(%415 : memref<!tpu.dma_semaphore, #tpu.memory_space<semaphore_mem>>) src(%arg7 : memref<128x128xf32, #tpu.memory_space<any>>) dst(%arg14 : memref<128x128xf32, #tpu.memory_space<vmem>>)
    } else {
    }
    %c0 = arith.constant 0 : index
    %c0_1 = arith.constant 0 : index
    %c0_2 = arith.constant 0 : index
    %3 = vector.load %arg2[%c0, %c0_1, %c0_2] : memref<8x8x16xf32, #tpu.memory_space<vmem>>, vector<8x8x16xf32>
    %4 = vector.shape_cast %3 : vector<8x8x16xf32> to vector<64x16xf32>
    %c0_3 = arith.constant 0 : index
    %c0_4 = arith.constant 0 : index
    %5 = vector.load %arg11[%c0_3, %c0_4] : memref<16x640xf32, #tpu.memory_space<vmem>>, vector<16x640xf32>
    %cst = arith.constant dense<0.000000e+00> : vector<64x640xf32>
    %6 = tpu.matmul %4, %5, %cst {dimension_numbers = #tpu.dot_dimension_numbers<[1], [0], [0], [1], [0, 0, 1, 1], [], []>} : vector<64x16xf32>, vector<16x640xf32>, vector<64x640xf32> -> vector<64x640xf32>
    %c0_5 = arith.constant 0 : index
    %c0_6 = arith.constant 0 : index
    %7 = vector.load %arg13[%c0_5, %c0_6] : memref<1x640xf32, #tpu.memory_space<vmem>>, vector<1x640xf32>
    %8 = vector.broadcast %7 : vector<1x640xf32> to vector<64x640xf32>
    %9 = arith.addf %6, %8 : vector<64x640xf32>
    %10 = vector.shape_cast %9 : vector<64x640xf32> to vector<8x8x640xf32>
    %c0_7 = arith.constant 0 : index
    %c0_8 = arith.constant 0 : index
    %c0_9 = arith.constant 0 : index
    %11 = vector.load %arg20[%c0_7, %c0_8, %c0_9] : memref<8x8x640xf32, #tpu.memory_space<vmem>>, vector<8x8x640xf32>
    tpu.vector_store %arg20[%c0_7, %c0_8, %c0_9], %10 {strides = array<i32>} : memref<8x8x640xf32, #tpu.memory_space<vmem>>, vector<8x8x640xf32>,
    %c0_10 = arith.constant 0 : index
    %c0_11 = arith.constant 0 : index
    %12 = vector.load %arg17[%c0_10, %c0_11] : memref<8x128xf32, #tpu.memory_space<vmem>>, vector<8x128xf32>
    %c0_12 = arith.constant 0 : index
    %c0_13 = arith.constant 0 : index
    %13 = vector.load %arg18[%c0_12, %c0_13] : memref<8x128xf32, #tpu.memory_space<vmem>>, vector<8x128xf32>
    %c0_14 = arith.constant 0 : index
    %c0_15 = arith.constant 0 : index
    %14 = vector.load %arg19[%c0_14, %c0_15] : memref<8x128xf32, #tpu.memory_space<vmem>>, vector<8x128xf32>
    %c0_i32_16 = arith.constant 0 : i32
    %15 = arith.index_cast %c0_i32_16 : i32 to index
    %c0_17 = arith.constant 0 : index
    %c0_18 = arith.constant 0 : index
    %16 = vector.load %arg20[%15, %c0_17, %c0_18] : memref<8x8x640xf32, #tpu.memory_space<vmem>>, vector<1x8x640xf32>
    %17 = vector.shape_cast %16 : vector<1x8x640xf32> to vector<8x640xf32>
    %c0_19 = arith.constant 0 : index
    %c0_20 = arith.constant 0 : index
    %18 = vector.load %arg12[%c0_19, %c0_20] : memref<128x640xf32, #tpu.memory_space<vmem>>, vector<128x640xf32>
    %cst_21 = arith.constant dense<0.000000e+00> : vector<8x640xf32>
    %19 = tpu.matmul %12, %18, %cst_21 {dimension_numbers = #tpu.dot_dimension_numbers<[1], [0], [0], [1], [0, 0, 1, 1], [], []>} : vector<8x128xf32>, vector<128x640xf32>, vector<8x640xf32> -> vector<8x640xf32>
    %20 = arith.addf %17, %19 : vector<8x640xf32>
    %21 = vector.extract_strided_slice %20 {offsets = [0, 0], sizes = [8, 128], strides = [1, 1]} : vector<8x640xf32> to vector<8x128xf32>
    %22 = arith.negf %21 : vector<8x128xf32>
    %23 = math.exp %22 : vector<8x128xf32>
    %cst_22 = arith.constant 1.000000e+00 : f32
    %24 = vector.broadcast %cst_22 : f32 to vector<8x128xf32>
    %25 = arith.addf %24, %23 : vector<8x128xf32>
    %26 = arith.divf %24, %25 : vector<8x128xf32>
    %27 = vector.extract_strided_slice %20 {offsets = [0, 128], sizes = [8, 128], strides = [1, 1]} : vector<8x640xf32> to vector<8x128xf32>
    %28 = arith.negf %27 : vector<8x128xf32>
    %29 = math.exp %28 : vector<8x128xf32>
    %cst_23 = arith.constant 1.000000e+00 : f32
    %30 = vector.broadcast %cst_23 : f32 to vector<8x128xf32>
    %31 = arith.addf %30, %29 : vector<8x128xf32>
    %32 = arith.divf %30, %31 : vector<8x128xf32>
    %33 = vector.extract_strided_slice %20 {offsets = [0, 256], sizes = [8, 128], strides = [1, 1]} : vector<8x640xf32> to vector<8x128xf32>
    %34 = arith.negf %33 : vector<8x128xf32>
    %35 = math.exp %34 : vector<8x128xf32>
    %cst_24 = arith.constant 1.000000e+00 : f32
    %36 = vector.broadcast %cst_24 : f32 to vector<8x128xf32>
    %37 = arith.addf %36, %35 : vector<8x128xf32>
    %38 = arith.divf %36, %37 : vector<8x128xf32>
    %39 = vector.extract_strided_slice %20 {offsets = [0, 384], sizes = [8, 128], strides = [1, 1]} : vector<8x640xf32> to vector<8x128xf32>
    %40 = math.tanh %39 : vector<8x128xf32>
    %41 = vector.extract_strided_slice %20 {offsets = [0, 512], sizes = [8, 128], strides = [1, 1]} : vector<8x640xf32> to vector<8x128xf32>
    %42 = arith.negf %41 : vector<8x128xf32>
    %43 = math.exp %42 : vector<8x128xf32>
    %cst_25 = arith.constant 1.000000e+00 : f32
    %44 = vector.broadcast %cst_25 : f32 to vector<8x128xf32>
    %45 = arith.addf %44, %43 : vector<8x128xf32>
    %46 = arith.divf %44, %45 : vector<8x128xf32>
    %47 = arith.mulf %46, %14 : vector<8x128xf32>
    %48 = arith.mulf %32, %13 : vector<8x128xf32>
    %49 = arith.mulf %26, %40 : vector<8x128xf32>
    %50 = arith.addf %48, %49 : vector<8x128xf32>
    %c0_26 = arith.constant 0 : index
    %c0_27 = arith.constant 0 : index
    %51 = vector.load %arg14[%c0_26, %c0_27] : memref<128x128xf32, #tpu.memory_space<vmem>>, vector<128x128xf32>
    %cst_28 = arith.constant dense<0.000000e+00> : vector<8x128xf32>
    %52 = tpu.matmul %47, %51, %cst_28 {dimension_numbers = #tpu.dot_dimension_numbers<[1], [0], [0], [1], [0, 0, 1, 1], [], []>} : vector<8x128xf32>, vector<128x128xf32>, vector<8x128xf32> -> vector<8x128xf32>
    %53 = arith.addf %50, %52 : vector<8x128xf32>
    %54 = math.tanh %53 : vector<8x128xf32>
    %55 = arith.mulf %38, %54 : vector<8x128xf32>
    %56 = arith.index_cast %c0_i32_16 : i32 to index
    %c0_29 = arith.constant 0 : index
    %c0_30 = arith.constant 0 : index
    %57 = vector.load %arg21[%56, %c0_29, %c0_30] : memref<8x8x128xf32, #tpu.memory_space<vmem>>, vector<1x8x128xf32>
    %58 = vector.shape_cast %57 : vector<1x8x128xf32> to vector<8x128xf32>
    %59 = vector.shape_cast %55 : vector<8x128xf32> to vector<1x8x128xf32>
    tpu.vector_store %arg21[%56, %c0_29, %c0_30], %59 {strides = array<i32>} : memref<8x8x128xf32, #tpu.memory_space<vmem>>, vector<1x8x128xf32>,
    %c1_i32 = arith.constant 1 : i32
    %60 = arith.index_cast %c1_i32 : i32 to index
    %c0_31 = arith.constant 0 : index
    %c0_32 = arith.constant 0 : index
    %61 = vector.load %arg20[%60, %c0_31, %c0_32] : memref<8x8x640xf32, #tpu.memory_space<vmem>>, vector<1x8x640xf32>
    %62 = vector.shape_cast %61 : vector<1x8x640xf32> to vector<8x640xf32>
    %c0_33 = arith.constant 0 : index
    %c0_34 = arith.constant 0 : index
    %63 = vector.load %arg12[%c0_33, %c0_34] : memref<128x640xf32, #tpu.memory_space<vmem>>, vector<128x640xf32>
    %cst_35 = arith.constant dense<0.000000e+00> : vector<8x640xf32>
    %64 = tpu.matmul %55, %63, %cst_35 {dimension_numbers = #tpu.dot_dimension_numbers<[1], [0], [0], [1], [0, 0, 1, 1], [], []>} : vector<8x128xf32>, vector<128x640xf32>, vector<8x640xf32> -> vector<8x640xf32>
    %65 = arith.addf %62, %64 : vector<8x640xf32>
    %66 = vector.extract_strided_slice %65 {offsets = [0, 0], sizes = [8, 128], strides = [1, 1]} : vector<8x640xf32> to vector<8x128xf32>
    %67 = arith.negf %66 : vector<8x128xf32>
    %68 = math.exp %67 : vector<8x128xf32>
    %cst_36 = arith.constant 1.000000e+00 : f32
    %69 = vector.broadcast %cst_36 : f32 to vector<8x128xf32>
    %70 = arith.addf %69, %68 : vector<8x128xf32>
    %71 = arith.divf %69, %70 : vector<8x128xf32>
    %72 = vector.extract_strided_slice %65 {offsets = [0, 128], sizes = [8, 128], strides = [1, 1]} : vector<8x640xf32> to vector<8x128xf32>
    %73 = arith.negf %72 : vector<8x128xf32>
    %74 = math.exp %73 : vector<8x128xf32>
    %cst_37 = arith.constant 1.000000e+00 : f32
    %75 = vector.broadcast %cst_37 : f32 to vector<8x128xf32>
    %76 = arith.addf %75, %74 : vector<8x128xf32>
    %77 = arith.divf %75, %76 : vector<8x128xf32>
    %78 = vector.extract_strided_slice %65 {offsets = [0, 256], sizes = [8, 128], strides = [1, 1]} : vector<8x640xf32> to vector<8x128xf32>
    %79 = arith.negf %78 : vector<8x128xf32>
    %80 = math.exp %79 : vector<8x128xf32>
    %cst_38 = arith.constant 1.000000e+00 : f32
    %81 = vector.broadcast %cst_38 : f32 to vector<8x128xf32>
    %82 = arith.addf %81, %80 : vector<8x128xf32>
    %83 = arith.divf %81, %82 : vector<8x128xf32>
    %84 = vector.extract_strided_slice %65 {offsets = [0, 384], sizes = [8, 128], strides = [1, 1]} : vector<8x640xf32> to vector<8x128xf32>
    %85 = math.tanh %84 : vector<8x128xf32>
    %86 = vector.extract_strided_slice %65 {offsets = [0, 512], sizes = [8, 128], strides = [1, 1]} : vector<8x640xf32> to vector<8x128xf32>
    %87 = arith.negf %86 : vector<8x128xf32>
    %88 = math.exp %87 : vector<8x128xf32>
    %cst_39 = arith.constant 1.000000e+00 : f32
    %89 = vector.broadcast %cst_39 : f32 to vector<8x128xf32>
    %90 = arith.addf %89, %88 : vector<8x128xf32>
    %91 = arith.divf %89, %90 : vector<8x128xf32>
    %92 = arith.mulf %91, %47 : vector<8x128xf32>
    %93 = arith.mulf %77, %53 : vector<8x128xf32>
    %94 = arith.mulf %71, %85 : vector<8x128xf32>
    %95 = arith.addf %93, %94 : vector<8x128xf32>
    %c0_40 = arith.constant 0 : index
    %c0_41 = arith.constant 0 : index
    %96 = vector.load %arg14[%c0_40, %c0_41] : memref<128x128xf32, #tpu.memory_space<vmem>>, vector<128x128xf32>
    %cst_42 = arith.constant dense<0.000000e+00> : vector<8x128xf32>
    %97 = tpu.matmul %92, %96, %cst_42 {dimension_numbers = #tpu.dot_dimension_numbers<[1], [0], [0], [1], [0, 0, 1, 1], [], []>} : vector<8x128xf32>, vector<128x128xf32>, vector<8x128xf32> -> vector<8x128xf32>
    %98 = arith.addf %95, %97 : vector<8x128xf32>
    %99 = math.tanh %98 : vector<8x128xf32>
    %100 = arith.mulf %83, %99 : vector<8x128xf32>
    %101 = arith.index_cast %c1_i32 : i32 to index
    %c0_43 = arith.constant 0 : index
    %c0_44 = arith.constant 0 : index
    %102 = vector.load %arg21[%101, %c0_43, %c0_44] : memref<8x8x128xf32, #tpu.memory_space<vmem>>, vector<1x8x128xf32>
    %103 = vector.shape_cast %102 : vector<1x8x128xf32> to vector<8x128xf32>
    %104 = vector.shape_cast %100 : vector<8x128xf32> to vector<1x8x128xf32>
    tpu.vector_store %arg21[%101, %c0_43, %c0_44], %104 {strides = array<i32>} : memref<8x8x128xf32, #tpu.memory_space<vmem>>, vector<1x8x128xf32>,
    %c2_i32 = arith.constant 2 : i32
    %105 = arith.index_cast %c2_i32 : i32 to index
    %c0_45 = arith.constant 0 : index
    %c0_46 = arith.constant 0 : index
    %106 = vector.load %arg20[%105, %c0_45, %c0_46] : memref<8x8x640xf32, #tpu.memory_space<vmem>>, vector<1x8x640xf32>
    %107 = vector.shape_cast %106 : vector<1x8x640xf32> to vector<8x640xf32>
    %c0_47 = arith.constant 0 : index
    %c0_48 = arith.constant 0 : index
    %108 = vector.load %arg12[%c0_47, %c0_48] : memref<128x640xf32, #tpu.memory_space<vmem>>, vector<128x640xf32>
    %cst_49 = arith.constant dense<0.000000e+00> : vector<8x640xf32>
    %109 = tpu.matmul %100, %108, %cst_49 {dimension_numbers = #tpu.dot_dimension_numbers<[1], [0], [0], [1], [0, 0, 1, 1], [], []>} : vector<8x128xf32>, vector<128x640xf32>, vector<8x640xf32> -> vector<8x640xf32>
    %110 = arith.addf %107, %109 : vector<8x640xf32>
    %111 = vector.extract_strided_slice %110 {offsets = [0, 0], sizes = [8, 128], strides = [1, 1]} : vector<8x640xf32> to vector<8x128xf32>
    %112 = arith.negf %111 : vector<8x128xf32>
    %113 = math.exp %112 : vector<8x128xf32>
    %cst_50 = arith.constant 1.000000e+00 : f32
    %114 = vector.broadcast %cst_50 : f32 to vector<8x128xf32>
    %115 = arith.addf %114, %113 : vector<8x128xf32>
    %116 = arith.divf %114, %115 : vector<8x128xf32>
    %117 = vector.extract_strided_slice %110 {offsets = [0, 128], sizes = [8, 128], strides = [1, 1]} : vector<8x640xf32> to vector<8x128xf32>
    %118 = arith.negf %117 : vector<8x128xf32>
    %119 = math.exp %118 : vector<8x128xf32>
    %cst_51 = arith.constant 1.000000e+00 : f32
    %120 = vector.broadcast %cst_51 : f32 to vector<8x128xf32>
    %121 = arith.addf %120, %119 : vector<8x128xf32>
    %122 = arith.divf %120, %121 : vector<8x128xf32>
    %123 = vector.extract_strided_slice %110 {offsets = [0, 256], sizes = [8, 128], strides = [1, 1]} : vector<8x640xf32> to vector<8x128xf32>
    %124 = arith.negf %123 : vector<8x128xf32>
    %125 = math.exp %124 : vector<8x128xf32>
    %cst_52 = arith.constant 1.000000e+00 : f32
    %126 = vector.broadcast %cst_52 : f32 to vector<8x128xf32>
    %127 = arith.addf %126, %125 : vector<8x128xf32>
    %128 = arith.divf %126, %127 : vector<8x128xf32>
    %129 = vector.extract_strided_slice %110 {offsets = [0, 384], sizes = [8, 128], strides = [1, 1]} : vector<8x640xf32> to vector<8x128xf32>
    %130 = math.tanh %129 : vector<8x128xf32>
    %131 = vector.extract_strided_slice %110 {offsets = [0, 512], sizes = [8, 128], strides = [1, 1]} : vector<8x640xf32> to vector<8x128xf32>
    %132 = arith.negf %131 : vector<8x128xf32>
    %133 = math.exp %132 : vector<8x128xf32>
    %cst_53 = arith.constant 1.000000e+00 : f32
    %134 = vector.broadcast %cst_53 : f32 to vector<8x128xf32>
    %135 = arith.addf %134, %133 : vector<8x128xf32>
    %136 = arith.divf %134, %135 : vector<8x128xf32>
    %137 = arith.mulf %136, %92 : vector<8x128xf32>
    %138 = arith.mulf %122, %98 : vector<8x128xf32>
    %139 = arith.mulf %116, %130 : vector<8x128xf32>
    %140 = arith.addf %138, %139 : vector<8x128xf32>
    %c0_54 = arith.constant 0 : index
    %c0_55 = arith.constant 0 : index
    %141 = vector.load %arg14[%c0_54, %c0_55] : memref<128x128xf32, #tpu.memory_space<vmem>>, vector<128x128xf32>
    %cst_56 = arith.constant dense<0.000000e+00> : vector<8x128xf32>
    %142 = tpu.matmul %137, %141, %cst_56 {dimension_numbers = #tpu.dot_dimension_numbers<[1], [0], [0], [1], [0, 0, 1, 1], [], []>} : vector<8x128xf32>, vector<128x128xf32>, vector<8x128xf32> -> vector<8x128xf32>
    %143 = arith.addf %140, %142 : vector<8x128xf32>
    %144 = math.tanh %143 : vector<8x128xf32>
    %145 = arith.mulf %128, %144 : vector<8x128xf32>
    %146 = arith.index_cast %c2_i32 : i32 to index
    %c0_57 = arith.constant 0 : index
    %c0_58 = arith.constant 0 : index
    %147 = vector.load %arg21[%146, %c0_57, %c0_58] : memref<8x8x128xf32, #tpu.memory_space<vmem>>, vector<1x8x128xf32>
    %148 = vector.shape_cast %147 : vector<1x8x128xf32> to vector<8x128xf32>
    %149 = vector.shape_cast %145 : vector<8x128xf32> to vector<1x8x128xf32>
    tpu.vector_store %arg21[%146, %c0_57, %c0_58], %149 {strides = array<i32>} : memref<8x8x128xf32, #tpu.memory_space<vmem>>, vector<1x8x128xf32>,
    %c3_i32 = arith.constant 3 : i32
    %150 = arith.index_cast %c3_i32 : i32 to index
    %c0_59 = arith.constant 0 : index
    %c0_60 = arith.constant 0 : index
    %151 = vector.load %arg20[%150, %c0_59, %c0_60] : memref<8x8x640xf32, #tpu.memory_space<vmem>>, vector<1x8x640xf32>
    %152 = vector.shape_cast %151 : vector<1x8x640xf32> to vector<8x640xf32>
    %c0_61 = arith.constant 0 : index
    %c0_62 = arith.constant 0 : index
    %153 = vector.load %arg12[%c0_61, %c0_62] : memref<128x640xf32, #tpu.memory_space<vmem>>, vector<128x640xf32>
    %cst_63 = arith.constant dense<0.000000e+00> : vector<8x640xf32>
    %154 = tpu.matmul %145, %153, %cst_63 {dimension_numbers = #tpu.dot_dimension_numbers<[1], [0], [0], [1], [0, 0, 1, 1], [], []>} : vector<8x128xf32>, vector<128x640xf32>, vector<8x640xf32> -> vector<8x640xf32>
    %155 = arith.addf %152, %154 : vector<8x640xf32>
    %156 = vector.extract_strided_slice %155 {offsets = [0, 0], sizes = [8, 128], strides = [1, 1]} : vector<8x640xf32> to vector<8x128xf32>
    %157 = arith.negf %156 : vector<8x128xf32>
    %158 = math.exp %157 : vector<8x128xf32>
    %cst_64 = arith.constant 1.000000e+00 : f32
    %159 = vector.broadcast %cst_64 : f32 to vector<8x128xf32>
    %160 = arith.addf %159, %158 : vector<8x128xf32>
    %161 = arith.divf %159, %160 : vector<8x128xf32>
    %162 = vector.extract_strided_slice %155 {offsets = [0, 128], sizes = [8, 128], strides = [1, 1]} : vector<8x640xf32> to vector<8x128xf32>
    %163 = arith.negf %162 : vector<8x128xf32>
    %164 = math.exp %163 : vector<8x128xf32>
    %cst_65 = arith.constant 1.000000e+00 : f32
    %165 = vector.broadcast %cst_65 : f32 to vector<8x128xf32>
    %166 = arith.addf %165, %164 : vector<8x128xf32>
    %167 = arith.divf %165, %166 : vector<8x128xf32>
    %168 = vector.extract_strided_slice %155 {offsets = [0, 256], sizes = [8, 128], strides = [1, 1]} : vector<8x640xf32> to vector<8x128xf32>
    %169 = arith.negf %168 : vector<8x128xf32>
    %170 = math.exp %169 : vector<8x128xf32>
    %cst_66 = arith.constant 1.000000e+00 : f32
    %171 = vector.broadcast %cst_66 : f32 to vector<8x128xf32>
    %172 = arith.addf %171, %170 : vector<8x128xf32>
    %173 = arith.divf %171, %172 : vector<8x128xf32>
    %174 = vector.extract_strided_slice %155 {offsets = [0, 384], sizes = [8, 128], strides = [1, 1]} : vector<8x640xf32> to vector<8x128xf32>
    %175 = math.tanh %174 : vector<8x128xf32>
    %176 = vector.extract_strided_slice %155 {offsets = [0, 512], sizes = [8, 128], strides = [1, 1]} : vector<8x640xf32> to vector<8x128xf32>
    %177 = arith.negf %176 : vector<8x128xf32>
    %178 = math.exp %177 : vector<8x128xf32>
    %cst_67 = arith.constant 1.000000e+00 : f32
    %179 = vector.broadcast %cst_67 : f32 to vector<8x128xf32>
    %180 = arith.addf %179, %178 : vector<8x128xf32>
    %181 = arith.divf %179, %180 : vector<8x128xf32>
    %182 = arith.mulf %181, %137 : vector<8x128xf32>
    %183 = arith.mulf %167, %143 : vector<8x128xf32>
    %184 = arith.mulf %161, %175 : vector<8x128xf32>
    %185 = arith.addf %183, %184 : vector<8x128xf32>
    %c0_68 = arith.constant 0 : index
    %c0_69 = arith.constant 0 : index
    %186 = vector.load %arg14[%c0_68, %c0_69] : memref<128x128xf32, #tpu.memory_space<vmem>>, vector<128x128xf32>
    %cst_70 = arith.constant dense<0.000000e+00> : vector<8x128xf32>
    %187 = tpu.matmul %182, %186, %cst_70 {dimension_numbers = #tpu.dot_dimension_numbers<[1], [0], [0], [1], [0, 0, 1, 1], [], []>} : vector<8x128xf32>, vector<128x128xf32>, vector<8x128xf32> -> vector<8x128xf32>
    %188 = arith.addf %185, %187 : vector<8x128xf32>
    %189 = math.tanh %188 : vector<8x128xf32>
    %190 = arith.mulf %173, %189 : vector<8x128xf32>
    %191 = arith.index_cast %c3_i32 : i32 to index
    %c0_71 = arith.constant 0 : index
    %c0_72 = arith.constant 0 : index
    %192 = vector.load %arg21[%191, %c0_71, %c0_72] : memref<8x8x128xf32, #tpu.memory_space<vmem>>, vector<1x8x128xf32>
    %193 = vector.shape_cast %192 : vector<1x8x128xf32> to vector<8x128xf32>
    %194 = vector.shape_cast %190 : vector<8x128xf32> to vector<1x8x128xf32>
    tpu.vector_store %arg21[%191, %c0_71, %c0_72], %194 {strides = array<i32>} : memref<8x8x128xf32, #tpu.memory_space<vmem>>, vector<1x8x128xf32>,
    %c4_i32 = arith.constant 4 : i32
    %195 = arith.index_cast %c4_i32 : i32 to index
    %c0_73 = arith.constant 0 : index
    %c0_74 = arith.constant 0 : index
    %196 = vector.load %arg20[%195, %c0_73, %c0_74] : memref<8x8x640xf32, #tpu.memory_space<vmem>>, vector<1x8x640xf32>
    %197 = vector.shape_cast %196 : vector<1x8x640xf32> to vector<8x640xf32>
    %c0_75 = arith.constant 0 : index
    %c0_76 = arith.constant 0 : index
    %198 = vector.load %arg12[%c0_75, %c0_76] : memref<128x640xf32, #tpu.memory_space<vmem>>, vector<128x640xf32>
    %cst_77 = arith.constant dense<0.000000e+00> : vector<8x640xf32>
    %199 = tpu.matmul %190, %198, %cst_77 {dimension_numbers = #tpu.dot_dimension_numbers<[1], [0], [0], [1], [0, 0, 1, 1], [], []>} : vector<8x128xf32>, vector<128x640xf32>, vector<8x640xf32> -> vector<8x640xf32>
    %200 = arith.addf %197, %199 : vector<8x640xf32>
    %201 = vector.extract_strided_slice %200 {offsets = [0, 0], sizes = [8, 128], strides = [1, 1]} : vector<8x640xf32> to vector<8x128xf32>
    %202 = arith.negf %201 : vector<8x128xf32>
    %203 = math.exp %202 : vector<8x128xf32>
    %cst_78 = arith.constant 1.000000e+00 : f32
    %204 = vector.broadcast %cst_78 : f32 to vector<8x128xf32>
    %205 = arith.addf %204, %203 : vector<8x128xf32>
    %206 = arith.divf %204, %205 : vector<8x128xf32>
    %207 = vector.extract_strided_slice %200 {offsets = [0, 128], sizes = [8, 128], strides = [1, 1]} : vector<8x640xf32> to vector<8x128xf32>
    %208 = arith.negf %207 : vector<8x128xf32>
    %209 = math.exp %208 : vector<8x128xf32>
    %cst_79 = arith.constant 1.000000e+00 : f32
    %210 = vector.broadcast %cst_79 : f32 to vector<8x128xf32>
    %211 = arith.addf %210, %209 : vector<8x128xf32>
    %212 = arith.divf %210, %211 : vector<8x128xf32>
    %213 = vector.extract_strided_slice %200 {offsets = [0, 256], sizes = [8, 128], strides = [1, 1]} : vector<8x640xf32> to vector<8x128xf32>
    %214 = arith.negf %213 : vector<8x128xf32>
    %215 = math.exp %214 : vector<8x128xf32>
    %cst_80 = arith.constant 1.000000e+00 : f32
    %216 = vector.broadcast %cst_80 : f32 to vector<8x128xf32>
    %217 = arith.addf %216, %215 : vector<8x128xf32>
    %218 = arith.divf %216, %217 : vector<8x128xf32>
    %219 = vector.extract_strided_slice %200 {offsets = [0, 384], sizes = [8, 128], strides = [1, 1]} : vector<8x640xf32> to vector<8x128xf32>
    %220 = math.tanh %219 : vector<8x128xf32>
    %221 = vector.extract_strided_slice %200 {offsets = [0, 512], sizes = [8, 128], strides = [1, 1]} : vector<8x640xf32> to vector<8x128xf32>
    %222 = arith.negf %221 : vector<8x128xf32>
    %223 = math.exp %222 : vector<8x128xf32>
    %cst_81 = arith.constant 1.000000e+00 : f32
    %224 = vector.broadcast %cst_81 : f32 to vector<8x128xf32>
    %225 = arith.addf %224, %223 : vector<8x128xf32>
    %226 = arith.divf %224, %225 : vector<8x128xf32>
    %227 = arith.mulf %226, %182 : vector<8x128xf32>
    %228 = arith.mulf %212, %188 : vector<8x128xf32>
    %229 = arith.mulf %206, %220 : vector<8x128xf32>
    %230 = arith.addf %228, %229 : vector<8x128xf32>
    %c0_82 = arith.constant 0 : index
    %c0_83 = arith.constant 0 : index
    %231 = vector.load %arg14[%c0_82, %c0_83] : memref<128x128xf32, #tpu.memory_space<vmem>>, vector<128x128xf32>
    %cst_84 = arith.constant dense<0.000000e+00> : vector<8x128xf32>
    %232 = tpu.matmul %227, %231, %cst_84 {dimension_numbers = #tpu.dot_dimension_numbers<[1], [0], [0], [1], [0, 0, 1, 1], [], []>} : vector<8x128xf32>, vector<128x128xf32>, vector<8x128xf32> -> vector<8x128xf32>
    %233 = arith.addf %230, %232 : vector<8x128xf32>
    %234 = math.tanh %233 : vector<8x128xf32>
    %235 = arith.mulf %218, %234 : vector<8x128xf32>
    %236 = arith.index_cast %c4_i32 : i32 to index
    %c0_85 = arith.constant 0 : index
    %c0_86 = arith.constant 0 : index
    %237 = vector.load %arg21[%236, %c0_85, %c0_86] : memref<8x8x128xf32, #tpu.memory_space<vmem>>, vector<1x8x128xf32>
    %238 = vector.shape_cast %237 : vector<1x8x128xf32> to vector<8x128xf32>
    %239 = vector.shape_cast %235 : vector<8x128xf32> to vector<1x8x128xf32>
    tpu.vector_store %arg21[%236, %c0_85, %c0_86], %239 {strides = array<i32>} : memref<8x8x128xf32, #tpu.memory_space<vmem>>, vector<1x8x128xf32>,
    %c5_i32 = arith.constant 5 : i32
    %240 = arith.index_cast %c5_i32 : i32 to index
    %c0_87 = arith.constant 0 : index
    %c0_88 = arith.constant 0 : index
    %241 = vector.load %arg20[%240, %c0_87, %c0_88] : memref<8x8x640xf32, #tpu.memory_space<vmem>>, vector<1x8x640xf32>
    %242 = vector.shape_cast %241 : vector<1x8x640xf32> to vector<8x640xf32>
    %c0_89 = arith.constant 0 : index
    %c0_90 = arith.constant 0 : index
    %243 = vector.load %arg12[%c0_89, %c0_90] : memref<128x640xf32, #tpu.memory_space<vmem>>, vector<128x640xf32>
    %cst_91 = arith.constant dense<0.000000e+00> : vector<8x640xf32>
    %244 = tpu.matmul %235, %243, %cst_91 {dimension_numbers = #tpu.dot_dimension_numbers<[1], [0], [0], [1], [0, 0, 1, 1], [], []>} : vector<8x128xf32>, vector<128x640xf32>, vector<8x640xf32> -> vector<8x640xf32>
    %245 = arith.addf %242, %244 : vector<8x640xf32>
    %246 = vector.extract_strided_slice %245 {offsets = [0, 0], sizes = [8, 128], strides = [1, 1]} : vector<8x640xf32> to vector<8x128xf32>
    %247 = arith.negf %246 : vector<8x128xf32>
    %248 = math.exp %247 : vector<8x128xf32>
    %cst_92 = arith.constant 1.000000e+00 : f32
    %249 = vector.broadcast %cst_92 : f32 to vector<8x128xf32>
    %250 = arith.addf %249, %248 : vector<8x128xf32>
    %251 = arith.divf %249, %250 : vector<8x128xf32>
    %252 = vector.extract_strided_slice %245 {offsets = [0, 128], sizes = [8, 128], strides = [1, 1]} : vector<8x640xf32> to vector<8x128xf32>
    %253 = arith.negf %252 : vector<8x128xf32>
    %254 = math.exp %253 : vector<8x128xf32>
    %cst_93 = arith.constant 1.000000e+00 : f32
    %255 = vector.broadcast %cst_93 : f32 to vector<8x128xf32>
    %256 = arith.addf %255, %254 : vector<8x128xf32>
    %257 = arith.divf %255, %256 : vector<8x128xf32>
    %258 = vector.extract_strided_slice %245 {offsets = [0, 256], sizes = [8, 128], strides = [1, 1]} : vector<8x640xf32> to vector<8x128xf32>
    %259 = arith.negf %258 : vector<8x128xf32>
    %260 = math.exp %259 : vector<8x128xf32>
    %cst_94 = arith.constant 1.000000e+00 : f32
    %261 = vector.broadcast %cst_94 : f32 to vector<8x128xf32>
    %262 = arith.addf %261, %260 : vector<8x128xf32>
    %263 = arith.divf %261, %262 : vector<8x128xf32>
    %264 = vector.extract_strided_slice %245 {offsets = [0, 384], sizes = [8, 128], strides = [1, 1]} : vector<8x640xf32> to vector<8x128xf32>
    %265 = math.tanh %264 : vector<8x128xf32>
    %266 = vector.extract_strided_slice %245 {offsets = [0, 512], sizes = [8, 128], strides = [1, 1]} : vector<8x640xf32> to vector<8x128xf32>
    %267 = arith.negf %266 : vector<8x128xf32>
    %268 = math.exp %267 : vector<8x128xf32>
    %cst_95 = arith.constant 1.000000e+00 : f32
    %269 = vector.broadcast %cst_95 : f32 to vector<8x128xf32>
    %270 = arith.addf %269, %268 : vector<8x128xf32>
    %271 = arith.divf %269, %270 : vector<8x128xf32>
    %272 = arith.mulf %271, %227 : vector<8x128xf32>
    %273 = arith.mulf %257, %233 : vector<8x128xf32>
    %274 = arith.mulf %251, %265 : vector<8x128xf32>
    %275 = arith.addf %273, %274 : vector<8x128xf32>
    %c0_96 = arith.constant 0 : index
    %c0_97 = arith.constant 0 : index
    %276 = vector.load %arg14[%c0_96, %c0_97] : memref<128x128xf32, #tpu.memory_space<vmem>>, vector<128x128xf32>
    %cst_98 = arith.constant dense<0.000000e+00> : vector<8x128xf32>
    %277 = tpu.matmul %272, %276, %cst_98 {dimension_numbers = #tpu.dot_dimension_numbers<[1], [0], [0], [1], [0, 0, 1, 1], [], []>} : vector<8x128xf32>, vector<128x128xf32>, vector<8x128xf32> -> vector<8x128xf32>
    %278 = arith.addf %275, %277 : vector<8x128xf32>
    %279 = math.tanh %278 : vector<8x128xf32>
    %280 = arith.mulf %263, %279 : vector<8x128xf32>
    %281 = arith.index_cast %c5_i32 : i32 to index
    %c0_99 = arith.constant 0 : index
    %c0_100 = arith.constant 0 : index
    %282 = vector.load %arg21[%281, %c0_99, %c0_100] : memref<8x8x128xf32, #tpu.memory_space<vmem>>, vector<1x8x128xf32>
    %283 = vector.shape_cast %282 : vector<1x8x128xf32> to vector<8x128xf32>
    %284 = vector.shape_cast %280 : vector<8x128xf32> to vector<1x8x128xf32>
    tpu.vector_store %arg21[%281, %c0_99, %c0_100], %284 {strides = array<i32>} : memref<8x8x128xf32, #tpu.memory_space<vmem>>, vector<1x8x128xf32>,
    %c6_i32 = arith.constant 6 : i32
    %285 = arith.index_cast %c6_i32 : i32 to index
    %c0_101 = arith.constant 0 : index
    %c0_102 = arith.constant 0 : index
    %286 = vector.load %arg20[%285, %c0_101, %c0_102] : memref<8x8x640xf32, #tpu.memory_space<vmem>>, vector<1x8x640xf32>
    %287 = vector.shape_cast %286 : vector<1x8x640xf32> to vector<8x640xf32>
    %c0_103 = arith.constant 0 : index
    %c0_104 = arith.constant 0 : index
    %288 = vector.load %arg12[%c0_103, %c0_104] : memref<128x640xf32, #tpu.memory_space<vmem>>, vector<128x640xf32>
    %cst_105 = arith.constant dense<0.000000e+00> : vector<8x640xf32>
    %289 = tpu.matmul %280, %288, %cst_105 {dimension_numbers = #tpu.dot_dimension_numbers<[1], [0], [0], [1], [0, 0, 1, 1], [], []>} : vector<8x128xf32>, vector<128x640xf32>, vector<8x640xf32> -> vector<8x640xf32>
    %290 = arith.addf %287, %289 : vector<8x640xf32>
    %291 = vector.extract_strided_slice %290 {offsets = [0, 0], sizes = [8, 128], strides = [1, 1]} : vector<8x640xf32> to vector<8x128xf32>
    %292 = arith.negf %291 : vector<8x128xf32>
    %293 = math.exp %292 : vector<8x128xf32>
    %cst_106 = arith.constant 1.000000e+00 : f32
    %294 = vector.broadcast %cst_106 : f32 to vector<8x128xf32>
    %295 = arith.addf %294, %293 : vector<8x128xf32>
    %296 = arith.divf %294, %295 : vector<8x128xf32>
    %297 = vector.extract_strided_slice %290 {offsets = [0, 128], sizes = [8, 128], strides = [1, 1]} : vector<8x640xf32> to vector<8x128xf32>
    %298 = arith.negf %297 : vector<8x128xf32>
    %299 = math.exp %298 : vector<8x128xf32>
    %cst_107 = arith.constant 1.000000e+00 : f32
    %300 = vector.broadcast %cst_107 : f32 to vector<8x128xf32>
    %301 = arith.addf %300, %299 : vector<8x128xf32>
    %302 = arith.divf %300, %301 : vector<8x128xf32>
    %303 = vector.extract_strided_slice %290 {offsets = [0, 256], sizes = [8, 128], strides = [1, 1]} : vector<8x640xf32> to vector<8x128xf32>
    %304 = arith.negf %303 : vector<8x128xf32>
    %305 = math.exp %304 : vector<8x128xf32>
    %cst_108 = arith.constant 1.000000e+00 : f32
    %306 = vector.broadcast %cst_108 : f32 to vector<8x128xf32>
    %307 = arith.addf %306, %305 : vector<8x128xf32>
    %308 = arith.divf %306, %307 : vector<8x128xf32>
    %309 = vector.extract_strided_slice %290 {offsets = [0, 384], sizes = [8, 128], strides = [1, 1]} : vector<8x640xf32> to vector<8x128xf32>
    %310 = math.tanh %309 : vector<8x128xf32>
    %311 = vector.extract_strided_slice %290 {offsets = [0, 512], sizes = [8, 128], strides = [1, 1]} : vector<8x640xf32> to vector<8x128xf32>
    %312 = arith.negf %311 : vector<8x128xf32>
    %313 = math.exp %312 : vector<8x128xf32>
    %cst_109 = arith.constant 1.000000e+00 : f32
    %314 = vector.broadcast %cst_109 : f32 to vector<8x128xf32>
    %315 = arith.addf %314, %313 : vector<8x128xf32>
    %316 = arith.divf %314, %315 : vector<8x128xf32>
    %317 = arith.mulf %316, %272 : vector<8x128xf32>
    %318 = arith.mulf %302, %278 : vector<8x128xf32>
    %319 = arith.mulf %296, %310 : vector<8x128xf32>
    %320 = arith.addf %318, %319 : vector<8x128xf32>
    %c0_110 = arith.constant 0 : index
    %c0_111 = arith.constant 0 : index
    %321 = vector.load %arg14[%c0_110, %c0_111] : memref<128x128xf32, #tpu.memory_space<vmem>>, vector<128x128xf32>
    %cst_112 = arith.constant dense<0.000000e+00> : vector<8x128xf32>
    %322 = tpu.matmul %317, %321, %cst_112 {dimension_numbers = #tpu.dot_dimension_numbers<[1], [0], [0], [1], [0, 0, 1, 1], [], []>} : vector<8x128xf32>, vector<128x128xf32>, vector<8x128xf32> -> vector<8x128xf32>
    %323 = arith.addf %320, %322 : vector<8x128xf32>
    %324 = math.tanh %323 : vector<8x128xf32>
    %325 = arith.mulf %308, %324 : vector<8x128xf32>
    %326 = arith.index_cast %c6_i32 : i32 to index
    %c0_113 = arith.constant 0 : index
    %c0_114 = arith.constant 0 : index
    %327 = vector.load %arg21[%326, %c0_113, %c0_114] : memref<8x8x128xf32, #tpu.memory_space<vmem>>, vector<1x8x128xf32>
    %328 = vector.shape_cast %327 : vector<1x8x128xf32> to vector<8x128xf32>
    %329 = vector.shape_cast %325 : vector<8x128xf32> to vector<1x8x128xf32>
    tpu.vector_store %arg21[%326, %c0_113, %c0_114], %329 {strides = array<i32>} : memref<8x8x128xf32, #tpu.memory_space<vmem>>, vector<1x8x128xf32>,
    %c7_i32 = arith.constant 7 : i32
    %330 = arith.index_cast %c7_i32 : i32 to index
    %c0_115 = arith.constant 0 : index
    %c0_116 = arith.constant 0 : index
    %331 = vector.load %arg20[%330, %c0_115, %c0_116] : memref<8x8x640xf32, #tpu.memory_space<vmem>>, vector<1x8x640xf32>
    %332 = vector.shape_cast %331 : vector<1x8x640xf32> to vector<8x640xf32>
    %c0_117 = arith.constant 0 : index
    %c0_118 = arith.constant 0 : index
    %333 = vector.load %arg12[%c0_117, %c0_118] : memref<128x640xf32, #tpu.memory_space<vmem>>, vector<128x640xf32>
    %cst_119 = arith.constant dense<0.000000e+00> : vector<8x640xf32>
    %334 = tpu.matmul %325, %333, %cst_119 {dimension_numbers = #tpu.dot_dimension_numbers<[1], [0], [0], [1], [0, 0, 1, 1], [], []>} : vector<8x128xf32>, vector<128x640xf32>, vector<8x640xf32> -> vector<8x640xf32>
    %335 = arith.addf %332, %334 : vector<8x640xf32>
    %336 = vector.extract_strided_slice %335 {offsets = [0, 0], sizes = [8, 128], strides = [1, 1]} : vector<8x640xf32> to vector<8x128xf32>
    %337 = arith.negf %336 : vector<8x128xf32>
    %338 = math.exp %337 : vector<8x128xf32>
    %cst_120 = arith.constant 1.000000e+00 : f32
    %339 = vector.broadcast %cst_120 : f32 to vector<8x128xf32>
    %340 = arith.addf %339, %338 : vector<8x128xf32>
    %341 = arith.divf %339, %340 : vector<8x128xf32>
    %342 = vector.extract_strided_slice %335 {offsets = [0, 128], sizes = [8, 128], strides = [1, 1]} : vector<8x640xf32> to vector<8x128xf32>
    %343 = arith.negf %342 : vector<8x128xf32>
    %344 = math.exp %343 : vector<8x128xf32>
    %cst_121 = arith.constant 1.000000e+00 : f32
    %345 = vector.broadcast %cst_121 : f32 to vector<8x128xf32>
    %346 = arith.addf %345, %344 : vector<8x128xf32>
    %347 = arith.divf %345, %346 : vector<8x128xf32>
    %348 = vector.extract_strided_slice %335 {offsets = [0, 256], sizes = [8, 128], strides = [1, 1]} : vector<8x640xf32> to vector<8x128xf32>
    %349 = arith.negf %348 : vector<8x128xf32>
    %350 = math.exp %349 : vector<8x128xf32>
    %cst_122 = arith.constant 1.000000e+00 : f32
    %351 = vector.broadcast %cst_122 : f32 to vector<8x128xf32>
    %352 = arith.addf %351, %350 : vector<8x128xf32>
    %353 = arith.divf %351, %352 : vector<8x128xf32>
    %354 = vector.extract_strided_slice %335 {offsets = [0, 384], sizes = [8, 128], strides = [1, 1]} : vector<8x640xf32> to vector<8x128xf32>
    %355 = math.tanh %354 : vector<8x128xf32>
    %356 = vector.extract_strided_slice %335 {offsets = [0, 512], sizes = [8, 128], strides = [1, 1]} : vector<8x640xf32> to vector<8x128xf32>
    %357 = arith.negf %356 : vector<8x128xf32>
    %358 = math.exp %357 : vector<8x128xf32>
    %cst_123 = arith.constant 1.000000e+00 : f32
    %359 = vector.broadcast %cst_123 : f32 to vector<8x128xf32>
    %360 = arith.addf %359, %358 : vector<8x128xf32>
    %361 = arith.divf %359, %360 : vector<8x128xf32>
    %362 = arith.mulf %361, %317 : vector<8x128xf32>
    %363 = arith.mulf %347, %323 : vector<8x128xf32>
    %364 = arith.mulf %341, %355 : vector<8x128xf32>
    %365 = arith.addf %363, %364 : vector<8x128xf32>
    %c0_124 = arith.constant 0 : index
    %c0_125 = arith.constant 0 : index
    %366 = vector.load %arg14[%c0_124, %c0_125] : memref<128x128xf32, #tpu.memory_space<vmem>>, vector<128x128xf32>
    %cst_126 = arith.constant dense<0.000000e+00> : vector<8x128xf32>
    %367 = tpu.matmul %362, %366, %cst_126 {dimension_numbers = #tpu.dot_dimension_numbers<[1], [0], [0], [1], [0, 0, 1, 1], [], []>} : vector<8x128xf32>, vector<128x128xf32>, vector<8x128xf32> -> vector<8x128xf32>
    %368 = arith.addf %365, %367 : vector<8x128xf32>
    %369 = math.tanh %368 : vector<8x128xf32>
    %370 = arith.mulf %353, %369 : vector<8x128xf32>
    %371 = arith.index_cast %c7_i32 : i32 to index
    %c0_127 = arith.constant 0 : index
    %c0_128 = arith.constant 0 : index
    %372 = vector.load %arg21[%371, %c0_127, %c0_128] : memref<8x8x128xf32, #tpu.memory_space<vmem>>, vector<1x8x128xf32>
    %373 = vector.shape_cast %372 : vector<1x8x128xf32> to vector<8x128xf32>
    %374 = vector.shape_cast %370 : vector<8x128xf32> to vector<1x8x128xf32>
    tpu.vector_store %arg21[%371, %c0_127, %c0_128], %374 {strides = array<i32>} : memref<8x8x128xf32, #tpu.memory_space<vmem>>, vector<1x8x128xf32>,
    %c8_i32 = arith.constant 8 : i32
    %c0_129 = arith.constant 0 : index
    %c0_130 = arith.constant 0 : index
    %375 = vector.load %arg17[%c0_129, %c0_130] : memref<8x128xf32, #tpu.memory_space<vmem>>, vector<8x128xf32>
    tpu.vector_store %arg17[%c0_129, %c0_130], %370 {strides = array<i32>} : memref<8x128xf32, #tpu.memory_space<vmem>>, vector<8x128xf32>,
    %c0_131 = arith.constant 0 : index
    %c0_132 = arith.constant 0 : index
    %376 = vector.load %arg18[%c0_131, %c0_132] : memref<8x128xf32, #tpu.memory_space<vmem>>, vector<8x128xf32>
    tpu.vector_store %arg18[%c0_131, %c0_132], %368 {strides = array<i32>} : memref<8x128xf32, #tpu.memory_space<vmem>>, vector<8x128xf32>,
    %c0_133 = arith.constant 0 : index
    %c0_134 = arith.constant 0 : index
    %377 = vector.load %arg19[%c0_133, %c0_134] : memref<8x128xf32, #tpu.memory_space<vmem>>, vector<8x128xf32>
    tpu.vector_store %arg19[%c0_133, %c0_134], %362 {strides = array<i32>} : memref<8x128xf32, #tpu.memory_space<vmem>>, vector<8x128xf32>,
    %c0_i32_135 = arith.constant 0 : i32
    %378 = arith.cmpi eq, %arg1, %c0_i32_135 : i32
    %379 = arith.extui %378 : i1 to i32
    %c0_i32_136 = arith.constant 0 : i32
    %380 = arith.cmpi ne, %379, %c0_i32_136 : i32
    scf.if %380 {
      %c4_i32_148 = arith.constant 4 : i32
      %390 = tpu.memref_slice %arg22[%c4_i32_148] : memref<6x!tpu.dma_semaphore, #tpu.memory_space<semaphore_mem>> -> memref<1x!tpu.dma_semaphore, #tpu.memory_space<semaphore_mem>>
      %391 = tpu.memref_squeeze %390 : memref<1x!tpu.dma_semaphore, #tpu.memory_space<semaphore_mem>> -> memref<!tpu.dma_semaphore, #tpu.memory_space<semaphore_mem>>
      tpu.wait_dma2 semaphore(%391 : memref<!tpu.dma_semaphore, #tpu.memory_space<semaphore_mem>>) src(%arg8 : memref<128x16xf32, #tpu.memory_space<any>>) dst(%arg15 : memref<128x16xf32, #tpu.memory_space<vmem>>)
      %c5_i32_149 = arith.constant 5 : i32
      %392 = tpu.memref_slice %arg22[%c5_i32_149] : memref<6x!tpu.dma_semaphore, #tpu.memory_space<semaphore_mem>> -> memref<1x!tpu.dma_semaphore, #tpu.memory_space<semaphore_mem>>
      %393 = tpu.memref_squeeze %392 : memref<1x!tpu.dma_semaphore, #tpu.memory_space<semaphore_mem>> -> memref<!tpu.dma_semaphore, #tpu.memory_space<semaphore_mem>>
      tpu.wait_dma2 semaphore(%393 : memref<!tpu.dma_semaphore, #tpu.memory_space<semaphore_mem>>) src(%arg9 : memref<1x16xf32, #tpu.memory_space<any>>) dst(%arg16 : memref<1x16xf32, #tpu.memory_space<vmem>>)
    } else {
    }
    %c0_137 = arith.constant 0 : index
    %c0_138 = arith.constant 0 : index
    %c0_139 = arith.constant 0 : index
    %381 = vector.load %arg21[%c0_137, %c0_138, %c0_139] : memref<8x8x128xf32, #tpu.memory_space<vmem>>, vector<8x8x128xf32>
    %382 = vector.shape_cast %381 : vector<8x8x128xf32> to vector<64x128xf32>
    %c0_140 = arith.constant 0 : index
    %c0_141 = arith.constant 0 : index
    %383 = vector.load %arg15[%c0_140, %c0_141] : memref<128x16xf32, #tpu.memory_space<vmem>>, vector<128x16xf32>
    %cst_142 = arith.constant dense<0.000000e+00> : vector<64x16xf32>
    %384 = tpu.matmul %382, %383, %cst_142 {dimension_numbers = #tpu.dot_dimension_numbers<[1], [0], [0], [1], [0, 0, 1, 1], [], []>} : vector<64x128xf32>, vector<128x16xf32>, vector<64x16xf32> -> vector<64x16xf32>
    %c0_143 = arith.constant 0 : index
    %c0_144 = arith.constant 0 : index
    %385 = vector.load %arg16[%c0_143, %c0_144] : memref<1x16xf32, #tpu.memory_space<vmem>>, vector<1x16xf32>
    %386 = vector.broadcast %385 : vector<1x16xf32> to vector<64x16xf32>
    %387 = arith.addf %384, %386 : vector<64x16xf32>
    %388 = vector.shape_cast %387 : vector<64x16xf32> to vector<8x8x16xf32>
    %c0_145 = arith.constant 0 : index
    %c0_146 = arith.constant 0 : index
    %c0_147 = arith.constant 0 : index
    %389 = vector.load %arg10[%c0_145, %c0_146, %c0_147] : memref<8x8x16xf32, #tpu.memory_space<vmem>>, vector<8x8x16xf32>
    tpu.vector_store %arg10[%c0_145, %c0_146, %c0_147], %388 {strides = array<i32>} : memref<8x8x16xf32, #tpu.memory_space<vmem>>, vector<8x8x16xf32>,
    return
  }
  func.func @transform_0(%arg0: i32, %arg1: i32) -> (i32, i32, i32) {
    %c0_i32 = arith.constant 0 : i32
    %c0_i32_0 = arith.constant 0 : i32
    return %arg1, %arg0, %c0_i32 : i32, i32, i32
  }
  func.func @transform_1(%arg0: i32, %arg1: i32) -> (i32, i32) {
    %c0_i32 = arith.constant 0 : i32
    %c0_i32_0 = arith.constant 0 : i32
    return %arg0, %c0_i32 : i32, i32
  }
  func.func @transform_8(%arg0: i32, %arg1: i32) -> (i32, i32, i32) {
    %c0_i32 = arith.constant 0 : i32
    %c0_i32_0 = arith.constant 0 : i32
    return %arg1, %arg0, %c0_i32 : i32, i32, i32
  }
}

</mosaic_0001>

<llo_original>
// kernel: tpu_custom_call.1
$region0: #{tpu_custom_call.1}
  #allocation0 [shape = 'u32[]', space=smem, size = 0x4, offset = 0x4, fixed_abs, tag = 'smem constant byte address 0x4 - core index']
  #allocation1 [shape = 'u32[144,128]{1,0:T(1,128)}', space=vmem, size = 0x12000, scoped, tag = 'internal scratch']
  #allocation2 [shape = 'f32[16,640]{1,0:T(8,128)}', space=vmem, size = 0xa000, scoped, tag = 'scratch operand']
  #allocation3 [shape = 'f32[128,640]{1,0:T(8,128)}', space=vmem, size = 0x50000, scoped, tag = 'scratch operand']
  #allocation4 [shape = 'f32[1,640]{1,0:T(1,128)}', space=vmem, size = 0xa00, scoped, tag = 'scratch operand']
  #allocation5 [shape = 'f32[128,128]{1,0:T(8,128)}', space=vmem, size = 0x10000, scoped, tag = 'scratch operand']
  #allocation6 [shape = 'f32[128,16]{1,0:T(8,128)}', space=vmem, size = 0x10000, scoped, tag = 'scratch operand']
  #allocation7 [shape = 'f32[1,16]{1,0:T(1,128)}', space=vmem, size = 0x200, scoped, tag = 'scratch operand']
  #allocation8 [shape = 'f32[8,128]{1,0:T(8,128)}', space=vmem, size = 0x1000, scoped, tag = 'scratch operand']
  #allocation9 [shape = 'f32[8,128]{1,0:T(8,128)}', space=vmem, size = 0x1000, scoped, tag = 'scratch operand']
  #allocation10 [shape = 'f32[8,128]{1,0:T(8,128)}', space=vmem, size = 0x1000, scoped, tag = 'scratch operand']
  #allocation11 [shape = 'f32[8,8,640]{2,1,0:T(8,128)}', space=vmem, size = 0x28000, scoped, tag = 'scratch operand']
  #allocation12 [shape = 'f32[8,8,128]{2,1,0:T(8,128)}', space=vmem, size = 0x8000, scoped, tag = 'scratch operand']
  #allocation13 [shape = 's32[6]{0}', space=sflag, size = 0x18, scoped, tag = 'scratch operand']
  #allocation18 [shape = 's32[]', space=sflag, size = 0x4, offset = 0, fixed_abs, tag = 'sflag constant byte address 0x0 - dummy sync flag']
  #allocation19 [shape = 's32[]', space=sflag, size = 0x4, offset = 0, fixed_abs, tag = 'sflag constant byte address 0x0 - dummy sync flag']
  #allocation20 [shape = 'u32[]', space=smem, size = 0x4, offset = 0x44, fixed_abs, tag = 'smem constant byte address 0x44 - assertion arg 0']
  #allocation21 [shape = 'u32[]', space=smem, size = 0x4, offset = 0x48, fixed_abs, tag = 'smem constant byte address 0x48 - assertion arg 1']
  #allocation22 [shape = 's32[]', space=sflag, size = 0x4, offset = 0, fixed_abs, tag = 'sflag constant byte address 0x0 - dummy sync flag']
  #allocation23 [shape = 's32[]', space=sflag, size = 0x4, offset = 0, fixed_abs, tag = 'sflag constant byte address 0x0 - dummy sync flag']
  #allocation24 [shape = 's32[]', space=sflag, size = 0x4, offset = 0, fixed_abs, tag = 'sflag constant byte address 0x0 - dummy sync flag']
  #allocation25 [shape = 's32[]', space=sflag, size = 0x4, offset = 0, fixed_abs, tag = 'sflag constant byte address 0x0 - dummy sync flag']
  #allocation26 [shape = 's32[]', space=sflag, size = 0x4, offset = 0, fixed_abs, tag = 'sflag constant byte address 0x0 - dummy sync flag']
  #allocation27 [shape = 's32[]', space=sflag, size = 0x4, offset = 0, fixed_abs, tag = 'sflag constant byte address 0x0 - dummy sync flag']
  %s0 = inlined_call_operand.hbm [shape: f32[8,8,16], index: 0, kind: input, shape index: {}]
  %s1 = inlined_call_operand.vmem [shape: f32[8,128], index: 1, kind: input, shape index: {}]
  %s2 = inlined_call_operand.hbm [shape: f32[16,640], index: 2, kind: input, shape index: {}]
  %s3 = inlined_call_operand.hbm [shape: f32[128,640], index: 3, kind: input, shape index: {}]
  %s4 = inlined_call_operand.vmem [shape: f32[1,640], index: 4, kind: input, shape index: {}]
  %s5 = inlined_call_operand.vmem [shape: f32[128,128], index: 5, kind: input, shape index: {}]
  %s6 = inlined_call_operand.vmem [shape: f32[128,16], index: 6, kind: input, shape index: {}]
  %s7 = inlined_call_operand.vmem [shape: f32[1,16], index: 7, kind: input, shape index: {}]
  %s8 = inlined_call_operand.hbm [shape: f32[8,8,16], index: 8, kind: output, shape index: {}]
  %s9 = sld [smem:[#allocation0]]
  $region166: #{tpu_custom_call.1} parent=0
    _
  %s11 = ssub.s32 1, %s9
  %s12 = scalar_select 0, %s11, %s9
  $region1: #{tpu_custom_call.1} parent=0
    #allocation14 [shape = 'u8[32768]{0}', space=vmem, size = 0x8000, scoped, tag = 'input window, operand 0, single buffered']
    #allocation15 [shape = 's32[1]{0}', space=sflag, size = 0x4, scoped, tag = 'scoped memory for tpu_custom_call.1']
    #allocation16 [shape = 's32[1]{0}', space=sflag, size = 0x4, scoped, tag = 'scoped memory for tpu_custom_call.1']
    #allocation17 [shape = 'u8[32768]{0}', space=vmem, size = 0x8000, scoped, tag = 'output window, operand 0, single buffered']
    %13 = vsyncpa [#allocation15], 0
    %14 = vsyncpa [#allocation16], 0
    // Predicated region
    $region2: #{tpu_custom_call.1} parent=1 // pred_check
      _
    $region3: #{tpu_custom_call.1} parent=1 // pred_check_branch
      %16 = sbr.rel (0) target = $region5
    $region4: #{tpu_custom_call.1} parent=1 // pred_region
      %s18 = ssub.s32 1024, 1024
      %19 = vsyncadd [#allocation15], %s18
      %s20 = sshll.u32 [#allocation14], 4
      %s21 = int_to_ptr.vmem [resolvable:$true] %s20
      %26 = dma.hbm_to_vmem [thread:$0]  %s0, 1024, %s21, [#allocation15], 128, 128, 8
    $region5: #{tpu_custom_call.1} parent=1 // pred_fallthru
      _
    // Predicated region
    $region6: #{tpu_custom_call.1} parent=1 // pred_check
      _
    $region7: #{tpu_custom_call.1} parent=1 // pred_check_branch
      %28 = sbr.rel (0) target = $region9
    $region8: #{tpu_custom_call.1} parent=1 // pred_region
      _
    $region9: #{tpu_custom_call.1} parent=1 // pred_fallthru
      _
    // Predicated region
    $region10: #{tpu_custom_call.1} parent=1 // pred_check
      _
    $region11: #{tpu_custom_call.1} parent=1 // pred_check_branch
      %30 = sbr.rel (0) target = $region13
    $region12: #{tpu_custom_call.1} parent=1 // pred_region
      %31 = dma.done [#allocation15], 1024
    $region13: #{tpu_custom_call.1} parent=1 // pred_fallthru
      _
    %p32 = scmp.eq.s32.totalorder 0, 0
    // Predicated region
    $region14: #{tpu_custom_call.1} parent=1 // pred_check
      %p33 = pneg %p32
    $region15: #{tpu_custom_call.1} parent=1 // pred_check_branch
      %35 = sbr.rel (%p33) target = $region17
    $region16: #{tpu_custom_call.1} parent=1 // pred_region
      // Predicated region
      $region18: #{tpu_custom_call.1} parent=16 // pred_check
        _
      $region19: #{tpu_custom_call.1} parent=16 // pred_check_branch
        %37 = sbr.rel target = $region21
      $region20: #{tpu_custom_call.1} parent=16 // pred_region
        %38 = sst [smem:[#allocation20]] [#allocation19]
        %39 = sst [smem:[#allocation21]] [#allocation18]
      $region21: #{tpu_custom_call.1} parent=16 // pred_fallthru
        _
      %41 = shalt.err (0)
      %s43 = sshll.u32 [#allocation2], 4
      %s44 = int_to_ptr.vmem [resolvable:$true] %s43
      %46 = dma.hbm_to_vmem [thread:$0]  %s2, 1280, %s44, [#allocation13]
      %s47 = scalar_lea.sflag [#allocation13], 1
      // Predicated region
      $region22: #{tpu_custom_call.1} parent=16 // pred_check
        _
      $region23: #{tpu_custom_call.1} parent=16 // pred_check_branch
        %49 = sbr.rel target = $region25
      $region24: #{tpu_custom_call.1} parent=16 // pred_region
        %50 = sst [smem:[#allocation20]] [#allocation23]
        %51 = sst [smem:[#allocation21]] [#allocation22]
      $region25: #{tpu_custom_call.1} parent=16 // pred_fallthru
        _
      %53 = shalt.err (0)
      %s55 = sshll.u32 [#allocation3], 4
      %s56 = int_to_ptr.vmem [resolvable:$true] %s55
      %58 = dma.hbm_to_vmem [thread:$0]  %s3, 10240, %s56, %s47
      %s59 = scalar_lea.sflag [#allocation13], 2
      %p61 = scmp.lt.u32.totalorder 5, 8
      %p62 = pneg %p61
      // Predicated region
      $region26: #{tpu_custom_call.1} parent=16 // pred_check
        _
      $region27: #{tpu_custom_call.1} parent=16 // pred_check_branch
        %64 = sbr.rel (%p61) target = $region29
      $region28: #{tpu_custom_call.1} parent=16 // pred_region
        %s79 = sand.u32 5, 7
        %p80 = scmp.eq.s32.totalorder %s79, 0
        %p81 = pneg %p80
        // Predicated region
        $region41: #{tpu_custom_call.1} parent=28 // pred_check
          _
        $region42: #{tpu_custom_call.1} parent=28 // pred_check_branch
          %83 = sbr.rel (%p80) target = $region44
        $region43: #{tpu_custom_call.1} parent=28 // pred_region
          %s84 = sand.u32 5, 7
          %s85 = ssub.s32 5, %s84
          %s86 = scalar_lea.vmem %s4, %s85
          %s87 = ssub.s32 5, %s84
          %s88 = scalar_lea.vmem [#allocation4], %s87
          %s89 = sshllo.u32 0, %s84
          loop: start=0, step=1, limit=1
          $region45: #{tpu_custom_call.1} parent=43 // loop_pre_header
            _
          $region46: #{tpu_custom_call.1} parent=43 // loop_header
            %s91 = sphi 0, %s95
            %p92 = scmp.ge.s32.totalorder %s91, 1
            %s96 = sphi %s86, %s86
            %s97 = sphi %s88, %s88
          $region47: #{tpu_custom_call.1} parent=43 // loop_header_branch
            %94 = sbr.rel (%p92) target = $region51
          $region48: #{tpu_custom_call.1} parent=43 // loop_body
            %v98 = vld [vmem:[%s96] sm:%s89]
            %99 = vst [vmem:[%s97] sm:%s89] %v98
          $region49: #{tpu_custom_call.1} parent=43 // loop_footer
            %s95 = sadd.s32 1, %s91
          $region50: #{tpu_custom_call.1} parent=43 // loop_footer_branch
            %90 = sbr.rel target = $region46
          $region51: #{tpu_custom_call.1} parent=43 // loop_exit
            _
        $region44: #{tpu_custom_call.1} parent=28 // pred_fallthru
          _
      $region29: #{tpu_custom_call.1} parent=16 // pred_fallthru
        _
      // Predicated region
      $region30: #{tpu_custom_call.1} parent=16 // pred_check
        %p65 = pneg %p61
      $region31: #{tpu_custom_call.1} parent=16 // pred_check_branch
        %67 = sbr.rel (%p65) target = $region33
      $region32: #{tpu_custom_call.1} parent=16 // pred_region
        %s68 = sshllo.u32 0, 5
        loop: start=0, step=1, limit=1
        $region34: #{tpu_custom_call.1} parent=32 // loop_pre_header
          _
        $region35: #{tpu_custom_call.1} parent=32 // loop_header
          %s70 = sphi 0, %s74
          %p71 = scmp.ge.s32.totalorder %s70, 1
          %s75 = sphi %s4, %s4
          %s76 = sphi [#allocation4], [#allocation4]
        $region36: #{tpu_custom_call.1} parent=32 // loop_header_branch
          %73 = sbr.rel (%p71) target = $region40
        $region37: #{tpu_custom_call.1} parent=32 // loop_body
          %v77 = vld [vmem:[%s75] sm:%s68]
          %78 = vst [vmem:[%s76] sm:%s68] %v77
        $region38: #{tpu_custom_call.1} parent=32 // loop_footer
          %s74 = sadd.s32 1, %s70
        $region39: #{tpu_custom_call.1} parent=32 // loop_footer_branch
          %69 = sbr.rel target = $region35
        $region40: #{tpu_custom_call.1} parent=32 // loop_exit
          _
      $region33: #{tpu_custom_call.1} parent=16 // pred_fallthru
        _
      // Predicated region
      $region52: #{tpu_custom_call.1} parent=16 // pred_check
        _
      $region53: #{tpu_custom_call.1} parent=16 // pred_check_branch
        %102 = sbr.rel (0) target = $region55
      $region54: #{tpu_custom_call.1} parent=16 // pred_region
        %103 = vsyncadd %s59, 80
      $region55: #{tpu_custom_call.1} parent=16 // pred_fallthru
        _
      %s104 = scalar_lea.sflag [#allocation13], 3
      %p106 = scmp.lt.u32.totalorder 128, 8
      %p107 = pneg %p106
      // Predicated region
      $region56: #{tpu_custom_call.1} parent=16 // pred_check
        _
      $region57: #{tpu_custom_call.1} parent=16 // pred_check_branch
        %109 = sbr.rel (%p106) target = $region59
      $region58: #{tpu_custom_call.1} parent=16 // pred_region
        %s124 = sand.u32 128, 7
        %p125 = scmp.eq.s32.totalorder %s124, 0
        // Predicated region
        $region71: #{tpu_custom_call.1} parent=58 // pred_check
          %p126 = pneg %p125
        $region72: #{tpu_custom_call.1} parent=58 // pred_check_branch
          %128 = sbr.rel (%p126) target = $region74
        $region73: #{tpu_custom_call.1} parent=58 // pred_region
          loop: start=0, step=1, limit=1
          $region75: #{tpu_custom_call.1} parent=73 // loop_pre_header
            _
          $region76: #{tpu_custom_call.1} parent=73 // loop_header
            %s130 = sphi 0, %s134
            %p131 = scmp.ge.s32.totalorder %s130, 1
            %s135 = sphi %s5, %s5
            %s136 = sphi [#allocation5], [#allocation5]
          $region77: #{tpu_custom_call.1} parent=73 // loop_header_branch
            %133 = sbr.rel (%p131) target = $region81
          $region78: #{tpu_custom_call.1} parent=73 // loop_body
            %v137 = vld [vmem:[%s135] sm:$0xff]
            %138 = vst [vmem:[%s136] sm:$0xff] %v137
            %v139 = vld [vmem:[%s135 + $0x8] sm:$0xff]
            %140 = vst [vmem:[%s136 + $0x8] sm:$0xff] %v139
            %v141 = vld [vmem:[%s135 + $0x10] sm:$0xff]
            %142 = vst [vmem:[%s136 + $0x10] sm:$0xff] %v141
            %v143 = vld [vmem:[%s135 + $0x18] sm:$0xff]
            %144 = vst [vmem:[%s136 + $0x18] sm:$0xff] %v143
            %v145 = vld [vmem:[%s135 + $0x20] sm:$0xff]
            %146 = vst [vmem:[%s136 + $0x20] sm:$0xff] %v145
            %v147 = vld [vmem:[%s135 + $0x28] sm:$0xff]
            %148 = vst [vmem:[%s136 + $0x28] sm:$0xff] %v147
            %v149 = vld [vmem:[%s135 + $0x30] sm:$0xff]
            %150 = vst [vmem:[%s136 + $0x30] sm:$0xff] %v149
            %v151 = vld [vmem:[%s135 + $0x38] sm:$0xff]
            %152 = vst [vmem:[%s136 + $0x38] sm:$0xff] %v151
            %v153 = vld [vmem:[%s135 + $0x40] sm:$0xff]
            %154 = vst [vmem:[%s136 + $0x40] sm:$0xff] %v153
            %v155 = vld [vmem:[%s135 + $0x48] sm:$0xff]
            %156 = vst [vmem:[%s136 + $0x48] sm:$0xff] %v155
            %v157 = vld [vmem:[%s135 + $0x50] sm:$0xff]
            %158 = vst [vmem:[%s136 + $0x50] sm:$0xff] %v157
            %v159 = vld [vmem:[%s135 + $0x58] sm:$0xff]
            %160 = vst [vmem:[%s136 + $0x58] sm:$0xff] %v159
            %v161 = vld [vmem:[%s135 + $0x60] sm:$0xff]
            %162 = vst [vmem:[%s136 + $0x60] sm:$0xff] %v161
            %v163 = vld [vmem:[%s135 + $0x68] sm:$0xff]
            %164 = vst [vmem:[%s136 + $0x68] sm:$0xff] %v163
            %v165 = vld [vmem:[%s135 + $0x70] sm:$0xff]
            %166 = vst [vmem:[%s136 + $0x70] sm:$0xff] %v165
            %v167 = vld [vmem:[%s135 + $0x78] sm:$0xff]
            %168 = vst [vmem:[%s136 + $0x78] sm:$0xff] %v167
          $region79: #{tpu_custom_call.1} parent=73 // loop_footer
            %s134 = sadd.s32 1, %s130
          $region80: #{tpu_custom_call.1} parent=73 // loop_footer_branch
            %129 = sbr.rel target = $region76
          $region81: #{tpu_custom_call.1} parent=73 // loop_exit
            _
        $region74: #{tpu_custom_call.1} parent=58 // pred_fallthru
          _
        %p169 = pneg %p125
        // Predicated region
        $region82: #{tpu_custom_call.1} parent=58 // pred_check
          _
        $region83: #{tpu_custom_call.1} parent=58 // pred_check_branch
          %171 = sbr.rel (%p125) target = $region85
        $region84: #{tpu_custom_call.1} parent=58 // pred_region
          %s172 = sand.u32 128, 7
        $region85: #{tpu_custom_call.1} parent=58 // pred_fallthru
          _
      $region59: #{tpu_custom_call.1} parent=16 // pred_fallthru
        _
      // Predicated region
      $region60: #{tpu_custom_call.1} parent=16 // pred_check
        %p110 = pneg %p106
      $region61: #{tpu_custom_call.1} parent=16 // pred_check_branch
        %112 = sbr.rel (%p110) target = $region63
      $region62: #{tpu_custom_call.1} parent=16 // pred_region
        %s113 = sshllo.u32 0, 128
        loop: start=0, step=1, limit=1
        $region64: #{tpu_custom_call.1} parent=62 // loop_pre_header
          _
        $region65: #{tpu_custom_call.1} parent=62 // loop_header
          %s115 = sphi 0, %s119
          %p116 = scmp.ge.s32.totalorder %s115, 1
          %s120 = sphi %s5, %s5
          %s121 = sphi [#allocation5], [#allocation5]
        $region66: #{tpu_custom_call.1} parent=62 // loop_header_branch
          %118 = sbr.rel (%p116) target = $region70
        $region67: #{tpu_custom_call.1} parent=62 // loop_body
          %v122 = vld [vmem:[%s120] sm:%s113]
          %123 = vst [vmem:[%s121] sm:%s113] %v122
        $region68: #{tpu_custom_call.1} parent=62 // loop_footer
          %s119 = sadd.s32 1, %s115
        $region69: #{tpu_custom_call.1} parent=62 // loop_footer_branch
          %114 = sbr.rel target = $region65
        $region70: #{tpu_custom_call.1} parent=62 // loop_exit
          _
      $region63: #{tpu_custom_call.1} parent=16 // pred_fallthru
        _
      // Predicated region
      $region86: #{tpu_custom_call.1} parent=16 // pred_check
        _
      $region87: #{tpu_custom_call.1} parent=16 // pred_check_branch
        %175 = sbr.rel (0) target = $region89
      $region88: #{tpu_custom_call.1} parent=16 // pred_region
        %176 = vsyncadd %s104, 2048
      $region89: #{tpu_custom_call.1} parent=16 // pred_fallthru
        _
      %s177 = scalar_lea.sflag [#allocation13], 4
      %p179 = scmp.lt.u32.totalorder 128, 8
      %p180 = pneg %p179
      // Predicated region
      $region90: #{tpu_custom_call.1} parent=16 // pred_check
        _
      $region91: #{tpu_custom_call.1} parent=16 // pred_check_branch
        %182 = sbr.rel (%p179) target = $region93
      $region92: #{tpu_custom_call.1} parent=16 // pred_region
        %s197 = sand.u32 128, 7
        %p198 = scmp.eq.s32.totalorder %s197, 0
        // Predicated region
        $region105: #{tpu_custom_call.1} parent=92 // pred_check
          %p199 = pneg %p198
        $region106: #{tpu_custom_call.1} parent=92 // pred_check_branch
          %201 = sbr.rel (%p199) target = $region108
        $region107: #{tpu_custom_call.1} parent=92 // pred_region
          loop: start=0, step=1, limit=1
          $region109: #{tpu_custom_call.1} parent=107 // loop_pre_header
            _
          $region110: #{tpu_custom_call.1} parent=107 // loop_header
            %s203 = sphi 0, %s207
            %p204 = scmp.ge.s32.totalorder %s203, 1
            %s208 = sphi %s6, %s6
            %s209 = sphi [#allocation6], [#allocation6]
          $region111: #{tpu_custom_call.1} parent=107 // loop_header_branch
            %206 = sbr.rel (%p204) target = $region115
          $region112: #{tpu_custom_call.1} parent=107 // loop_body
            %v210 = vld [vmem:[%s208] sm:$0xff]
            %211 = vst [vmem:[%s209] sm:$0xff] %v210
            %v212 = vld [vmem:[%s208 + $0x8] sm:$0xff]
            %213 = vst [vmem:[%s209 + $0x8] sm:$0xff] %v212
            %v214 = vld [vmem:[%s208 + $0x10] sm:$0xff]
            %215 = vst [vmem:[%s209 + $0x10] sm:$0xff] %v214
            %v216 = vld [vmem:[%s208 + $0x18] sm:$0xff]
            %217 = vst [vmem:[%s209 + $0x18] sm:$0xff] %v216
            %v218 = vld [vmem:[%s208 + $0x20] sm:$0xff]
            %219 = vst [vmem:[%s209 + $0x20] sm:$0xff] %v218
            %v220 = vld [vmem:[%s208 + $0x28] sm:$0xff]
            %221 = vst [vmem:[%s209 + $0x28] sm:$0xff] %v220
            %v222 = vld [vmem:[%s208 + $0x30] sm:$0xff]
            %223 = vst [vmem:[%s209 + $0x30] sm:$0xff] %v222
            %v224 = vld [vmem:[%s208 + $0x38] sm:$0xff]
            %225 = vst [vmem:[%s209 + $0x38] sm:$0xff] %v224
            %v226 = vld [vmem:[%s208 + $0x40] sm:$0xff]
            %227 = vst [vmem:[%s209 + $0x40] sm:$0xff] %v226
            %v228 = vld [vmem:[%s208 + $0x48] sm:$0xff]
            %229 = vst [vmem:[%s209 + $0x48] sm:$0xff] %v228
            %v230 = vld [vmem:[%s208 + $0x50] sm:$0xff]
            %231 = vst [vmem:[%s209 + $0x50] sm:$0xff] %v230
            %v232 = vld [vmem:[%s208 + $0x58] sm:$0xff]
            %233 = vst [vmem:[%s209 + $0x58] sm:$0xff] %v232
            %v234 = vld [vmem:[%s208 + $0x60] sm:$0xff]
            %235 = vst [vmem:[%s209 + $0x60] sm:$0xff] %v234
            %v236 = vld [vmem:[%s208 + $0x68] sm:$0xff]
            %237 = vst [vmem:[%s209 + $0x68] sm:$0xff] %v236
            %v238 = vld [vmem:[%s208 + $0x70] sm:$0xff]
            %239 = vst [vmem:[%s209 + $0x70] sm:$0xff] %v238
            %v240 = vld [vmem:[%s208 + $0x78] sm:$0xff]
            %241 = vst [vmem:[%s209 + $0x78] sm:$0xff] %v240
          $region113: #{tpu_custom_call.1} parent=107 // loop_footer
            %s207 = sadd.s32 1, %s203
          $region114: #{tpu_custom_call.1} parent=107 // loop_footer_branch
            %202 = sbr.rel target = $region110
          $region115: #{tpu_custom_call.1} parent=107 // loop_exit
            _
        $region108: #{tpu_custom_call.1} parent=92 // pred_fallthru
          _
        %p242 = pneg %p198
        // Predicated region
        $region116: #{tpu_custom_call.1} parent=92 // pred_check
          _
        $region117: #{tpu_custom_call.1} parent=92 // pred_check_branch
          %244 = sbr.rel (%p198) target = $region119
        $region118: #{tpu_custom_call.1} parent=92 // pred_region
          %s245 = sand.u32 128, 7
        $region119: #{tpu_custom_call.1} parent=92 // pred_fallthru
          _
      $region93: #{tpu_custom_call.1} parent=16 // pred_fallthru
        _
      // Predicated region
      $region94: #{tpu_custom_call.1} parent=16 // pred_check
        %p183 = pneg %p179
      $region95: #{tpu_custom_call.1} parent=16 // pred_check_branch
        %185 = sbr.rel (%p183) target = $region97
      $region96: #{tpu_custom_call.1} parent=16 // pred_region
        %s186 = sshllo.u32 0, 128
        loop: start=0, step=1, limit=1
        $region98: #{tpu_custom_call.1} parent=96 // loop_pre_header
          _
        $region99: #{tpu_custom_call.1} parent=96 // loop_header
          %s188 = sphi 0, %s192
          %p189 = scmp.ge.s32.totalorder %s188, 1
          %s193 = sphi %s6, %s6
          %s194 = sphi [#allocation6], [#allocation6]
        $region100: #{tpu_custom_call.1} parent=96 // loop_header_branch
          %191 = sbr.rel (%p189) target = $region104
        $region101: #{tpu_custom_call.1} parent=96 // loop_body
          %v195 = vld [vmem:[%s193] sm:%s186]
          %196 = vst [vmem:[%s194] sm:%s186] %v195
        $region102: #{tpu_custom_call.1} parent=96 // loop_footer
          %s192 = sadd.s32 1, %s188
        $region103: #{tpu_custom_call.1} parent=96 // loop_footer_branch
          %187 = sbr.rel target = $region99
        $region104: #{tpu_custom_call.1} parent=96 // loop_exit
          _
      $region97: #{tpu_custom_call.1} parent=16 // pred_fallthru
        _
      // Predicated region
      $region120: #{tpu_custom_call.1} parent=16 // pred_check
        _
      $region121: #{tpu_custom_call.1} parent=16 // pred_check_branch
        %248 = sbr.rel (0) target = $region123
      $region122: #{tpu_custom_call.1} parent=16 // pred_region
        %249 = vsyncadd %s177, 2048
      $region123: #{tpu_custom_call.1} parent=16 // pred_fallthru
        _
      %s250 = scalar_lea.sflag [#allocation13], 5
      %p252 = scmp.lt.u32.totalorder 1, 8
      %p253 = pneg %p252
      // Predicated region
      $region124: #{tpu_custom_call.1} parent=16 // pred_check
        _
      $region125: #{tpu_custom_call.1} parent=16 // pred_check_branch
        %255 = sbr.rel (%p252) target = $region127
      $region126: #{tpu_custom_call.1} parent=16 // pred_region
        %s270 = sand.u32 1, 7
        %p271 = scmp.eq.s32.totalorder %s270, 0
        %p272 = pneg %p271
        // Predicated region
        $region139: #{tpu_custom_call.1} parent=126 // pred_check
          _
        $region140: #{tpu_custom_call.1} parent=126 // pred_check_branch
          %274 = sbr.rel (%p271) target = $region142
        $region141: #{tpu_custom_call.1} parent=126 // pred_region
          %s275 = sand.u32 1, 7
          %s276 = ssub.s32 1, %s275
          %s277 = scalar_lea.vmem %s7, %s276
          %s278 = ssub.s32 1, %s275
          %s279 = scalar_lea.vmem [#allocation7], %s278
          %s280 = sshllo.u32 0, %s275
          loop: start=0, step=1, limit=1
          $region143: #{tpu_custom_call.1} parent=141 // loop_pre_header
            _
          $region144: #{tpu_custom_call.1} parent=141 // loop_header
            %s282 = sphi 0, %s286
            %p283 = scmp.ge.s32.totalorder %s282, 1
            %s287 = sphi %s277, %s277
            %s288 = sphi %s279, %s279
          $region145: #{tpu_custom_call.1} parent=141 // loop_header_branch
            %285 = sbr.rel (%p283) target = $region149
          $region146: #{tpu_custom_call.1} parent=141 // loop_body
            %v289 = vld [vmem:[%s287] sm:%s280]
            %290 = vst [vmem:[%s288] sm:%s280] %v289
          $region147: #{tpu_custom_call.1} parent=141 // loop_footer
            %s286 = sadd.s32 1, %s282
          $region148: #{tpu_custom_call.1} parent=141 // loop_footer_branch
            %281 = sbr.rel target = $region144
          $region149: #{tpu_custom_call.1} parent=141 // loop_exit
            _
        $region142: #{tpu_custom_call.1} parent=126 // pred_fallthru
          _
      $region127: #{tpu_custom_call.1} parent=16 // pred_fallthru
        _
      // Predicated region
      $region128: #{tpu_custom_call.1} parent=16 // pred_check
        %p256 = pneg %p252
      $region129: #{tpu_custom_call.1} parent=16 // pred_check_branch
        %258 = sbr.rel (%p256) target = $region131
      $region130: #{tpu_custom_call.1} parent=16 // pred_region
        %s259 = sshllo.u32 0, 1
        loop: start=0, step=1, limit=1
        $region132: #{tpu_custom_call.1} parent=130 // loop_pre_header
          _
        $region133: #{tpu_custom_call.1} parent=130 // loop_header
          %s261 = sphi 0, %s265
          %p262 = scmp.ge.s32.totalorder %s261, 1
          %s266 = sphi %s7, %s7
          %s267 = sphi [#allocation7], [#allocation7]
        $region134: #{tpu_custom_call.1} parent=130 // loop_header_branch
          %264 = sbr.rel (%p262) target = $region138
        $region135: #{tpu_custom_call.1} parent=130 // loop_body
          %v268 = vld [vmem:[%s266] sm:%s259]
          %269 = vst [vmem:[%s267] sm:%s259] %v268
        $region136: #{tpu_custom_call.1} parent=130 // loop_footer
          %s265 = sadd.s32 1, %s261
        $region137: #{tpu_custom_call.1} parent=130 // loop_footer_branch
          %260 = sbr.rel target = $region133
        $region138: #{tpu_custom_call.1} parent=130 // loop_exit
          _
      $region131: #{tpu_custom_call.1} parent=16 // pred_fallthru
        _
      // Predicated region
      $region150: #{tpu_custom_call.1} parent=16 // pred_check
        _
      $region151: #{tpu_custom_call.1} parent=16 // pred_check_branch
        %293 = sbr.rel (0) target = $region153
      $region152: #{tpu_custom_call.1} parent=16 // pred_region
        %294 = vsyncadd %s250, 16
      $region153: #{tpu_custom_call.1} parent=16 // pred_fallthru
        _
      %295 = vst [vmem:[#allocation8] sm:$0xff] 0.0
      %296 = vst [vmem:[#allocation9] sm:$0xff] 0.0
      %v297 = vld [vmem:[%s1] sm:$0xff]
      %298 = vst [vmem:[#allocation10] sm:$0xff] %v297
      %s299 = smul.u32 8, 2
      %s300 = smul.u32 %s299, 5
      %s301 = sshll.u32 %s300, 4
      %302 = dma.done [#allocation13], %s301
      %s303 = smul.u32 8, 16
      %s304 = smul.u32 %s303, 5
      %s305 = sshll.u32 %s304, 4
      %306 = dma.done %s47, %s305
      %s307 = smul.u32 1, 5
      %s308 = sshll.u32 %s307, 4
      %309 = dma.done %s59, %s308
      %s310 = smul.u32 128, 1
      %s311 = sshll.u32 %s310, 4
      %312 = dma.done %s104, %s311
    $region17: #{tpu_custom_call.1} parent=1 // pred_fallthru
      _
    %v313 = vld [vmem:[#allocation14] sm:$0xff]
    %v314 = vld [vmem:[#allocation14 + $0x8] sm:$0xff]
    %v315 = vld [vmem:[#allocation14 + $0x10] sm:$0xff]
    %v316 = vld [vmem:[#allocation14 + $0x18] sm:$0xff]
    %v317 = vld [vmem:[#allocation14 + $0x20] sm:$0xff]
    %v318 = vld [vmem:[#allocation14 + $0x28] sm:$0xff]
    %v319 = vld [vmem:[#allocation14 + $0x30] sm:$0xff]
    %v320 = vld [vmem:[#allocation14 + $0x38] sm:$0xff]
    %v321 = vld [vmem:[#allocation2] sm:$0xff]
    %v322 = vld [vmem:[#allocation2 + $0x8] sm:$0xff]
    %v323 = vld [vmem:[#allocation2 + $0x10] sm:$0xff]
    %v324 = vld [vmem:[#allocation2 + $0x18] sm:$0xff]
    %v325 = vld [vmem:[#allocation2 + $0x20] sm:$0xff]
    %v326 = vld [vmem:[#allocation2 + $0x28] sm:$0xff]
    %v327 = vld [vmem:[#allocation2 + $0x30] sm:$0xff]
    %v328 = vld [vmem:[#allocation2 + $0x38] sm:$0xff]
    %v329 = vld [vmem:[#allocation2 + $0x40] sm:$0xff]
    %v330 = vld [vmem:[#allocation2 + $0x48] sm:$0xff]
    %v331 = vld [vmem:[#allocation4] sm:$0x1f]
    %v333 = vlaneseq
    %v334 = vshrl.u32 %v333, 7
    %v335 = vsub.s32 0, %v334
    %v336 = vrot.slane %v331, %v335
    %v337 = vlaneseq
    %v338 = vshrl.u32 %v337, 7
    %v339 = vsub.s32 1, %v338
    %v340 = vrot.slane %v331, %v339
    %v341 = vlaneseq
    %v342 = vshrl.u32 %v341, 7
    %v343 = vsub.s32 2, %v342
    %v344 = vrot.slane %v331, %v343
    %v345 = vlaneseq
    %v346 = vshrl.u32 %v345, 7
    %v347 = vsub.s32 3, %v346
    %v348 = vrot.slane %v331, %v347
    %v349 = vlaneseq
    %v350 = vshrl.u32 %v349, 7
    %v351 = vsub.s32 4, %v350
    %v352 = vrot.slane %v331, %v351
    %vm358 = vcmask 130048
    %v360 = vsel %vm358, %v313, 0
    %v363 = vsel %vm358, %v314, 0
    %v366 = vsel %vm358, %v315, 0
    %v369 = vsel %vm358, %v316, 0
    %v372 = vsel %vm358, %v317, 0
    %v375 = vsel %vm358, %v318, 0
    %v378 = vsel %vm358, %v319, 0
    %v381 = vsel %vm358, %v320, 0
    %383 = vmatprep.subr.mxu0 %v322
    %384 = vmatpush1.msra.mxu0 %v321
    %385 = vmatprep.subr.mxu0 %v327
    %386 = vmatpush1.msra.mxu0 %v326
    %387 = vmatprep.subr.mxu0 0.0
    %388 = vmatpush1.msra.mxu0 0.0
    %389 = vmatprep.subr.mxu0 0.0
    %390 = vmatpush1.msra.mxu0 0.0
    %391 = vmatprep.subr.mxu0 0.0
    %392 = vmatpush1.msra.mxu0 0.0
    %393 = vmatprep.subr.mxu0 0.0
    %394 = vmatpush1.msra.mxu0 0.0
    %395 = vmatprep.subr.mxu0 0.0
    %396 = vmatpush1.msra.mxu0 0.0
    %397 = vmatprep.subr.mxu0 0.0
    %398 = vmatpush1.msra.mxu0 0.0
    %399 = vmatprep.subr.mxu0 0.0
    %400 = vmatpush1.msra.mxu0 0.0
    %401 = vmatprep.subr.mxu0 0.0
    %402 = vmatpush1.msra.mxu0 0.0
    %403 = vmatprep.subr.mxu0 0.0
    %404 = vmatpush1.msra.mxu0 0.0
    %405 = vmatprep.subr.mxu0 0.0
    %406 = vmatpush1.msra.mxu0 0.0
    %407 = vmatprep.subr.mxu0 0.0
    %408 = vmatpush1.msra.mxu0 0.0
    %409 = vmatprep.subr.mxu0 0.0
    %410 = vmatpush1.msra.mxu0 0.0
    %411 = vmatprep.subr.mxu0 0.0
    %412 = vmatpush1.msra.mxu0 0.0
    %413 = vmatprep.subr.mxu0 0.0
    %414 = vmatpush1.msra.mxu0 0.0
    %415 = vmatprep.subr.mxu0 0.0
    %416 = vmatpush1.msra.mxu0 0.0
    %417 = vmatprep.subr.mxu0 0.0
    %418 = vmatpush1.msra.mxu0 0.0
    %419 = vmatprep.subr.mxu0 0.0
    %420 = vmatpush1.msra.mxu0 0.0
    %421 = vmatprep.subr.mxu0 0.0
    %422 = vmatpush1.msra.mxu0 0.0
    %423 = vmatprep.subr.mxu0 0.0
    %424 = vmatpush1.msra.mxu0 0.0
    %425 = vmatprep.subr.mxu0 0.0
    %426 = vmatpush1.msra.mxu0 0.0
    %427 = vmatprep.subr.mxu0 0.0
    %428 = vmatpush1.msra.mxu0 0.0
    %429 = vmatprep.subr.mxu0 0.0
    %430 = vmatpush1.msra.mxu0 0.0
    %431 = vmatprep.subr.mxu0 0.0
    %432 = vmatpush1.msra.mxu0 0.0
    %433 = vmatprep.subr.mxu0 0.0
    %434 = vmatpush1.msra.mxu0 0.0
    %435 = vmatprep.subr.mxu0 0.0
    %436 = vmatpush1.msra.mxu0 0.0
    %437 = vmatprep.subr.mxu0 0.0
    %438 = vmatpush1.msra.mxu0 0.0
    %439 = vmatprep.subr.mxu0 0.0
    %440 = vmatpush1.msra.mxu0 0.0
    %441 = vmatprep.subr.mxu0 0.0
    %442 = vmatpush1.msra.mxu0 0.0
    %443 = vmatprep.subr.mxu0 0.0
    %444 = vmatpush1.msra.mxu0 0.0
    %445 = vmatprep.subr.mxu0 0.0
    %446 = vmatpush1.msra.mxu0 0.0
    %447 = vmatprep.mubr.f32.mxu0 0.0
    %448 = vmatmul.mubr.f32.gmra.mrb[0].mxu0 %v360
    %v449 = vpop.f32.mrb[0].mxu0
    %v450 = vadd.f32 %v336, %v449
    %v451 = vpop.f32.mrb[0].mxu0
    %v452 = vadd.f32 %v340, %v451
    %453 = vmatprep.mubr.f32.mxu0 0.0
    %454 = vmatmul.mubr.f32.gmra.mrb[0].mxu0 %v363
    %v455 = vpop.f32.mrb[0].mxu0
    %v456 = vadd.f32 %v336, %v455
    %v457 = vpop.f32.mrb[0].mxu0
    %v458 = vadd.f32 %v340, %v457
    %459 = vmatprep.mubr.f32.mxu0 0.0
    %460 = vmatmul.mubr.f32.gmra.mrb[0].mxu0 %v366
    %v461 = vpop.f32.mrb[0].mxu0
    %v462 = vadd.f32 %v336, %v461
    %v463 = vpop.f32.mrb[0].mxu0
    %v464 = vadd.f32 %v340, %v463
    %465 = vmatprep.mubr.f32.mxu0 0.0
    %466 = vmatmul.mubr.f32.gmra.mrb[0].mxu0 %v369
    %v467 = vpop.f32.mrb[0].mxu0
    %v468 = vadd.f32 %v336, %v467
    %v469 = vpop.f32.mrb[0].mxu0
    %v470 = vadd.f32 %v340, %v469
    %471 = vmatprep.mubr.f32.mxu0 0.0
    %472 = vmatmul.mubr.f32.gmra.mrb[0].mxu0 %v372
    %v473 = vpop.f32.mrb[0].mxu0
    %v474 = vadd.f32 %v336, %v473
    %v475 = vpop.f32.mrb[0].mxu0
    %v476 = vadd.f32 %v340, %v475
    %477 = vmatprep.mubr.f32.mxu0 0.0
    %478 = vmatmul.mubr.f32.gmra.mrb[0].mxu0 %v375
    %v479 = vpop.f32.mrb[0].mxu0
    %v480 = vadd.f32 %v336, %v479
    %v481 = vpop.f32.mrb[0].mxu0
    %v482 = vadd.f32 %v340, %v481
    %483 = vmatprep.mubr.f32.mxu0 0.0
    %484 = vmatmul.mubr.f32.gmra.mrb[0].mxu0 %v378
    %v485 = vpop.f32.mrb[0].mxu0
    %v486 = vadd.f32 %v336, %v485
    %v487 = vpop.f32.mrb[0].mxu0
    %v488 = vadd.f32 %v340, %v487
    %489 = vmatprep.mubr.f32.mxu0 0.0
    %490 = vmatmul.mubr.f32.gmra.mrb[0].mxu0 %v381
    %v491 = vpop.f32.mrb[0].mxu0
    %v492 = vadd.f32 %v336, %v491
    %v493 = vpop.f32.mrb[0].mxu0
    %v494 = vadd.f32 %v340, %v493
    %495 = vdwg.mxu0
    %496 = vmatprep.subr.mxu0 %v324
    %497 = vmatpush1.msra.mxu0 %v323
    %498 = vmatprep.subr.mxu0 %v329
    %499 = vmatpush1.msra.mxu0 %v328
    %500 = vmatprep.subr.mxu0 0.0
    %501 = vmatpush1.msra.mxu0 0.0
    %502 = vmatprep.subr.mxu0 0.0
    %503 = vmatpush1.msra.mxu0 0.0
    %504 = vmatprep.subr.mxu0 0.0
    %505 = vmatpush1.msra.mxu0 0.0
    %506 = vmatprep.subr.mxu0 0.0
    %507 = vmatpush1.msra.mxu0 0.0
    %508 = vmatprep.subr.mxu0 0.0
    %509 = vmatpush1.msra.mxu0 0.0
    %510 = vmatprep.subr.mxu0 0.0
    %511 = vmatpush1.msra.mxu0 0.0
    %512 = vmatprep.subr.mxu0 0.0
    %513 = vmatpush1.msra.mxu0 0.0
    %514 = vmatprep.subr.mxu0 0.0
    %515 = vmatpush1.msra.mxu0 0.0
    %516 = vmatprep.subr.mxu0 0.0
    %517 = vmatpush1.msra.mxu0 0.0
    %518 = vmatprep.subr.mxu0 0.0
    %519 = vmatpush1.msra.mxu0 0.0
    %520 = vmatprep.subr.mxu0 0.0
    %521 = vmatpush1.msra.mxu0 0.0
    %522 = vmatprep.subr.mxu0 0.0
    %523 = vmatpush1.msra.mxu0 0.0
    %524 = vmatprep.subr.mxu0 0.0
    %525 = vmatpush1.msra.mxu0 0.0
    %526 = vmatprep.subr.mxu0 0.0
    %527 = vmatpush1.msra.mxu0 0.0
    %528 = vmatprep.subr.mxu0 0.0
    %529 = vmatpush1.msra.mxu0 0.0
    %530 = vmatprep.subr.mxu0 0.0
    %531 = vmatpush1.msra.mxu0 0.0
    %532 = vmatprep.subr.mxu0 0.0
    %533 = vmatpush1.msra.mxu0 0.0
    %534 = vmatprep.subr.mxu0 0.0
    %535 = vmatpush1.msra.mxu0 0.0
    %536 = vmatprep.subr.mxu0 0.0
    %537 = vmatpush1.msra.mxu0 0.0
    %538 = vmatprep.subr.mxu0 0.0
    %539 = vmatpush1.msra.mxu0 0.0
    %540 = vmatprep.subr.mxu0 0.0
    %541 = vmatpush1.msra.mxu0 0.0
    %542 = vmatprep.subr.mxu0 0.0
    %543 = vmatpush1.msra.mxu0 0.0
    %544 = vmatprep.subr.mxu0 0.0
    %545 = vmatpush1.msra.mxu0 0.0
    %546 = vmatprep.subr.mxu0 0.0
    %547 = vmatpush1.msra.mxu0 0.0
    %548 = vmatprep.subr.mxu0 0.0
    %549 = vmatpush1.msra.mxu0 0.0
    %550 = vmatprep.subr.mxu0 0.0
    %551 = vmatpush1.msra.mxu0 0.0
    %552 = vmatprep.subr.mxu0 0.0
    %553 = vmatpush1.msra.mxu0 0.0
    %554 = vmatprep.subr.mxu0 0.0
    %555 = vmatpush1.msra.mxu0 0.0
    %556 = vmatprep.subr.mxu0 0.0
    %557 = vmatpush1.msra.mxu0 0.0
    %558 = vmatprep.subr.mxu0 0.0
    %559 = vmatpush1.msra.mxu0 0.0
    %560 = vmatprep.mubr.f32.mxu0 0.0
    %561 = vmatmul.mubr.f32.gmra.mrb[0].mxu0 %v360
    %v562 = vpop.f32.mrb[0].mxu0
    %v563 = vadd.f32 %v344, %v562
    %v564 = vpop.f32.mrb[0].mxu0
    %v565 = vadd.f32 %v348, %v564
    %566 = vmatprep.mubr.f32.mxu0 0.0
    %567 = vmatmul.mubr.f32.gmra.mrb[0].mxu0 %v363
    %v568 = vpop.f32.mrb[0].mxu0
    %v569 = vadd.f32 %v344, %v568
    %v570 = vpop.f32.mrb[0].mxu0
    %v571 = vadd.f32 %v348, %v570
    %572 = vmatprep.mubr.f32.mxu0 0.0
    %573 = vmatmul.mubr.f32.gmra.mrb[0].mxu0 %v366
    %v574 = vpop.f32.mrb[0].mxu0
    %v575 = vadd.f32 %v344, %v574
    %v576 = vpop.f32.mrb[0].mxu0
    %v577 = vadd.f32 %v348, %v576
    %578 = vmatprep.mubr.f32.mxu0 0.0
    %579 = vmatmul.mubr.f32.gmra.mrb[0].mxu0 %v369
    %v580 = vpop.f32.mrb[0].mxu0
    %v581 = vadd.f32 %v344, %v580
    %v582 = vpop.f32.mrb[0].mxu0
    %v583 = vadd.f32 %v348, %v582
    %584 = vmatprep.mubr.f32.mxu0 0.0
    %585 = vmatmul.mubr.f32.gmra.mrb[0].mxu0 %v372
    %v586 = vpop.f32.mrb[0].mxu0
    %v587 = vadd.f32 %v344, %v586
    %v588 = vpop.f32.mrb[0].mxu0
    %v589 = vadd.f32 %v348, %v588
    %590 = vmatprep.mubr.f32.mxu0 0.0
    %591 = vmatmul.mubr.f32.gmra.mrb[0].mxu0 %v375
    %v592 = vpop.f32.mrb[0].mxu0
    %v593 = vadd.f32 %v344, %v592
    %v594 = vpop.f32.mrb[0].mxu0
    %v595 = vadd.f32 %v348, %v594
    %596 = vmatprep.mubr.f32.mxu0 0.0
    %597 = vmatmul.mubr.f32.gmra.mrb[0].mxu0 %v378
    %v598 = vpop.f32.mrb[0].mxu0
    %v599 = vadd.f32 %v344, %v598
    %v600 = vpop.f32.mrb[0].mxu0
    %v601 = vadd.f32 %v348, %v600
    %602 = vmatprep.mubr.f32.mxu0 0.0
    %603 = vmatmul.mubr.f32.gmra.mrb[0].mxu0 %v381
    %v604 = vpop.f32.mrb[0].mxu0
    %v605 = vadd.f32 %v344, %v604
    %v606 = vpop.f32.mrb[0].mxu0
    %v607 = vadd.f32 %v348, %v606
    %608 = vdwg.mxu0
    %609 = vmatprep.subr.mxu0 0.0
    %610 = vmatpush1.msra.mxu0 %v325
    %611 = vmatprep.subr.mxu0 0.0
    %612 = vmatpush1.msra.mxu0 %v330
    %613 = vmatprep.subr.mxu0 0.0
    %614 = vmatpush1.msra.mxu0 0.0
    %615 = vmatprep.subr.mxu0 0.0
    %616 = vmatpush1.msra.mxu0 0.0
    %617 = vmatprep.subr.mxu0 0.0
    %618 = vmatpush1.msra.mxu0 0.0
    %619 = vmatprep.subr.mxu0 0.0
    %620 = vmatpush1.msra.mxu0 0.0
    %621 = vmatprep.subr.mxu0 0.0
    %622 = vmatpush1.msra.mxu0 0.0
    %623 = vmatprep.subr.mxu0 0.0
    %624 = vmatpush1.msra.mxu0 0.0
    %625 = vmatprep.subr.mxu0 0.0
    %626 = vmatpush1.msra.mxu0 0.0
    %627 = vmatprep.subr.mxu0 0.0
    %628 = vmatpush1.msra.mxu0 0.0
    %629 = vmatprep.subr.mxu0 0.0
    %630 = vmatpush1.msra.mxu0 0.0
    %631 = vmatprep.subr.mxu0 0.0
    %632 = vmatpush1.msra.mxu0 0.0
    %633 = vmatprep.subr.mxu0 0.0
    %634 = vmatpush1.msra.mxu0 0.0
    %635 = vmatprep.subr.mxu0 0.0
    %636 = vmatpush1.msra.mxu0 0.0
    %637 = vmatprep.subr.mxu0 0.0
    %638 = vmatpush1.msra.mxu0 0.0
    %639 = vmatprep.subr.mxu0 0.0
    %640 = vmatpush1.msra.mxu0 0.0
    %641 = vmatprep.subr.mxu0 0.0
    %642 = vmatpush1.msra.mxu0 0.0
    %643 = vmatprep.subr.mxu0 0.0
    %644 = vmatpush1.msra.mxu0 0.0
    %645 = vmatprep.subr.mxu0 0.0
    %646 = vmatpush1.msra.mxu0 0.0
    %647 = vmatprep.subr.mxu0 0.0
    %648 = vmatpush1.msra.mxu0 0.0
    %649 = vmatprep.subr.mxu0 0.0
    %650 = vmatpush1.msra.mxu0 0.0
    %651 = vmatprep.subr.mxu0 0.0
    %652 = vmatpush1.msra.mxu0 0.0
    %653 = vmatprep.subr.mxu0 0.0
    %654 = vmatpush1.msra.mxu0 0.0
    %655 = vmatprep.subr.mxu0 0.0
    %656 = vmatpush1.msra.mxu0 0.0
    %657 = vmatprep.subr.mxu0 0.0
    %658 = vmatpush1.msra.mxu0 0.0
    %659 = vmatprep.subr.mxu0 0.0
    %660 = vmatpush1.msra.mxu0 0.0
    %661 = vmatprep.subr.mxu0 0.0
    %662 = vmatpush1.msra.mxu0 0.0
    %663 = vmatprep.subr.mxu0 0.0
    %664 = vmatpush1.msra.mxu0 0.0
    %665 = vmatprep.subr.mxu0 0.0
    %666 = vmatpush1.msra.mxu0 0.0
    %667 = vmatprep.subr.mxu0 0.0
    %668 = vmatpush1.msra.mxu0 0.0
    %669 = vmatprep.subr.mxu0 0.0
    %670 = vmatpush1.msra.mxu0 0.0
    %671 = vmatprep.subr.mxu0 0.0
    %672 = vmatpush1.msra.mxu0 0.0
    %673 = vmatprep.mubr.f32.mxu0 0.0
    %674 = vmatmul.mubr.f32.gmra.mrb[0].mxu0 %v360
    %v675 = vpop.f32.mrb[0].mxu0
    %v676 = vadd.f32 %v352, %v675
    %v677 = vpop.f32.mrb[0].mxu0
    %678 = vmatprep.mubr.f32.mxu0 0.0
    %679 = vmatmul.mubr.f32.gmra.mrb[0].mxu0 %v363
    %v680 = vpop.f32.mrb[0].mxu0
    %v681 = vadd.f32 %v352, %v680
    %v682 = vpop.f32.mrb[0].mxu0
    %683 = vmatprep.mubr.f32.mxu0 0.0
    %684 = vmatmul.mubr.f32.gmra.mrb[0].mxu0 %v366
    %v685 = vpop.f32.mrb[0].mxu0
    %v686 = vadd.f32 %v352, %v685
    %v687 = vpop.f32.mrb[0].mxu0
    %688 = vmatprep.mubr.f32.mxu0 0.0
    %689 = vmatmul.mubr.f32.gmra.mrb[0].mxu0 %v369
    %v690 = vpop.f32.mrb[0].mxu0
    %v691 = vadd.f32 %v352, %v690
    %v692 = vpop.f32.mrb[0].mxu0
    %693 = vmatprep.mubr.f32.mxu0 0.0
    %694 = vmatmul.mubr.f32.gmra.mrb[0].mxu0 %v372
    %v695 = vpop.f32.mrb[0].mxu0
    %v696 = vadd.f32 %v352, %v695
    %v697 = vpop.f32.mrb[0].mxu0
    %698 = vmatprep.mubr.f32.mxu0 0.0
    %699 = vmatmul.mubr.f32.gmra.mrb[0].mxu0 %v375
    %v700 = vpop.f32.mrb[0].mxu0
    %v701 = vadd.f32 %v352, %v700
    %v702 = vpop.f32.mrb[0].mxu0
    %703 = vmatprep.mubr.f32.mxu0 0.0
    %704 = vmatmul.mubr.f32.gmra.mrb[0].mxu0 %v378
    %v705 = vpop.f32.mrb[0].mxu0
    %v706 = vadd.f32 %v352, %v705
    %v707 = vpop.f32.mrb[0].mxu0
    %708 = vmatprep.mubr.f32.mxu0 0.0
    %709 = vmatmul.mubr.f32.gmra.mrb[0].mxu0 %v381
    %v710 = vpop.f32.mrb[0].mxu0
    %v711 = vadd.f32 %v352, %v710
    %v712 = vpop.f32.mrb[0].mxu0
    %713 = vdwg.mxu0
    %714 = vst [vmem:[#allocation11] sm:$0xff] %v450
    %715 = vst [vmem:[#allocation11 + $0x8] sm:$0xff] %v452
    %716 = vst [vmem:[#allocation11 + $0x10] sm:$0xff] %v563
    %717 = vst [vmem:[#allocation11 + $0x18] sm:$0xff] %v565
    %718 = vst [vmem:[#allocation11 + $0x20] sm:$0xff] %v676
    %719 = vst [vmem:[#allocation11 + $0x28] sm:$0xff] %v456
    %720 = vst [vmem:[#allocation11 + $0x30] sm:$0xff] %v458
    %721 = vst [vmem:[#allocation11 + $0x38] sm:$0xff] %v569
    %722 = vst [vmem:[#allocation11 + $0x40] sm:$0xff] %v571
    %723 = vst [vmem:[#allocation11 + $0x48] sm:$0xff] %v681
    %724 = vst [vmem:[#allocation11 + $0x50] sm:$0xff] %v462
    %725 = vst [vmem:[#allocation11 + $0x58] sm:$0xff] %v464
    %726 = vst [vmem:[#allocation11 + $0x60] sm:$0xff] %v575
    %727 = vst [vmem:[#allocation11 + $0x68] sm:$0xff] %v577
    %728 = vst [vmem:[#allocation11 + $0x70] sm:$0xff] %v686
    %729 = vst [vmem:[#allocation11 + $0x78] sm:$0xff] %v468
    %730 = vst [vmem:[#allocation11 + $0x80] sm:$0xff] %v470
    %731 = vst [vmem:[#allocation11 + $0x88] sm:$0xff] %v581
    %732 = vst [vmem:[#allocation11 + $0x90] sm:$0xff] %v583
    %733 = vst [vmem:[#allocation11 + $0x98] sm:$0xff] %v691
    %734 = vst [vmem:[#allocation11 + $0xa0] sm:$0xff] %v474
    %735 = vst [vmem:[#allocation11 + $0xa8] sm:$0xff] %v476
    %736 = vst [vmem:[#allocation11 + $0xb0] sm:$0xff] %v587
    %737 = vst [vmem:[#allocation11 + $0xb8] sm:$0xff] %v589
    %738 = vst [vmem:[#allocation11 + $0xc0] sm:$0xff] %v696
    %739 = vst [vmem:[#allocation11 + $0xc8] sm:$0xff] %v480
    %740 = vst [vmem:[#allocation11 + $0xd0] sm:$0xff] %v482
    %741 = vst [vmem:[#allocation11 + $0xd8] sm:$0xff] %v593
    %742 = vst [vmem:[#allocation11 + $0xe0] sm:$0xff] %v595
    %743 = vst [vmem:[#allocation11 + $0xe8] sm:$0xff] %v701
    %744 = vst [vmem:[#allocation11 + $0xf0] sm:$0xff] %v486
    %745 = vst [vmem:[#allocation11 + $0xf8] sm:$0xff] %v488
    %746 = vst [vmem:[#allocation11 + $0x100] sm:$0xff] %v599
    %747 = vst [vmem:[#allocation11 + $0x108] sm:$0xff] %v601
    %748 = vst [vmem:[#allocation11 + $0x110] sm:$0xff] %v706
    %749 = vst [vmem:[#allocation11 + $0x118] sm:$0xff] %v492
    %750 = vst [vmem:[#allocation11 + $0x120] sm:$0xff] %v494
    %751 = vst [vmem:[#allocation11 + $0x128] sm:$0xff] %v605
    %752 = vst [vmem:[#allocation11 + $0x130] sm:$0xff] %v607
    %753 = vst [vmem:[#allocation11 + $0x138] sm:$0xff] %v711
    %v754 = vld [vmem:[#allocation8] sm:$0xff]
    %v755 = vld [vmem:[#allocation9] sm:$0xff]
    %v756 = vld [vmem:[#allocation10] sm:$0xff]
    %v757 = vld [vmem:[#allocation11] sm:$0xff]
    %v758 = vld [vmem:[#allocation11 + $0x8] sm:$0xff]
    %v759 = vld [vmem:[#allocation11 + $0x10] sm:$0xff]
    %v760 = vld [vmem:[#allocation11 + $0x18] sm:$0xff]
    %v761 = vld [vmem:[#allocation11 + $0x20] sm:$0xff]
    %v762 = vld [vmem:[#allocation3] sm:$0xff]
    %v763 = vld [vmem:[#allocation3 + $0x8] sm:$0xff]
    %v764 = vld [vmem:[#allocation3 + $0x10] sm:$0xff]
    %v765 = vld [vmem:[#allocation3 + $0x18] sm:$0xff]
    %v766 = vld [vmem:[#allocation3 + $0x20] sm:$0xff]
    %v767 = vld [vmem:[#allocation3 + $0x28] sm:$0xff]
    %v768 = vld [vmem:[#allocation3 + $0x30] sm:$0xff]
    %v769 = vld [vmem:[#allocation3 + $0x38] sm:$0xff]
    %v770 = vld [vmem:[#allocation3 + $0x40] sm:$0xff]
    %v771 = vld [vmem:[#allocation3 + $0x48] sm:$0xff]
    %v772 = vld [vmem:[#allocation3 + $0x50] sm:$0xff]
    %v773 = vld [vmem:[#allocation3 + $0x58] sm:$0xff]
    %v774 = vld [vmem:[#allocation3 + $0x60] sm:$0xff]
    %v775 = vld [vmem:[#allocation3 + $0x68] sm:$0xff]
    %v776 = vld [vmem:[#allocation3 + $0x70] sm:$0xff]
    %v777 = vld [vmem:[#allocation3 + $0x78] sm:$0xff]
    %v778 = vld [vmem:[#allocation3 + $0x80] sm:$0xff]
    %v779 = vld [vmem:[#allocation3 + $0x88] sm:$0xff]
    %v780 = vld [vmem:[#allocation3 + $0x90] sm:$0xff]
    %v781 = vld [vmem:[#allocation3 + $0x98] sm:$0xff]
    %v782 = vld [vmem:[#allocation3 + $0xa0] sm:$0xff]
    %v783 = vld [vmem:[#allocation3 + $0xa8] sm:$0xff]
    %v784 = vld [vmem:[#allocation3 + $0xb0] sm:$0xff]
    %v785 = vld [vmem:[#allocation3 + $0xb8] sm:$0xff]
    %v786 = vld [vmem:[#allocation3 + $0xc0] sm:$0xff]
    %v787 = vld [vmem:[#allocation3 + $0xc8] sm:$0xff]
    %v788 = vld [vmem:[#allocation3 + $0xd0] sm:$0xff]
    %v789 = vld [vmem:[#allocation3 + $0xd8] sm:$0xff]
    %v790 = vld [vmem:[#allocation3 + $0xe0] sm:$0xff]
    %v791 = vld [vmem:[#allocation3 + $0xe8] sm:$0xff]
    %v792 = vld [vmem:[#allocation3 + $0xf0] sm:$0xff]
    %v793 = vld [vmem:[#allocation3 + $0xf8] sm:$0xff]
    %v794 = vld [vmem:[#allocation3 + $0x100] sm:$0xff]
    %v795 = vld [vmem:[#allocation3 + $0x108] sm:$0xff]
    %v796 = vld [vmem:[#allocation3 + $0x110] sm:$0xff]
    %v797 = vld [vmem:[#allocation3 + $0x118] sm:$0xff]
    %v798 = vld [vmem:[#allocation3 + $0x120] sm:$0xff]
    %v799 = vld [vmem:[#allocation3 + $0x128] sm:$0xff]
    %v800 = vld [vmem:[#allocation3 + $0x130] sm:$0xff]
    %v801 = vld [vmem:[#allocation3 + $0x138] sm:$0xff]
    %v802 = vld [vmem:[#allocation3 + $0x140] sm:$0xff]
    %v803 = vld [vmem:[#allocation3 + $0x148] sm:$0xff]
    %v804 = vld [vmem:[#allocation3 + $0x150] sm:$0xff]
    %v805 = vld [vmem:[#allocation3 + $0x158] sm:$0xff]
    %v806 = vld [vmem:[#allocation3 + $0x160] sm:$0xff]
    %v807 = vld [vmem:[#allocation3 + $0x168] sm:$0xff]
    %v808 = vld [vmem:[#allocation3 + $0x170] sm:$0xff]
    %v809 = vld [vmem:[#allocation3 + $0x178] sm:$0xff]
    %v810 = vld [vmem:[#allocation3 + $0x180] sm:$0xff]
    %v811 = vld [vmem:[#allocation3 + $0x188] sm:$0xff]
    %v812 = vld [vmem:[#allocation3 + $0x190] sm:$0xff]
    %v813 = vld [vmem:[#allocation3 + $0x198] sm:$0xff]
    %v814 = vld [vmem:[#allocation3 + $0x1a0] sm:$0xff]
    %v815 = vld [vmem:[#allocation3 + $0x1a8] sm:$0xff]
    %v816 = vld [vmem:[#allocation3 + $0x1b0] sm:$0xff]
    %v817 = vld [vmem:[#allocation3 + $0x1b8] sm:$0xff]
    %v818 = vld [vmem:[#allocation3 + $0x1c0] sm:$0xff]
    %v819 = vld [vmem:[#allocation3 + $0x1c8] sm:$0xff]
    %v820 = vld [vmem:[#allocation3 + $0x1d0] sm:$0xff]
    %v821 = vld [vmem:[#allocation3 + $0x1d8] sm:$0xff]
    %v822 = vld [vmem:[#allocation3 + $0x1e0] sm:$0xff]
    %v823 = vld [vmem:[#allocation3 + $0x1e8] sm:$0xff]
    %v824 = vld [vmem:[#allocation3 + $0x1f0] sm:$0xff]
    %v825 = vld [vmem:[#allocation3 + $0x1f8] sm:$0xff]
    %v826 = vld [vmem:[#allocation3 + $0x200] sm:$0xff]
    %v827 = vld [vmem:[#allocation3 + $0x208] sm:$0xff]
    %v828 = vld [vmem:[#allocation3 + $0x210] sm:$0xff]
    %v829 = vld [vmem:[#allocation3 + $0x218] sm:$0xff]
    %v830 = vld [vmem:[#allocation3 + $0x220] sm:$0xff]
    %v831 = vld [vmem:[#allocation3 + $0x228] sm:$0xff]
    %v832 = vld [vmem:[#allocation3 + $0x230] sm:$0xff]
    %v833 = vld [vmem:[#allocation3 + $0x238] sm:$0xff]
    %v834 = vld [vmem:[#allocation3 + $0x240] sm:$0xff]
    %v835 = vld [vmem:[#allocation3 + $0x248] sm:$0xff]
    %v836 = vld [vmem:[#allocation3 + $0x250] sm:$0xff]
    %v837 = vld [vmem:[#allocation3 + $0x258] sm:$0xff]
    %v838 = vld [vmem:[#allocation3 + $0x260] sm:$0xff]
    %v839 = vld [vmem:[#allocation3 + $0x268] sm:$0xff]
    %v840 = vld [vmem:[#allocation3 + $0x270] sm:$0xff]
    %v841 = vld [vmem:[#allocation3 + $0x278] sm:$0xff]
    %842 = vmatprep.subr.mxu0 %v763
    %843 = vmatpush1.msra.mxu0 %v762
    %844 = vmatprep.subr.mxu0 %v768
    %845 = vmatpush1.msra.mxu0 %v767
    %846 = vmatprep.subr.mxu0 %v773
    %847 = vmatpush1.msra.mxu0 %v772
    %848 = vmatprep.subr.mxu0 %v778
    %849 = vmatpush1.msra.mxu0 %v777
    %850 = vmatprep.subr.mxu0 %v783
    %851 = vmatpush1.msra.mxu0 %v782
    %852 = vmatprep.subr.mxu0 %v788
    %853 = vmatpush1.msra.mxu0 %v787
    %854 = vmatprep.subr.mxu0 %v793
    %855 = vmatpush1.msra.mxu0 %v792
    %856 = vmatprep.subr.mxu0 %v798
    %857 = vmatpush1.msra.mxu0 %v797
    %858 = vmatprep.subr.mxu0 %v803
    %859 = vmatpush1.msra.mxu0 %v802
    %860 = vmatprep.subr.mxu0 %v808
    %861 = vmatpush1.msra.mxu0 %v807
    %862 = vmatprep.subr.mxu0 %v813
    %863 = vmatpush1.msra.mxu0 %v812
    %864 = vmatprep.subr.mxu0 %v818
    %865 = vmatpush1.msra.mxu0 %v817
    %866 = vmatprep.subr.mxu0 %v823
    %867 = vmatpush1.msra.mxu0 %v822
    %868 = vmatprep.subr.mxu0 %v828
    %869 = vmatpush1.msra.mxu0 %v827
    %870 = vmatprep.subr.mxu0 %v833
    %871 = vmatpush1.msra.mxu0 %v832
    %872 = vmatprep.subr.mxu0 %v838
    %873 = vmatpush1.msra.mxu0 %v837
    %874 = vmatprep.subr.mxu0 0.0
    %875 = vmatpush1.msra.mxu0 0.0
    %876 = vmatprep.subr.mxu0 0.0
    %877 = vmatpush1.msra.mxu0 0.0
    %878 = vmatprep.subr.mxu0 0.0
    %879 = vmatpush1.msra.mxu0 0.0
    %880 = vmatprep.subr.mxu0 0.0
    %881 = vmatpush1.msra.mxu0 0.0
    %882 = vmatprep.subr.mxu0 0.0
    %883 = vmatpush1.msra.mxu0 0.0
    %884 = vmatprep.subr.mxu0 0.0
    %885 = vmatpush1.msra.mxu0 0.0
    %886 = vmatprep.subr.mxu0 0.0
    %887 = vmatpush1.msra.mxu0 0.0
    %888 = vmatprep.subr.mxu0 0.0
    %889 = vmatpush1.msra.mxu0 0.0
    %890 = vmatprep.subr.mxu0 0.0
    %891 = vmatpush1.msra.mxu0 0.0
    %892 = vmatprep.subr.mxu0 0.0
    %893 = vmatpush1.msra.mxu0 0.0
    %894 = vmatprep.subr.mxu0 0.0
    %895 = vmatpush1.msra.mxu0 0.0
    %896 = vmatprep.subr.mxu0 0.0
    %897 = vmatpush1.msra.mxu0 0.0
    %898 = vmatprep.subr.mxu0 0.0
    %899 = vmatpush1.msra.mxu0 0.0
    %900 = vmatprep.subr.mxu0 0.0
    %901 = vmatpush1.msra.mxu0 0.0
    %902 = vmatprep.subr.mxu0 0.0
    %903 = vmatpush1.msra.mxu0 0.0
    %904 = vmatprep.subr.mxu0 0.0
    %905 = vmatpush1.msra.mxu0 0.0
    %906 = vmatprep.mubr.f32.mxu0 0.0
    %907 = vmatmul.mubr.f32.gmra.mrb[0].mxu0 %v754
    %v908 = vpop.f32.mrb[0].mxu0
    %v909 = vadd.f32 0.0, %v908
    %v910 = vpop.f32.mrb[0].mxu0
    %v911 = vadd.f32 0.0, %v910
    %912 = vdwg.mxu0
    %913 = vmatprep.subr.mxu0 %v765
    %914 = vmatpush1.msra.mxu0 %v764
    %915 = vmatprep.subr.mxu0 %v770
    %916 = vmatpush1.msra.mxu0 %v769
    %917 = vmatprep.subr.mxu0 %v775
    %918 = vmatpush1.msra.mxu0 %v774
    %919 = vmatprep.subr.mxu0 %v780
    %920 = vmatpush1.msra.mxu0 %v779
    %921 = vmatprep.subr.mxu0 %v785
    %922 = vmatpush1.msra.mxu0 %v784
    %923 = vmatprep.subr.mxu0 %v790
    %924 = vmatpush1.msra.mxu0 %v789
    %925 = vmatprep.subr.mxu0 %v795
    %926 = vmatpush1.msra.mxu0 %v794
    %927 = vmatprep.subr.mxu0 %v800
    %928 = vmatpush1.msra.mxu0 %v799
    %929 = vmatprep.subr.mxu0 %v805
    %930 = vmatpush1.msra.mxu0 %v804
    %931 = vmatprep.subr.mxu0 %v810
    %932 = vmatpush1.msra.mxu0 %v809
    %933 = vmatprep.subr.mxu0 %v815
    %934 = vmatpush1.msra.mxu0 %v814
    %935 = vmatprep.subr.mxu0 %v820
    %936 = vmatpush1.msra.mxu0 %v819
    %937 = vmatprep.subr.mxu0 %v825
    %938 = vmatpush1.msra.mxu0 %v824
    %939 = vmatprep.subr.mxu0 %v830
    %940 = vmatpush1.msra.mxu0 %v829
    %941 = vmatprep.subr.mxu0 %v835
    %942 = vmatpush1.msra.mxu0 %v834
    %943 = vmatprep.subr.mxu0 %v840
    %944 = vmatpush1.msra.mxu0 %v839
    %945 = vmatprep.subr.mxu0 0.0
    %946 = vmatpush1.msra.mxu0 0.0
    %947 = vmatprep.subr.mxu0 0.0
    %948 = vmatpush1.msra.mxu0 0.0
    %949 = vmatprep.subr.mxu0 0.0
    %950 = vmatpush1.msra.mxu0 0.0
    %951 = vmatprep.subr.mxu0 0.0
    %952 = vmatpush1.msra.mxu0 0.0
    %953 = vmatprep.subr.mxu0 0.0
    %954 = vmatpush1.msra.mxu0 0.0
    %955 = vmatprep.subr.mxu0 0.0
    %956 = vmatpush1.msra.mxu0 0.0
    %957 = vmatprep.subr.mxu0 0.0
    %958 = vmatpush1.msra.mxu0 0.0
    %959 = vmatprep.subr.mxu0 0.0
    %960 = vmatpush1.msra.mxu0 0.0
    %961 = vmatprep.subr.mxu0 0.0
    %962 = vmatpush1.msra.mxu0 0.0
    %963 = vmatprep.subr.mxu0 0.0
    %964 = vmatpush1.msra.mxu0 0.0
    %965 = vmatprep.subr.mxu0 0.0
    %966 = vmatpush1.msra.mxu0 0.0
    %967 = vmatprep.subr.mxu0 0.0
    %968 = vmatpush1.msra.mxu0 0.0
    %969 = vmatprep.subr.mxu0 0.0
    %970 = vmatpush1.msra.mxu0 0.0
    %971 = vmatprep.subr.mxu0 0.0
    %972 = vmatpush1.msra.mxu0 0.0
    %973 = vmatprep.subr.mxu0 0.0
    %974 = vmatpush1.msra.mxu0 0.0
    %975 = vmatprep.subr.mxu0 0.0
    %976 = vmatpush1.msra.mxu0 0.0
    %977 = vmatprep.mubr.f32.mxu0 0.0
    %978 = vmatmul.mubr.f32.gmra.mrb[0].mxu0 %v754
    %v979 = vpop.f32.mrb[0].mxu0
    %v980 = vadd.f32 0.0, %v979
    %v981 = vpop.f32.mrb[0].mxu0
    %v982 = vadd.f32 0.0, %v981
    %983 = vdwg.mxu0
    %984 = vmatprep.subr.mxu0 0.0
    %985 = vmatpush1.msra.mxu0 %v766
    %986 = vmatprep.subr.mxu0 0.0
    %987 = vmatpush1.msra.mxu0 %v771
    %988 = vmatprep.subr.mxu0 0.0
    %989 = vmatpush1.msra.mxu0 %v776
    %990 = vmatprep.subr.mxu0 0.0
    %991 = vmatpush1.msra.mxu0 %v781
    %992 = vmatprep.subr.mxu0 0.0
    %993 = vmatpush1.msra.mxu0 %v786
    %994 = vmatprep.subr.mxu0 0.0
    %995 = vmatpush1.msra.mxu0 %v791
    %996 = vmatprep.subr.mxu0 0.0
    %997 = vmatpush1.msra.mxu0 %v796
    %998 = vmatprep.subr.mxu0 0.0
    %999 = vmatpush1.msra.mxu0 %v801
    %1000 = vmatprep.subr.mxu0 0.0
    %1001 = vmatpush1.msra.mxu0 %v806
    %1002 = vmatprep.subr.mxu0 0.0
    %1003 = vmatpush1.msra.mxu0 %v811
    %1004 = vmatprep.subr.mxu0 0.0
    %1005 = vmatpush1.msra.mxu0 %v816
    %1006 = vmatprep.subr.mxu0 0.0
    %1007 = vmatpush1.msra.mxu0 %v821
    %1008 = vmatprep.subr.mxu0 0.0
    %1009 = vmatpush1.msra.mxu0 %v826
    %1010 = vmatprep.subr.mxu0 0.0
    %1011 = vmatpush1.msra.mxu0 %v831
    %1012 = vmatprep.subr.mxu0 0.0
    %1013 = vmatpush1.msra.mxu0 %v836
    %1014 = vmatprep.subr.mxu0 0.0
    %1015 = vmatpush1.msra.mxu0 %v841
    %1016 = vmatprep.subr.mxu0 0.0
    %1017 = vmatpush1.msra.mxu0 0.0
    %1018 = vmatprep.subr.mxu0 0.0
    %1019 = vmatpush1.msra.mxu0 0.0
    %1020 = vmatprep.subr.mxu0 0.0
    %1021 = vmatpush1.msra.mxu0 0.0
    %1022 = vmatprep.subr.mxu0 0.0
    %1023 = vmatpush1.msra.mxu0 0.0
    %1024 = vmatprep.subr.mxu0 0.0
    %1025 = vmatpush1.msra.mxu0 0.0
    %1026 = vmatprep.subr.mxu0 0.0
    %1027 = vmatpush1.msra.mxu0 0.0
    %1028 = vmatprep.subr.mxu0 0.0
    %1029 = vmatpush1.msra.mxu0 0.0
    %1030 = vmatprep.subr.mxu0 0.0
    %1031 = vmatpush1.msra.mxu0 0.0
    %1032 = vmatprep.subr.mxu0 0.0
    %1033 = vmatpush1.msra.mxu0 0.0
    %1034 = vmatprep.subr.mxu0 0.0
    %1035 = vmatpush1.msra.mxu0 0.0
    %1036 = vmatprep.subr.mxu0 0.0
    %1037 = vmatpush1.msra.mxu0 0.0
    %1038 = vmatprep.subr.mxu0 0.0
    %1039 = vmatpush1.msra.mxu0 0.0
    %1040 = vmatprep.subr.mxu0 0.0
    %1041 = vmatpush1.msra.mxu0 0.0
    %1042 = vmatprep.subr.mxu0 0.0
    %1043 = vmatpush1.msra.mxu0 0.0
    %1044 = vmatprep.subr.mxu0 0.0
    %1045 = vmatpush1.msra.mxu0 0.0
    %1046 = vmatprep.subr.mxu0 0.0
    %1047 = vmatpush1.msra.mxu0 0.0
    %1048 = vmatprep.mubr.f32.mxu0 0.0
    %1049 = vmatmul.mubr.f32.gmra.mrb[0].mxu0 %v754
    %v1050 = vpop.f32.mrb[0].mxu0
    %v1051 = vadd.f32 0.0, %v1050
    %v1052 = vpop.f32.mrb[0].mxu0
    %1053 = vdwg.mxu0
    %v1054 = vadd.f32 %v757, %v909
    %v1055 = vadd.f32 %v758, %v911
    %v1056 = vadd.f32 %v759, %v980
    %v1057 = vadd.f32 %v760, %v982
    %v1058 = vadd.f32 %v761, %v1051
    %v1059 = vxor.u32 %v1054, 2147483648
    %v1060 = vmul.f32 %v1059, 1.442695
    %v1061 = vpow.pop %v1060
    %v1062 = vadd.f32 %v1061, 1.0
    %v1063 = vrcp.pop %v1062
    %v1064 = vmul.f32 1.0, %v1063
    %v1065 = vxor.u32 %v1055, 2147483648
    %v1066 = vmul.f32 %v1065, 1.442695
    %v1067 = vpow.pop %v1066
    %v1068 = vadd.f32 %v1067, 1.0
    %v1069 = vrcp.pop %v1068
    %v1070 = vmul.f32 1.0, %v1069
    %v1071 = vxor.u32 %v1056, 2147483648
    %v1072 = vmul.f32 %v1071, 1.442695
    %v1073 = vpow.pop %v1072
    %v1074 = vadd.f32 %v1073, 1.0
    %v1075 = vrcp.pop %v1074
    %v1076 = vmul.f32 1.0, %v1075
    %v1077 = vtanh.pop %v1057
    %v1078 = vxor.u32 %v1058, 2147483648
    %v1079 = vmul.f32 %v1078, 1.442695
    %v1080 = vpow.pop %v1079
    %v1081 = vadd.f32 %v1080, 1.0
    %v1082 = vrcp.pop %v1081
    %v1083 = vmul.f32 1.0, %v1082
    %v1084 = vmul.f32 %v1083, %v756
    %v1085 = vmul.f32 %v1070, %v755
    %v1086 = vmul.f32 %v1064, %v1077
    %v1087 = vadd.f32 %v1085, %v1086
    %v1088 = vld [vmem:[#allocation5] sm:$0xff]
    %v1089 = vld [vmem:[#allocation5 + $0x8] sm:$0xff]
    %v1090 = vld [vmem:[#allocation5 + $0x10] sm:$0xff]
    %v1091 = vld [vmem:[#allocation5 + $0x18] sm:$0xff]
    %v1092 = vld [vmem:[#allocation5 + $0x20] sm:$0xff]
    %v1093 = vld [vmem:[#allocation5 + $0x28] sm:$0xff]
    %v1094 = vld [vmem:[#allocation5 + $0x30] sm:$0xff]
    %v1095 = vld [vmem:[#allocation5 + $0x38] sm:$0xff]
    %v1096 = vld [vmem:[#allocation5 + $0x40] sm:$0xff]
    %v1097 = vld [vmem:[#allocation5 + $0x48] sm:$0xff]
    %v1098 = vld [vmem:[#allocation5 + $0x50] sm:$0xff]
    %v1099 = vld [vmem:[#allocation5 + $0x58] sm:$0xff]
    %v1100 = vld [vmem:[#allocation5 + $0x60] sm:$0xff]
    %v1101 = vld [vmem:[#allocation5 + $0x68] sm:$0xff]
    %v1102 = vld [vmem:[#allocation5 + $0x70] sm:$0xff]
    %v1103 = vld [vmem:[#allocation5 + $0x78] sm:$0xff]
    %1104 = vmatprep.subr.mxu0 0.0
    %1105 = vmatpush1.msra.mxu0 %v1088
    %1106 = vmatprep.subr.mxu0 0.0
    %1107 = vmatpush1.msra.mxu0 %v1089
    %1108 = vmatprep.subr.mxu0 0.0
    %1109 = vmatpush1.msra.mxu0 %v1090
    %1110 = vmatprep.subr.mxu0 0.0
    %1111 = vmatpush1.msra.mxu0 %v1091
    %1112 = vmatprep.subr.mxu0 0.0
    %1113 = vmatpush1.msra.mxu0 %v1092
    %1114 = vmatprep.subr.mxu0 0.0
    %1115 = vmatpush1.msra.mxu0 %v1093
    %1116 = vmatprep.subr.mxu0 0.0
    %1117 = vmatpush1.msra.mxu0 %v1094
    %1118 = vmatprep.subr.mxu0 0.0
    %1119 = vmatpush1.msra.mxu0 %v1095
    %1120 = vmatprep.subr.mxu0 0.0
    %1121 = vmatpush1.msra.mxu0 %v1096
    %1122 = vmatprep.subr.mxu0 0.0
    %1123 = vmatpush1.msra.mxu0 %v1097
    %1124 = vmatprep.subr.mxu0 0.0
    %1125 = vmatpush1.msra.mxu0 %v1098
    %1126 = vmatprep.subr.mxu0 0.0
    %1127 = vmatpush1.msra.mxu0 %v1099
    %1128 = vmatprep.subr.mxu0 0.0
    %1129 = vmatpush1.msra.mxu0 %v1100
    %1130 = vmatprep.subr.mxu0 0.0
    %1131 = vmatpush1.msra.mxu0 %v1101
    %1132 = vmatprep.subr.mxu0 0.0
    %1133 = vmatpush1.msra.mxu0 %v1102
    %1134 = vmatprep.subr.mxu0 0.0
    %1135 = vmatpush1.msra.mxu0 %v1103
    %1136 = vmatprep.subr.mxu0 0.0
    %1137 = vmatpush1.msra.mxu0 0.0
    %1138 = vmatprep.subr.mxu0 0.0
    %1139 = vmatpush1.msra.mxu0 0.0
    %1140 = vmatprep.subr.mxu0 0.0
    %1141 = vmatpush1.msra.mxu0 0.0
    %1142 = vmatprep.subr.mxu0 0.0
    %1143 = vmatpush1.msra.mxu0 0.0
    %1144 = vmatprep.subr.mxu0 0.0
    %1145 = vmatpush1.msra.mxu0 0.0
    %1146 = vmatprep.subr.mxu0 0.0
    %1147 = vmatpush1.msra.mxu0 0.0
    %1148 = vmatprep.subr.mxu0 0.0
    %1149 = vmatpush1.msra.mxu0 0.0
    %1150 = vmatprep.subr.mxu0 0.0
    %1151 = vmatpush1.msra.mxu0 0.0
    %1152 = vmatprep.subr.mxu0 0.0
    %1153 = vmatpush1.msra.mxu0 0.0
    %1154 = vmatprep.subr.mxu0 0.0
    %1155 = vmatpush1.msra.mxu0 0.0
    %1156 = vmatprep.subr.mxu0 0.0
    %1157 = vmatpush1.msra.mxu0 0.0
    %1158 = vmatprep.subr.mxu0 0.0
    %1159 = vmatpush1.msra.mxu0 0.0
    %1160 = vmatprep.subr.mxu0 0.0
    %1161 = vmatpush1.msra.mxu0 0.0
    %1162 = vmatprep.subr.mxu0 0.0
    %1163 = vmatpush1.msra.mxu0 0.0
    %1164 = vmatprep.subr.mxu0 0.0
    %1165 = vmatpush1.msra.mxu0 0.0
    %1166 = vmatprep.subr.mxu0 0.0
    %1167 = vmatpush1.msra.mxu0 0.0
    %1168 = vmatprep.mubr.f32.mxu0 0.0
    %1169 = vmatmul.mubr.f32.gmra.mrb[0].mxu0 %v1084
    %v1170 = vpop.f32.mrb[0].mxu0
    %v1171 = vadd.f32 0.0, %v1170
    %v1172 = vpop.f32.mrb[0].mxu0
    %1173 = vdwg.mxu0
    %v1174 = vadd.f32 %v1087, %v1171
    %v1175 = vtanh.pop %v1174
    %v1176 = vmul.f32 %v1076, %v1175
    %1177 = vst [vmem:[#allocation12] sm:$0xff] %v1176
    %s1178 = scalar_lea.vmem [#allocation11], 40
    %v1179 = vld [vmem:[%s1178] sm:$0xff]
    %v1180 = vld [vmem:[%s1178 + $0x8] sm:$0xff]
    %v1181 = vld [vmem:[%s1178 + $0x10] sm:$0xff]
    %v1182 = vld [vmem:[%s1178 + $0x18] sm:$0xff]
    %v1183 = vld [vmem:[%s1178 + $0x20] sm:$0xff]
    %v1184 = vld [vmem:[#allocation3] sm:$0xff]
    %v1185 = vld [vmem:[#allocation3 + $0x8] sm:$0xff]
    %v1186 = vld [vmem:[#allocation3 + $0x10] sm:$0xff]
    %v1187 = vld [vmem:[#allocation3 + $0x18] sm:$0xff]
    %v1188 = vld [vmem:[#allocation3 + $0x20] sm:$0xff]
    %v1189 = vld [vmem:[#allocation3 + $0x28] sm:$0xff]
    %v1190 = vld [vmem:[#allocation3 + $0x30] sm:$0xff]
    %v1191 = vld [vmem:[#allocation3 + $0x38] sm:$0xff]
    %v1192 = vld [vmem:[#allocation3 + $0x40] sm:$0xff]
    %v1193 = vld [vmem:[#allocation3 + $0x48] sm:$0xff]
    %v1194 = vld [vmem:[#allocation3 + $0x50] sm:$0xff]
    %v1195 = vld [vmem:[#allocation3 + $0x58] sm:$0xff]
    %v1196 = vld [vmem:[#allocation3 + $0x60] sm:$0xff]
    %v1197 = vld [vmem:[#allocation3 + $0x68] sm:$0xff]
    %v1198 = vld [vmem:[#allocation3 + $0x70] sm:$0xff]
    %v1199 = vld [vmem:[#allocation3 + $0x78] sm:$0xff]
    %v1200 = vld [vmem:[#allocation3 + $0x80] sm:$0xff]
    %v1201 = vld [vmem:[#allocation3 + $0x88] sm:$0xff]
    %v1202 = vld [vmem:[#allocation3 + $0x90] sm:$0xff]
    %v1203 = vld [vmem:[#allocation3 + $0x98] sm:$0xff]
    %v1204 = vld [vmem:[#allocation3 + $0xa0] sm:$0xff]
    %v1205 = vld [vmem:[#allocation3 + $0xa8] sm:$0xff]
    %v1206 = vld [vmem:[#allocation3 + $0xb0] sm:$0xff]
    %v1207 = vld [vmem:[#allocation3 + $0xb8] sm:$0xff]
    %v1208 = vld [vmem:[#allocation3 + $0xc0] sm:$0xff]
    %v1209 = vld [vmem:[#allocation3 + $0xc8] sm:$0xff]
    %v1210 = vld [vmem:[#allocation3 + $0xd0] sm:$0xff]
    %v1211 = vld [vmem:[#allocation3 + $0xd8] sm:$0xff]
    %v1212 = vld [vmem:[#allocation3 + $0xe0] sm:$0xff]
    %v1213 = vld [vmem:[#allocation3 + $0xe8] sm:$0xff]
    %v1214 = vld [vmem:[#allocation3 + $0xf0] sm:$0xff]
    %v1215 = vld [vmem:[#allocation3 + $0xf8] sm:$0xff]
    %v1216 = vld [vmem:[#allocation3 + $0x100] sm:$0xff]
    %v1217 = vld [vmem:[#allocation3 + $0x108] sm:$0xff]
    %v1218 = vld [vmem:[#allocation3 + $0x110] sm:$0xff]
    %v1219 = vld [vmem:[#allocation3 + $0x118] sm:$0xff]
    %v1220 = vld [vmem:[#allocation3 + $0x120] sm:$0xff]
    %v1221 = vld [vmem:[#allocation3 + $0x128] sm:$0xff]
    %v1222 = vld [vmem:[#allocation3 + $0x130] sm:$0xff]
    %v1223 = vld [vmem:[#allocation3 + $0x138] sm:$0xff]
    %v1224 = vld [vmem:[#allocation3 + $0x140] sm:$0xff]
    %v1225 = vld [vmem:[#allocation3 + $0x148] sm:$0xff]
    %v1226 = vld [vmem:[#allocation3 + $0x150] sm:$0xff]
    %v1227 = vld [vmem:[#allocation3 + $0x158] sm:$0xff]
    %v1228 = vld [vmem:[#allocation3 + $0x160] sm:$0xff]
    %v1229 = vld [vmem:[#allocation3 + $0x168] sm:$0xff]
    %v1230 = vld [vmem:[#allocation3 + $0x170] sm:$0xff]
    %v1231 = vld [vmem:[#allocation3 + $0x178] sm:$0xff]
    %v1232 = vld [vmem:[#allocation3 + $0x180] sm:$0xff]
    %v1233 = vld [vmem:[#allocation3 + $0x188] sm:$0xff]
    %v1234 = vld [vmem:[#allocation3 + $0x190] sm:$0xff]
    %v1235 = vld [vmem:[#allocation3 + $0x198] sm:$0xff]
    %v1236 = vld [vmem:[#allocation3 + $0x1a0] sm:$0xff]
    %v1237 = vld [vmem:[#allocation3 + $0x1a8] sm:$0xff]
    %v1238 = vld [vmem:[#allocation3 + $0x1b0] sm:$0xff]
    %v1239 = vld [vmem:[#allocation3 + $0x1b8] sm:$0xff]
    %v1240 = vld [vmem:[#allocation3 + $0x1c0] sm:$0xff]
    %v1241 = vld [vmem:[#allocation3 + $0x1c8] sm:$0xff]
    %v1242 = vld [vmem:[#allocation3 + $0x1d0] sm:$0xff]
    %v1243 = vld [vmem:[#allocation3 + $0x1d8] sm:$0xff]
    %v1244 = vld [vmem:[#allocation3 + $0x1e0] sm:$0xff]
    %v1245 = vld [vmem:[#allocation3 + $0x1e8] sm:$0xff]
    %v1246 = vld [vmem:[#allocation3 + $0x1f0] sm:$0xff]
    %v1247 = vld [vmem:[#allocation3 + $0x1f8] sm:$0xff]
    %v1248 = vld [vmem:[#allocation3 + $0x200] sm:$0xff]
    %v1249 = vld [vmem:[#allocation3 + $0x208] sm:$0xff]
    %v1250 = vld [vmem:[#allocation3 + $0x210] sm:$0xff]
    %v1251 = vld [vmem:[#allocation3 + $0x218] sm:$0xff]
    %v1252 = vld [vmem:[#allocation3 + $0x220] sm:$0xff]
    %v1253 = vld [vmem:[#allocation3 + $0x228] sm:$0xff]
    %v1254 = vld [vmem:[#allocation3 + $0x230] sm:$0xff]
    %v1255 = vld [vmem:[#allocation3 + $0x238] sm:$0xff]
    %v1256 = vld [vmem:[#allocation3 + $0x240] sm:$0xff]
    %v1257 = vld [vmem:[#allocation3 + $0x248] sm:$0xff]
    %v1258 = vld [vmem:[#allocation3 + $0x250] sm:$0xff]
    %v1259 = vld [vmem:[#allocation3 + $0x258] sm:$0xff]
    %v1260 = vld [vmem:[#allocation3 + $0x260] sm:$0xff]
    %v1261 = vld [vmem:[#allocation3 + $0x268] sm:$0xff]
    %v1262 = vld [vmem:[#allocation3 + $0x270] sm:$0xff]
    %v1263 = vld [vmem:[#allocation3 + $0x278] sm:$0xff]
    %1264 = vmatprep.subr.mxu0 %v1185
    %1265 = vmatpush1.msra.mxu0 %v1184
    %1266 = vmatprep.subr.mxu0 %v1190
    %1267 = vmatpush1.msra.mxu0 %v1189
    %1268 = vmatprep.subr.mxu0 %v1195
    %1269 = vmatpush1.msra.mxu0 %v1194
    %1270 = vmatprep.subr.mxu0 %v1200
    %1271 = vmatpush1.msra.mxu0 %v1199
    %1272 = vmatprep.subr.mxu0 %v1205
    %1273 = vmatpush1.msra.mxu0 %v1204
    %1274 = vmatprep.subr.mxu0 %v1210
    %1275 = vmatpush1.msra.mxu0 %v1209
    %1276 = vmatprep.subr.mxu0 %v1215
    %1277 = vmatpush1.msra.mxu0 %v1214
    %1278 = vmatprep.subr.mxu0 %v1220
    %1279 = vmatpush1.msra.mxu0 %v1219
    %1280 = vmatprep.subr.mxu0 %v1225
    %1281 = vmatpush1.msra.mxu0 %v1224
    %1282 = vmatprep.subr.mxu0 %v1230
    %1283 = vmatpush1.msra.mxu0 %v1229
    %1284 = vmatprep.subr.mxu0 %v1235
    %1285 = vmatpush1.msra.mxu0 %v1234
    %1286 = vmatprep.subr.mxu0 %v1240
    %1287 = vmatpush1.msra.mxu0 %v1239
    %1288 = vmatprep.subr.mxu0 %v1245
    %1289 = vmatpush1.msra.mxu0 %v1244
    %1290 = vmatprep.subr.mxu0 %v1250
    %1291 = vmatpush1.msra.mxu0 %v1249
    %1292 = vmatprep.subr.mxu0 %v1255
    %1293 = vmatpush1.msra.mxu0 %v1254
    %1294 = vmatprep.subr.mxu0 %v1260
    %1295 = vmatpush1.msra.mxu0 %v1259
    %1296 = vmatprep.subr.mxu0 0.0
    %1297 = vmatpush1.msra.mxu0 0.0
    %1298 = vmatprep.subr.mxu0 0.0
    %1299 = vmatpush1.msra.mxu0 0.0
    %1300 = vmatprep.subr.mxu0 0.0
    %1301 = vmatpush1.msra.mxu0 0.0
    %1302 = vmatprep.subr.mxu0 0.0
    %1303 = vmatpush1.msra.mxu0 0.0
    %1304 = vmatprep.subr.mxu0 0.0
    %1305 = vmatpush1.msra.mxu0 0.0
    %1306 = vmatprep.subr.mxu0 0.0
    %1307 = vmatpush1.msra.mxu0 0.0
    %1308 = vmatprep.subr.mxu0 0.0
    %1309 = vmatpush1.msra.mxu0 0.0
    %1310 = vmatprep.subr.mxu0 0.0
    %1311 = vmatpush1.msra.mxu0 0.0
    %1312 = vmatprep.subr.mxu0 0.0
    %1313 = vmatpush1.msra.mxu0 0.0
    %1314 = vmatprep.subr.mxu0 0.0
    %1315 = vmatpush1.msra.mxu0 0.0
    %1316 = vmatprep.subr.mxu0 0.0
    %1317 = vmatpush1.msra.mxu0 0.0
    %1318 = vmatprep.subr.mxu0 0.0
    %1319 = vmatpush1.msra.mxu0 0.0
    %1320 = vmatprep.subr.mxu0 0.0
    %1321 = vmatpush1.msra.mxu0 0.0
    %1322 = vmatprep.subr.mxu0 0.0
    %1323 = vmatpush1.msra.mxu0 0.0
    %1324 = vmatprep.subr.mxu0 0.0
    %1325 = vmatpush1.msra.mxu0 0.0
    %1326 = vmatprep.subr.mxu0 0.0
    %1327 = vmatpush1.msra.mxu0 0.0
    %1328 = vmatprep.mubr.f32.mxu0 0.0
    %1329 = vmatmul.mubr.f32.gmra.mrb[0].mxu0 %v1176
    %v1330 = vpop.f32.mrb[0].mxu0
    %v1331 = vadd.f32 0.0, %v1330
    %v1332 = vpop.f32.mrb[0].mxu0
    %v1333 = vadd.f32 0.0, %v1332
    %1334 = vdwg.mxu0
    %1335 = vmatprep.subr.mxu0 %v1187
    %1336 = vmatpush1.msra.mxu0 %v1186
    %1337 = vmatprep.subr.mxu0 %v1192
    %1338 = vmatpush1.msra.mxu0 %v1191
    %1339 = vmatprep.subr.mxu0 %v1197
    %1340 = vmatpush1.msra.mxu0 %v1196
    %1341 = vmatprep.subr.mxu0 %v1202
    %1342 = vmatpush1.msra.mxu0 %v1201
    %1343 = vmatprep.subr.mxu0 %v1207
    %1344 = vmatpush1.msra.mxu0 %v1206
    %1345 = vmatprep.subr.mxu0 %v1212
    %1346 = vmatpush1.msra.mxu0 %v1211
    %1347 = vmatprep.subr.mxu0 %v1217
    %1348 = vmatpush1.msra.mxu0 %v1216
    %1349 = vmatprep.subr.mxu0 %v1222
    %1350 = vmatpush1.msra.mxu0 %v1221
    %1351 = vmatprep.subr.mxu0 %v1227
    %1352 = vmatpush1.msra.mxu0 %v1226
    %1353 = vmatprep.subr.mxu0 %v1232
    %1354 = vmatpush1.msra.mxu0 %v1231
    %1355 = vmatprep.subr.mxu0 %v1237
    %1356 = vmatpush1.msra.mxu0 %v1236
    %1357 = vmatprep.subr.mxu0 %v1242
    %1358 = vmatpush1.msra.mxu0 %v1241
    %1359 = vmatprep.subr.mxu0 %v1247
    %1360 = vmatpush1.msra.mxu0 %v1246
    %1361 = vmatprep.subr.mxu0 %v1252
    %1362 = vmatpush1.msra.mxu0 %v1251
    %1363 = vmatprep.subr.mxu0 %v1257
    %1364 = vmatpush1.msra.mxu0 %v1256
    %1365 = vmatprep.subr.mxu0 %v1262
    %1366 = vmatpush1.msra.mxu0 %v1261
    %1367 = vmatprep.subr.mxu0 0.0
    %1368 = vmatpush1.msra.mxu0 0.0
    %1369 = vmatprep.subr.mxu0 0.0
    %1370 = vmatpush1.msra.mxu0 0.0
    %1371 = vmatprep.subr.mxu0 0.0
    %1372 = vmatpush1.msra.mxu0 0.0
    %1373 = vmatprep.subr.mxu0 0.0
    %1374 = vmatpush1.msra.mxu0 0.0
    %1375 = vmatprep.subr.mxu0 0.0
    %1376 = vmatpush1.msra.mxu0 0.0
    %1377 = vmatprep.subr.mxu0 0.0
    %1378 = vmatpush1.msra.mxu0 0.0
    %1379 = vmatprep.subr.mxu0 0.0
    %1380 = vmatpush1.msra.mxu0 0.0
    %1381 = vmatprep.subr.mxu0 0.0
    %1382 = vmatpush1.msra.mxu0 0.0
    %1383 = vmatprep.subr.mxu0 0.0
    %1384 = vmatpush1.msra.mxu0 0.0
    %1385 = vmatprep.subr.mxu0 0.0
    %1386 = vmatpush1.msra.mxu0 0.0
    %1387 = vmatprep.subr.mxu0 0.0
    %1388 = vmatpush1.msra.mxu0 0.0
    %1389 = vmatprep.subr.mxu0 0.0
    %1390 = vmatpush1.msra.mxu0 0.0
    %1391 = vmatprep.subr.mxu0 0.0
    %1392 = vmatpush1.msra.mxu0 0.0
    %1393 = vmatprep.subr.mxu0 0.0
    %1394 = vmatpush1.msra.mxu0 0.0
    %1395 = vmatprep.subr.mxu0 0.0
    %1396 = vmatpush1.msra.mxu0 0.0
    %1397 = vmatprep.subr.mxu0 0.0
    %1398 = vmatpush1.msra.mxu0 0.0
    %1399 = vmatprep.mubr.f32.mxu0 0.0
    %1400 = vmatmul.mubr.f32.gmra.mrb[0].mxu0 %v1176
    %v1401 = vpop.f32.mrb[0].mxu0
    %v1402 = vadd.f32 0.0, %v1401
    %v1403 = vpop.f32.mrb[0].mxu0
    %v1404 = vadd.f32 0.0, %v1403
    %1405 = vdwg.mxu0
    %1406 = vmatprep.subr.mxu0 0.0
    %1407 = vmatpush1.msra.mxu0 %v1188
    %1408 = vmatprep.subr.mxu0 0.0
    %1409 = vmatpush1.msra.mxu0 %v1193
    %1410 = vmatprep.subr.mxu0 0.0
    %1411 = vmatpush1.msra.mxu0 %v1198
    %1412 = vmatprep.subr.mxu0 0.0
    %1413 = vmatpush1.msra.mxu0 %v1203
    %1414 = vmatprep.subr.mxu0 0.0
    %1415 = vmatpush1.msra.mxu0 %v1208
    %1416 = vmatprep.subr.mxu0 0.0
    %1417 = vmatpush1.msra.mxu0 %v1213
    %1418 = vmatprep.subr.mxu0 0.0
    %1419 = vmatpush1.msra.mxu0 %v1218
    %1420 = vmatprep.subr.mxu0 0.0
    %1421 = vmatpush1.msra.mxu0 %v1223
    %1422 = vmatprep.subr.mxu0 0.0
    %1423 = vmatpush1.msra.mxu0 %v1228
    %1424 = vmatprep.subr.mxu0 0.0
    %1425 = vmatpush1.msra.mxu0 %v1233
    %1426 = vmatprep.subr.mxu0 0.0
    %1427 = vmatpush1.msra.mxu0 %v1238
    %1428 = vmatprep.subr.mxu0 0.0
    %1429 = vmatpush1.msra.mxu0 %v1243
    %1430 = vmatprep.subr.mxu0 0.0
    %1431 = vmatpush1.msra.mxu0 %v1248
    %1432 = vmatprep.subr.mxu0 0.0
    %1433 = vmatpush1.msra.mxu0 %v1253
    %1434 = vmatprep.subr.mxu0 0.0
    %1435 = vmatpush1.msra.mxu0 %v1258
    %1436 = vmatprep.subr.mxu0 0.0
    %1437 = vmatpush1.msra.mxu0 %v1263
    %1438 = vmatprep.subr.mxu0 0.0
    %1439 = vmatpush1.msra.mxu0 0.0
    %1440 = vmatprep.subr.mxu0 0.0
    %1441 = vmatpush1.msra.mxu0 0.0
    %1442 = vmatprep.subr.mxu0 0.0
    %1443 = vmatpush1.msra.mxu0 0.0
    %1444 = vmatprep.subr.mxu0 0.0
    %1445 = vmatpush1.msra.mxu0 0.0
    %1446 = vmatprep.subr.mxu0 0.0
    %1447 = vmatpush1.msra.mxu0 0.0
    %1448 = vmatprep.subr.mxu0 0.0
    %1449 = vmatpush1.msra.mxu0 0.0
    %1450 = vmatprep.subr.mxu0 0.0
    %1451 = vmatpush1.msra.mxu0 0.0
    %1452 = vmatprep.subr.mxu0 0.0
    %1453 = vmatpush1.msra.mxu0 0.0
    %1454 = vmatprep.subr.mxu0 0.0
    %1455 = vmatpush1.msra.mxu0 0.0
    %1456 = vmatprep.subr.mxu0 0.0
    %1457 = vmatpush1.msra.mxu0 0.0
    %1458 = vmatprep.subr.mxu0 0.0
    %1459 = vmatpush1.msra.mxu0 0.0
    %1460 = vmatprep.subr.mxu0 0.0
    %1461 = vmatpush1.msra.mxu0 0.0
    %1462 = vmatprep.subr.mxu0 0.0
    %1463 = vmatpush1.msra.mxu0 0.0
    %1464 = vmatprep.subr.mxu0 0.0
    %1465 = vmatpush1.msra.mxu0 0.0
    %1466 = vmatprep.subr.mxu0 0.0
    %1467 = vmatpush1.msra.mxu0 0.0
    %1468 = vmatprep.subr.mxu0 0.0
    %1469 = vmatpush1.msra.mxu0 0.0
    %1470 = vmatprep.mubr.f32.mxu0 0.0
    %1471 = vmatmul.mubr.f32.gmra.mrb[0].mxu0 %v1176
    %v1472 = vpop.f32.mrb[0].mxu0
    %v1473 = vadd.f32 0.0, %v1472
    %v1474 = vpop.f32.mrb[0].mxu0
    %1475 = vdwg.mxu0
    %v1476 = vadd.f32 %v1179, %v1331
    %v1477 = vadd.f32 %v1180, %v1333
    %v1478 = vadd.f32 %v1181, %v1402
    %v1479 = vadd.f32 %v1182, %v1404
    %v1480 = vadd.f32 %v1183, %v1473
    %v1481 = vxor.u32 %v1476, 2147483648
    %v1482 = vmul.f32 %v1481, 1.442695
    %v1483 = vpow.pop %v1482
    %v1484 = vadd.f32 %v1483, 1.0
    %v1485 = vrcp.pop %v1484
    %v1486 = vmul.f32 1.0, %v1485
    %v1487 = vxor.u32 %v1477, 2147483648
    %v1488 = vmul.f32 %v1487, 1.442695
    %v1489 = vpow.pop %v1488
    %v1490 = vadd.f32 %v1489, 1.0
    %v1491 = vrcp.pop %v1490
    %v1492 = vmul.f32 1.0, %v1491
    %v1493 = vxor.u32 %v1478, 2147483648
    %v1494 = vmul.f32 %v1493, 1.442695
    %v1495 = vpow.pop %v1494
    %v1496 = vadd.f32 %v1495, 1.0
    %v1497 = vrcp.pop %v1496
    %v1498 = vmul.f32 1.0, %v1497
    %v1499 = vtanh.pop %v1479
    %v1500 = vxor.u32 %v1480, 2147483648
    %v1501 = vmul.f32 %v1500, 1.442695
    %v1502 = vpow.pop %v1501
    %v1503 = vadd.f32 %v1502, 1.0
    %v1504 = vrcp.pop %v1503
    %v1505 = vmul.f32 1.0, %v1504
    %v1506 = vmul.f32 %v1505, %v1084
    %v1507 = vmul.f32 %v1492, %v1174
    %v1508 = vmul.f32 %v1486, %v1499
    %v1509 = vadd.f32 %v1507, %v1508
    %v1510 = vld [vmem:[#allocation5] sm:$0xff]
    %v1511 = vld [vmem:[#allocation5 + $0x8] sm:$0xff]
    %v1512 = vld [vmem:[#allocation5 + $0x10] sm:$0xff]
    %v1513 = vld [vmem:[#allocation5 + $0x18] sm:$0xff]
    %v1514 = vld [vmem:[#allocation5 + $0x20] sm:$0xff]
    %v1515 = vld [vmem:[#allocation5 + $0x28] sm:$0xff]
    %v1516 = vld [vmem:[#allocation5 + $0x30] sm:$0xff]
    %v1517 = vld [vmem:[#allocation5 + $0x38] sm:$0xff]
    %v1518 = vld [vmem:[#allocation5 + $0x40] sm:$0xff]
    %v1519 = vld [vmem:[#allocation5 + $0x48] sm:$0xff]
    %v1520 = vld [vmem:[#allocation5 + $0x50] sm:$0xff]
    %v1521 = vld [vmem:[#allocation5 + $0x58] sm:$0xff]
    %v1522 = vld [vmem:[#allocation5 + $0x60] sm:$0xff]
    %v1523 = vld [vmem:[#allocation5 + $0x68] sm:$0xff]
    %v1524 = vld [vmem:[#allocation5 + $0x70] sm:$0xff]
    %v1525 = vld [vmem:[#allocation5 + $0x78] sm:$0xff]
    %1526 = vmatprep.subr.mxu0 0.0
    %1527 = vmatpush1.msra.mxu0 %v1510
    %1528 = vmatprep.subr.mxu0 0.0
    %1529 = vmatpush1.msra.mxu0 %v1511
    %1530 = vmatprep.subr.mxu0 0.0
    %1531 = vmatpush1.msra.mxu0 %v1512
    %1532 = vmatprep.subr.mxu0 0.0
    %1533 = vmatpush1.msra.mxu0 %v1513
    %1534 = vmatprep.subr.mxu0 0.0
    %1535 = vmatpush1.msra.mxu0 %v1514
    %1536 = vmatprep.subr.mxu0 0.0
    %1537 = vmatpush1.msra.mxu0 %v1515
    %1538 = vmatprep.subr.mxu0 0.0
    %1539 = vmatpush1.msra.mxu0 %v1516
    %1540 = vmatprep.subr.mxu0 0.0
    %1541 = vmatpush1.msra.mxu0 %v1517
    %1542 = vmatprep.subr.mxu0 0.0
    %1543 = vmatpush1.msra.mxu0 %v1518
    %1544 = vmatprep.subr.mxu0 0.0
    %1545 = vmatpush1.msra.mxu0 %v1519
    %1546 = vmatprep.subr.mxu0 0.0
    %1547 = vmatpush1.msra.mxu0 %v1520
    %1548 = vmatprep.subr.mxu0 0.0
    %1549 = vmatpush1.msra.mxu0 %v1521
    %1550 = vmatprep.subr.mxu0 0.0
    %1551 = vmatpush1.msra.mxu0 %v1522
    %1552 = vmatprep.subr.mxu0 0.0
    %1553 = vmatpush1.msra.mxu0 %v1523
    %1554 = vmatprep.subr.mxu0 0.0
    %1555 = vmatpush1.msra.mxu0 %v1524
    %1556 = vmatprep.subr.mxu0 0.0
    %1557 = vmatpush1.msra.mxu0 %v1525
    %1558 = vmatprep.subr.mxu0 0.0
    %1559 = vmatpush1.msra.mxu0 0.0
    %1560 = vmatprep.subr.mxu0 0.0
    %1561 = vmatpush1.msra.mxu0 0.0
    %1562 = vmatprep.subr.mxu0 0.0
    %1563 = vmatpush1.msra.mxu0 0.0
    %1564 = vmatprep.subr.mxu0 0.0
    %1565 = vmatpush1.msra.mxu0 0.0
    %1566 = vmatprep.subr.mxu0 0.0
    %1567 = vmatpush1.msra.mxu0 0.0
    %1568 = vmatprep.subr.mxu0 0.0
    %1569 = vmatpush1.msra.mxu0 0.0
    %1570 = vmatprep.subr.mxu0 0.0
    %1571 = vmatpush1.msra.mxu0 0.0
    %1572 = vmatprep.subr.mxu0 0.0
    %1573 = vmatpush1.msra.mxu0 0.0
    %1574 = vmatprep.subr.mxu0 0.0
    %1575 = vmatpush1.msra.mxu0 0.0
    %1576 = vmatprep.subr.mxu0 0.0
    %1577 = vmatpush1.msra.mxu0 0.0
    %1578 = vmatprep.subr.mxu0 0.0
    %1579 = vmatpush1.msra.mxu0 0.0
    %1580 = vmatprep.subr.mxu0 0.0
    %1581 = vmatpush1.msra.mxu0 0.0
    %1582 = vmatprep.subr.mxu0 0.0
    %1583 = vmatpush1.msra.mxu0 0.0
    %1584 = vmatprep.subr.mxu0 0.0
    %1585 = vmatpush1.msra.mxu0 0.0
    %1586 = vmatprep.subr.mxu0 0.0
    %1587 = vmatpush1.msra.mxu0 0.0
    %1588 = vmatprep.subr.mxu0 0.0
    %1589 = vmatpush1.msra.mxu0 0.0
    %1590 = vmatprep.mubr.f32.mxu0 0.0
    %1591 = vmatmul.mubr.f32.gmra.mrb[0].mxu0 %v1506
    %v1592 = vpop.f32.mrb[0].mxu0
    %v1593 = vadd.f32 0.0, %v1592
    %v1594 = vpop.f32.mrb[0].mxu0
    %1595 = vdwg.mxu0
    %v1596 = vadd.f32 %v1509, %v1593
    %v1597 = vtanh.pop %v1596
    %v1598 = vmul.f32 %v1498, %v1597
    %s1599 = scalar_lea.vmem [#allocation12], 8
    %1600 = vst [vmem:[%s1599] sm:$0xff] %v1598
    %s1601 = scalar_lea.vmem [#allocation11], 80
    %v1602 = vld [vmem:[%s1601] sm:$0xff]
    %v1603 = vld [vmem:[%s1601 + $0x8] sm:$0xff]
    %v1604 = vld [vmem:[%s1601 + $0x10] sm:$0xff]
    %v1605 = vld [vmem:[%s1601 + $0x18] sm:$0xff]
    %v1606 = vld [vmem:[%s1601 + $0x20] sm:$0xff]
    %v1607 = vld [vmem:[#allocation3] sm:$0xff]
    %v1608 = vld [vmem:[#allocation3 + $0x8] sm:$0xff]
    %v1609 = vld [vmem:[#allocation3 + $0x10] sm:$0xff]
    %v1610 = vld [vmem:[#allocation3 + $0x18] sm:$0xff]
    %v1611 = vld [vmem:[#allocation3 + $0x20] sm:$0xff]
    %v1612 = vld [vmem:[#allocation3 + $0x28] sm:$0xff]
    %v1613 = vld [vmem:[#allocation3 + $0x30] sm:$0xff]
    %v1614 = vld [vmem:[#allocation3 + $0x38] sm:$0xff]
    %v1615 = vld [vmem:[#allocation3 + $0x40] sm:$0xff]
    %v1616 = vld [vmem:[#allocation3 + $0x48] sm:$0xff]
    %v1617 = vld [vmem:[#allocation3 + $0x50] sm:$0xff]
    %v1618 = vld [vmem:[#allocation3 + $0x58] sm:$0xff]
    %v1619 = vld [vmem:[#allocation3 + $0x60] sm:$0xff]
    %v1620 = vld [vmem:[#allocation3 + $0x68] sm:$0xff]
    %v1621 = vld [vmem:[#allocation3 + $0x70] sm:$0xff]
    %v1622 = vld [vmem:[#allocation3 + $0x78] sm:$0xff]
    %v1623 = vld [vmem:[#allocation3 + $0x80] sm:$0xff]
    %v1624 = vld [vmem:[#allocation3 + $0x88] sm:$0xff]
    %v1625 = vld [vmem:[#allocation3 + $0x90] sm:$0xff]
    %v1626 = vld [vmem:[#allocation3 + $0x98] sm:$0xff]
    %v1627 = vld [vmem:[#allocation3 + $0xa0] sm:$0xff]
    %v1628 = vld [vmem:[#allocation3 + $0xa8] sm:$0xff]
    %v1629 = vld [vmem:[#allocation3 + $0xb0] sm:$0xff]
    %v1630 = vld [vmem:[#allocation3 + $0xb8] sm:$0xff]
    %v1631 = vld [vmem:[#allocation3 + $0xc0] sm:$0xff]
    %v1632 = vld [vmem:[#allocation3 + $0xc8] sm:$0xff]
    %v1633 = vld [vmem:[#allocation3 + $0xd0] sm:$0xff]
    %v1634 = vld [vmem:[#allocation3 + $0xd8] sm:$0xff]
    %v1635 = vld [vmem:[#allocation3 + $0xe0] sm:$0xff]
    %v1636 = vld [vmem:[#allocation3 + $0xe8] sm:$0xff]
    %v1637 = vld [vmem:[#allocation3 + $0xf0] sm:$0xff]
    %v1638 = vld [vmem:[#allocation3 + $0xf8] sm:$0xff]
    %v1639 = vld [vmem:[#allocation3 + $0x100] sm:$0xff]
    %v1640 = vld [vmem:[#allocation3 + $0x108] sm:$0xff]
    %v1641 = vld [vmem:[#allocation3 + $0x110] sm:$0xff]
    %v1642 = vld [vmem:[#allocation3 + $0x118] sm:$0xff]
    %v1643 = vld [vmem:[#allocation3 + $0x120] sm:$0xff]
    %v1644 = vld [vmem:[#allocation3 + $0x128] sm:$0xff]
    %v1645 = vld [vmem:[#allocation3 + $0x130] sm:$0xff]
    %v1646 = vld [vmem:[#allocation3 + $0x138] sm:$0xff]
    %v1647 = vld [vmem:[#allocation3 + $0x140] sm:$0xff]
    %v1648 = vld [vmem:[#allocation3 + $0x148] sm:$0xff]
    %v1649 = vld [vmem:[#allocation3 + $0x150] sm:$0xff]
    %v1650 = vld [vmem:[#allocation3 + $0x158] sm:$0xff]
    %v1651 = vld [vmem:[#allocation3 + $0x160] sm:$0xff]
    %v1652 = vld [vmem:[#allocation3 + $0x168] sm:$0xff]
    %v1653 = vld [vmem:[#allocation3 + $0x170] sm:$0xff]
    %v1654 = vld [vmem:[#allocation3 + $0x178] sm:$0xff]
    %v1655 = vld [vmem:[#allocation3 + $0x180] sm:$0xff]
    %v1656 = vld [vmem:[#allocation3 + $0x188] sm:$0xff]
    %v1657 = vld [vmem:[#allocation3 + $0x190] sm:$0xff]
    %v1658 = vld [vmem:[#allocation3 + $0x198] sm:$0xff]
    %v1659 = vld [vmem:[#allocation3 + $0x1a0] sm:$0xff]
    %v1660 = vld [vmem:[#allocation3 + $0x1a8] sm:$0xff]
    %v1661 = vld [vmem:[#allocation3 + $0x1b0] sm:$0xff]
    %v1662 = vld [vmem:[#allocation3 + $0x1b8] sm:$0xff]
    %v1663 = vld [vmem:[#allocation3 + $0x1c0] sm:$0xff]
    %v1664 = vld [vmem:[#allocation3 + $0x1c8] sm:$0xff]
    %v1665 = vld [vmem:[#allocation3 + $0x1d0] sm:$0xff]
    %v1666 = vld [vmem:[#allocation3 + $0x1d8] sm:$0xff]
    %v1667 = vld [vmem:[#allocation3 + $0x1e0] sm:$0xff]
    %v1668 = vld [vmem:[#allocation3 + $0x1e8] sm:$0xff]
    %v1669 = vld [vmem:[#allocation3 + $0x1f0] sm:$0xff]
    %v1670 = vld [vmem:[#allocation3 + $0x1f8] sm:$0xff]
    %v1671 = vld [vmem:[#allocation3 + $0x200] sm:$0xff]
    %v1672 = vld [vmem:[#allocation3 + $0x208] sm:$0xff]
    %v1673 = vld [vmem:[#allocation3 + $0x210] sm:$0xff]
    %v1674 = vld [vmem:[#allocation3 + $0x218] sm:$0xff]
    %v1675 = vld [vmem:[#allocation3 + $0x220] sm:$0xff]
    %v1676 = vld [vmem:[#allocation3 + $0x228] sm:$0xff]
    %v1677 = vld [vmem:[#allocation3 + $0x230] sm:$0xff]
    %v1678 = vld [vmem:[#allocation3 + $0x238] sm:$0xff]
    %v1679 = vld [vmem:[#allocation3 + $0x240] sm:$0xff]
    %v1680 = vld [vmem:[#allocation3 + $0x248] sm:$0xff]
    %v1681 = vld [vmem:[#allocation3 + $0x250] sm:$0xff]
    %v1682 = vld [vmem:[#allocation3 + $0x258] sm:$0xff]
    %v1683 = vld [vmem:[#allocation3 + $0x260] sm:$0xff]
    %v1684 = vld [vmem:[#allocation3 + $0x268] sm:$0xff]
    %v1685 = vld [vmem:[#allocation3 + $0x270] sm:$0xff]
    %v1686 = vld [vmem:[#allocation3 + $0x278] sm:$0xff]
    %1687 = vmatprep.subr.mxu0 %v1608
    %1688 = vmatpush1.msra.mxu0 %v1607
    %1689 = vmatprep.subr.mxu0 %v1613
    %1690 = vmatpush1.msra.mxu0 %v1612
    %1691 = vmatprep.subr.mxu0 %v1618
    %1692 = vmatpush1.msra.mxu0 %v1617
    %1693 = vmatprep.subr.mxu0 %v1623
    %1694 = vmatpush1.msra.mxu0 %v1622
    %1695 = vmatprep.subr.mxu0 %v1628
    %1696 = vmatpush1.msra.mxu0 %v1627
    %1697 = vmatprep.subr.mxu0 %v1633
    %1698 = vmatpush1.msra.mxu0 %v1632
    %1699 = vmatprep.subr.mxu0 %v1638
    %1700 = vmatpush1.msra.mxu0 %v1637
    %1701 = vmatprep.subr.mxu0 %v1643
    %1702 = vmatpush1.msra.mxu0 %v1642
    %1703 = vmatprep.subr.mxu0 %v1648
    %1704 = vmatpush1.msra.mxu0 %v1647
    %1705 = vmatprep.subr.mxu0 %v1653
    %1706 = vmatpush1.msra.mxu0 %v1652
    %1707 = vmatprep.subr.mxu0 %v1658
    %1708 = vmatpush1.msra.mxu0 %v1657
    %1709 = vmatprep.subr.mxu0 %v1663
    %1710 = vmatpush1.msra.mxu0 %v1662
    %1711 = vmatprep.subr.mxu0 %v1668
    %1712 = vmatpush1.msra.mxu0 %v1667
    %1713 = vmatprep.subr.mxu0 %v1673
    %1714 = vmatpush1.msra.mxu0 %v1672
    %1715 = vmatprep.subr.mxu0 %v1678
    %1716 = vmatpush1.msra.mxu0 %v1677
    %1717 = vmatprep.subr.mxu0 %v1683
    %1718 = vmatpush1.msra.mxu0 %v1682
    %1719 = vmatprep.subr.mxu0 0.0
    %1720 = vmatpush1.msra.mxu0 0.0
    %1721 = vmatprep.subr.mxu0 0.0
    %1722 = vmatpush1.msra.mxu0 0.0
    %1723 = vmatprep.subr.mxu0 0.0
    %1724 = vmatpush1.msra.mxu0 0.0
    %1725 = vmatprep.subr.mxu0 0.0
    %1726 = vmatpush1.msra.mxu0 0.0
    %1727 = vmatprep.subr.mxu0 0.0
    %1728 = vmatpush1.msra.mxu0 0.0
    %1729 = vmatprep.subr.mxu0 0.0
    %1730 = vmatpush1.msra.mxu0 0.0
    %1731 = vmatprep.subr.mxu0 0.0
    %1732 = vmatpush1.msra.mxu0 0.0
    %1733 = vmatprep.subr.mxu0 0.0
    %1734 = vmatpush1.msra.mxu0 0.0
    %1735 = vmatprep.subr.mxu0 0.0
    %1736 = vmatpush1.msra.mxu0 0.0
    %1737 = vmatprep.subr.mxu0 0.0
    %1738 = vmatpush1.msra.mxu0 0.0
    %1739 = vmatprep.subr.mxu0 0.0
    %1740 = vmatpush1.msra.mxu0 0.0
    %1741 = vmatprep.subr.mxu0 0.0
    %1742 = vmatpush1.msra.mxu0 0.0
    %1743 = vmatprep.subr.mxu0 0.0
    %1744 = vmatpush1.msra.mxu0 0.0
    %1745 = vmatprep.subr.mxu0 0.0
    %1746 = vmatpush1.msra.mxu0 0.0
    %1747 = vmatprep.subr.mxu0 0.0
    %1748 = vmatpush1.msra.mxu0 0.0
    %1749 = vmatprep.subr.mxu0 0.0
    %1750 = vmatpush1.msra.mxu0 0.0
    %1751 = vmatprep.mubr.f32.mxu0 0.0
    %1752 = vmatmul.mubr.f32.gmra.mrb[0].mxu0 %v1598
    %v1753 = vpop.f32.mrb[0].mxu0
    %v1754 = vadd.f32 0.0, %v1753
    %v1755 = vpop.f32.mrb[0].mxu0
    %v1756 = vadd.f32 0.0, %v1755
    %1757 = vdwg.mxu0
    %1758 = vmatprep.subr.mxu0 %v1610
    %1759 = vmatpush1.msra.mxu0 %v1609
    %1760 = vmatprep.subr.mxu0 %v1615
    %1761 = vmatpush1.msra.mxu0 %v1614
    %1762 = vmatprep.subr.mxu0 %v1620
    %1763 = vmatpush1.msra.mxu0 %v1619
    %1764 = vmatprep.subr.mxu0 %v1625
    %1765 = vmatpush1.msra.mxu0 %v1624
    %1766 = vmatprep.subr.mxu0 %v1630
    %1767 = vmatpush1.msra.mxu0 %v1629
    %1768 = vmatprep.subr.mxu0 %v1635
    %1769 = vmatpush1.msra.mxu0 %v1634
    %1770 = vmatprep.subr.mxu0 %v1640
    %1771 = vmatpush1.msra.mxu0 %v1639
    %1772 = vmatprep.subr.mxu0 %v1645
    %1773 = vmatpush1.msra.mxu0 %v1644
    %1774 = vmatprep.subr.mxu0 %v1650
    %1775 = vmatpush1.msra.mxu0 %v1649
    %1776 = vmatprep.subr.mxu0 %v1655
    %1777 = vmatpush1.msra.mxu0 %v1654
    %1778 = vmatprep.subr.mxu0 %v1660
    %1779 = vmatpush1.msra.mxu0 %v1659
    %1780 = vmatprep.subr.mxu0 %v1665
    %1781 = vmatpush1.msra.mxu0 %v1664
    %1782 = vmatprep.subr.mxu0 %v1670
    %1783 = vmatpush1.msra.mxu0 %v1669
    %1784 = vmatprep.subr.mxu0 %v1675
    %1785 = vmatpush1.msra.mxu0 %v1674
    %1786 = vmatprep.subr.mxu0 %v1680
    %1787 = vmatpush1.msra.mxu0 %v1679
    %1788 = vmatprep.subr.mxu0 %v1685
    %1789 = vmatpush1.msra.mxu0 %v1684
    %1790 = vmatprep.subr.mxu0 0.0
    %1791 = vmatpush1.msra.mxu0 0.0
    %1792 = vmatprep.subr.mxu0 0.0
    %1793 = vmatpush1.msra.mxu0 0.0
    %1794 = vmatprep.subr.mxu0 0.0
    %1795 = vmatpush1.msra.mxu0 0.0
    %1796 = vmatprep.subr.mxu0 0.0
    %1797 = vmatpush1.msra.mxu0 0.0
    %1798 = vmatprep.subr.mxu0 0.0
    %1799 = vmatpush1.msra.mxu0 0.0
    %1800 = vmatprep.subr.mxu0 0.0
    %1801 = vmatpush1.msra.mxu0 0.0
    %1802 = vmatprep.subr.mxu0 0.0
    %1803 = vmatpush1.msra.mxu0 0.0
    %1804 = vmatprep.subr.mxu0 0.0
    %1805 = vmatpush1.msra.mxu0 0.0
    %1806 = vmatprep.subr.mxu0 0.0
    %1807 = vmatpush1.msra.mxu0 0.0
    %1808 = vmatprep.subr.mxu0 0.0
    %1809 = vmatpush1.msra.mxu0 0.0
    %1810 = vmatprep.subr.mxu0 0.0
    %1811 = vmatpush1.msra.mxu0 0.0
    %1812 = vmatprep.subr.mxu0 0.0
    %1813 = vmatpush1.msra.mxu0 0.0
    %1814 = vmatprep.subr.mxu0 0.0
    %1815 = vmatpush1.msra.mxu0 0.0
    %1816 = vmatprep.subr.mxu0 0.0
    %1817 = vmatpush1.msra.mxu0 0.0
    %1818 = vmatprep.subr.mxu0 0.0
    %1819 = vmatpush1.msra.mxu0 0.0
    %1820 = vmatprep.subr.mxu0 0.0
    %1821 = vmatpush1.msra.mxu0 0.0
    %1822 = vmatprep.mubr.f32.mxu0 0.0
    %1823 = vmatmul.mubr.f32.gmra.mrb[0].mxu0 %v1598
    %v1824 = vpop.f32.mrb[0].mxu0
    %v1825 = vadd.f32 0.0, %v1824
    %v1826 = vpop.f32.mrb[0].mxu0
    %v1827 = vadd.f32 0.0, %v1826
    %1828 = vdwg.mxu0
    %1829 = vmatprep.subr.mxu0 0.0
    %1830 = vmatpush1.msra.mxu0 %v1611
    %1831 = vmatprep.subr.mxu0 0.0
    %1832 = vmatpush1.msra.mxu0 %v1616
    %1833 = vmatprep.subr.mxu0 0.0
    %1834 = vmatpush1.msra.mxu0 %v1621
    %1835 = vmatprep.subr.mxu0 0.0
    %1836 = vmatpush1.msra.mxu0 %v1626
    %1837 = vmatprep.subr.mxu0 0.0
    %1838 = vmatpush1.msra.mxu0 %v1631
    %1839 = vmatprep.subr.mxu0 0.0
    %1840 = vmatpush1.msra.mxu0 %v1636
    %1841 = vmatprep.subr.mxu0 0.0
    %1842 = vmatpush1.msra.mxu0 %v1641
    %1843 = vmatprep.subr.mxu0 0.0
    %1844 = vmatpush1.msra.mxu0 %v1646
    %1845 = vmatprep.subr.mxu0 0.0
    %1846 = vmatpush1.msra.mxu0 %v1651
    %1847 = vmatprep.subr.mxu0 0.0
    %1848 = vmatpush1.msra.mxu0 %v1656
    %1849 = vmatprep.subr.mxu0 0.0
    %1850 = vmatpush1.msra.mxu0 %v1661
    %1851 = vmatprep.subr.mxu0 0.0
    %1852 = vmatpush1.msra.mxu0 %v1666
    %1853 = vmatprep.subr.mxu0 0.0
    %1854 = vmatpush1.msra.mxu0 %v1671
    %1855 = vmatprep.subr.mxu0 0.0
    %1856 = vmatpush1.msra.mxu0 %v1676
    %1857 = vmatprep.subr.mxu0 0.0
    %1858 = vmatpush1.msra.mxu0 %v1681
    %1859 = vmatprep.subr.mxu0 0.0
    %1860 = vmatpush1.msra.mxu0 %v1686
    %1861 = vmatprep.subr.mxu0 0.0
    %1862 = vmatpush1.msra.mxu0 0.0
    %1863 = vmatprep.subr.mxu0 0.0
    %1864 = vmatpush1.msra.mxu0 0.0
    %1865 = vmatprep.subr.mxu0 0.0
    %1866 = vmatpush1.msra.mxu0 0.0
    %1867 = vmatprep.subr.mxu0 0.0
    %1868 = vmatpush1.msra.mxu0 0.0
    %1869 = vmatprep.subr.mxu0 0.0
    %1870 = vmatpush1.msra.mxu0 0.0
    %1871 = vmatprep.subr.mxu0 0.0
    %1872 = vmatpush1.msra.mxu0 0.0
    %1873 = vmatprep.subr.mxu0 0.0
    %1874 = vmatpush1.msra.mxu0 0.0
    %1875 = vmatprep.subr.mxu0 0.0
    %1876 = vmatpush1.msra.mxu0 0.0
    %1877 = vmatprep.subr.mxu0 0.0
    %1878 = vmatpush1.msra.mxu0 0.0
    %1879 = vmatprep.subr.mxu0 0.0
    %1880 = vmatpush1.msra.mxu0 0.0
    %1881 = vmatprep.subr.mxu0 0.0
    %1882 = vmatpush1.msra.mxu0 0.0
    %1883 = vmatprep.subr.mxu0 0.0
    %1884 = vmatpush1.msra.mxu0 0.0
    %1885 = vmatprep.subr.mxu0 0.0
    %1886 = vmatpush1.msra.mxu0 0.0
    %1887 = vmatprep.subr.mxu0 0.0
    %1888 = vmatpush1.msra.mxu0 0.0
    %1889 = vmatprep.subr.mxu0 0.0
    %1890 = vmatpush1.msra.mxu0 0.0
    %1891 = vmatprep.subr.mxu0 0.0
    %1892 = vmatpush1.msra.mxu0 0.0
    %1893 = vmatprep.mubr.f32.mxu0 0.0
    %1894 = vmatmul.mubr.f32.gmra.mrb[0].mxu0 %v1598
    %v1895 = vpop.f32.mrb[0].mxu0
    %v1896 = vadd.f32 0.0, %v1895
    %v1897 = vpop.f32.mrb[0].mxu0
    %1898 = vdwg.mxu0
    %v1899 = vadd.f32 %v1602, %v1754
    %v1900 = vadd.f32 %v1603, %v1756
    %v1901 = vadd.f32 %v1604, %v1825
    %v1902 = vadd.f32 %v1605, %v1827
    %v1903 = vadd.f32 %v1606, %v1896
    %v1904 = vxor.u32 %v1899, 2147483648
    %v1905 = vmul.f32 %v1904, 1.442695
    %v1906 = vpow.pop %v1905
    %v1907 = vadd.f32 %v1906, 1.0
    %v1908 = vrcp.pop %v1907
    %v1909 = vmul.f32 1.0, %v1908
    %v1910 = vxor.u32 %v1900, 2147483648
    %v1911 = vmul.f32 %v1910, 1.442695
    %v1912 = vpow.pop %v1911
    %v1913 = vadd.f32 %v1912, 1.0
    %v1914 = vrcp.pop %v1913
    %v1915 = vmul.f32 1.0, %v1914
    %v1916 = vxor.u32 %v1901, 2147483648
    %v1917 = vmul.f32 %v1916, 1.442695
    %v1918 = vpow.pop %v1917
    %v1919 = vadd.f32 %v1918, 1.0
    %v1920 = vrcp.pop %v1919
    %v1921 = vmul.f32 1.0, %v1920
    %v1922 = vtanh.pop %v1902
    %v1923 = vxor.u32 %v1903, 2147483648
    %v1924 = vmul.f32 %v1923, 1.442695
    %v1925 = vpow.pop %v1924
    %v1926 = vadd.f32 %v1925, 1.0
    %v1927 = vrcp.pop %v1926
    %v1928 = vmul.f32 1.0, %v1927
    %v1929 = vmul.f32 %v1928, %v1506
    %v1930 = vmul.f32 %v1915, %v1596
    %v1931 = vmul.f32 %v1909, %v1922
    %v1932 = vadd.f32 %v1930, %v1931
    %v1933 = vld [vmem:[#allocation5] sm:$0xff]
    %v1934 = vld [vmem:[#allocation5 + $0x8] sm:$0xff]
    %v1935 = vld [vmem:[#allocation5 + $0x10] sm:$0xff]
    %v1936 = vld [vmem:[#allocation5 + $0x18] sm:$0xff]
    %v1937 = vld [vmem:[#allocation5 + $0x20] sm:$0xff]
    %v1938 = vld [vmem:[#allocation5 + $0x28] sm:$0xff]
    %v1939 = vld [vmem:[#allocation5 + $0x30] sm:$0xff]
    %v1940 = vld [vmem:[#allocation5 + $0x38] sm:$0xff]
    %v1941 = vld [vmem:[#allocation5 + $0x40] sm:$0xff]
    %v1942 = vld [vmem:[#allocation5 + $0x48] sm:$0xff]
    %v1943 = vld [vmem:[#allocation5 + $0x50] sm:$0xff]
    %v1944 = vld [vmem:[#allocation5 + $0x58] sm:$0xff]
    %v1945 = vld [vmem:[#allocation5 + $0x60] sm:$0xff]
    %v1946 = vld [vmem:[#allocation5 + $0x68] sm:$0xff]
    %v1947 = vld [vmem:[#allocation5 + $0x70] sm:$0xff]
    %v1948 = vld [vmem:[#allocation5 + $0x78] sm:$0xff]
    %1949 = vmatprep.subr.mxu0 0.0
    %1950 = vmatpush1.msra.mxu0 %v1933
    %1951 = vmatprep.subr.mxu0 0.0
    %1952 = vmatpush1.msra.mxu0 %v1934
    %1953 = vmatprep.subr.mxu0 0.0
    %1954 = vmatpush1.msra.mxu0 %v1935
    %1955 = vmatprep.subr.mxu0 0.0
    %1956 = vmatpush1.msra.mxu0 %v1936
    %1957 = vmatprep.subr.mxu0 0.0
    %1958 = vmatpush1.msra.mxu0 %v1937
    %1959 = vmatprep.subr.mxu0 0.0
    %1960 = vmatpush1.msra.mxu0 %v1938
    %1961 = vmatprep.subr.mxu0 0.0
    %1962 = vmatpush1.msra.mxu0 %v1939
    %1963 = vmatprep.subr.mxu0 0.0
    %1964 = vmatpush1.msra.mxu0 %v1940
    %1965 = vmatprep.subr.mxu0 0.0
    %1966 = vmatpush1.msra.mxu0 %v1941
    %1967 = vmatprep.subr.mxu0 0.0
    %1968 = vmatpush1.msra.mxu0 %v1942
    %1969 = vmatprep.subr.mxu0 0.0
    %1970 = vmatpush1.msra.mxu0 %v1943
    %1971 = vmatprep.subr.mxu0 0.0
    %1972 = vmatpush1.msra.mxu0 %v1944
    %1973 = vmatprep.subr.mxu0 0.0
    %1974 = vmatpush1.msra.mxu0 %v1945
    %1975 = vmatprep.subr.mxu0 0.0
    %1976 = vmatpush1.msra.mxu0 %v1946
    %1977 = vmatprep.subr.mxu0 0.0
    %1978 = vmatpush1.msra.mxu0 %v1947
    %1979 = vmatprep.subr.mxu0 0.0
    %1980 = vmatpush1.msra.mxu0 %v1948
    %1981 = vmatprep.subr.mxu0 0.0
    %1982 = vmatpush1.msra.mxu0 0.0
    %1983 = vmatprep.subr.mxu0 0.0
    %1984 = vmatpush1.msra.mxu0 0.0
    %1985 = vmatprep.subr.mxu0 0.0
    %1986 = vmatpush1.msra.mxu0 0.0
    %1987 = vmatprep.subr.mxu0 0.0
    %1988 = vmatpush1.msra.mxu0 0.0
    %1989 = vmatprep.subr.mxu0 0.0
    %1990 = vmatpush1.msra.mxu0 0.0
    %1991 = vmatprep.subr.mxu0 0.0
    %1992 = vmatpush1.msra.mxu0 0.0
    %1993 = vmatprep.subr.mxu0 0.0
    %1994 = vmatpush1.msra.mxu0 0.0
    %1995 = vmatprep.subr.mxu0 0.0
    %1996 = vmatpush1.msra.mxu0 0.0
    %1997 = vmatprep.subr.mxu0 0.0
    %1998 = vmatpush1.msra.mxu0 0.0
    %1999 = vmatprep.subr.mxu0 0.0
    %2000 = vmatpush1.msra.mxu0 0.0
    %2001 = vmatprep.subr.mxu0 0.0
    %2002 = vmatpush1.msra.mxu0 0.0
    %2003 = vmatprep.subr.mxu0 0.0
    %2004 = vmatpush1.msra.mxu0 0.0
    %2005 = vmatprep.subr.mxu0 0.0
    %2006 = vmatpush1.msra.mxu0 0.0
    %2007 = vmatprep.subr.mxu0 0.0
    %2008 = vmatpush1.msra.mxu0 0.0
    %2009 = vmatprep.subr.mxu0 0.0
    %2010 = vmatpush1.msra.mxu0 0.0
    %2011 = vmatprep.subr.mxu0 0.0
    %2012 = vmatpush1.msra.mxu0 0.0
    %2013 = vmatprep.mubr.f32.mxu0 0.0
    %2014 = vmatmul.mubr.f32.gmra.mrb[0].mxu0 %v1929
    %v2015 = vpop.f32.mrb[0].mxu0
    %v2016 = vadd.f32 0.0, %v2015
    %v2017 = vpop.f32.mrb[0].mxu0
    %2018 = vdwg.mxu0
    %v2019 = vadd.f32 %v1932, %v2016
    %v2020 = vtanh.pop %v2019
    %v2021 = vmul.f32 %v1921, %v2020
    %s2022 = scalar_lea.vmem [#allocation12], 16
    %2023 = vst [vmem:[%s2022] sm:$0xff] %v2021
    %s2024 = scalar_lea.vmem [#allocation11], 120
    %v2025 = vld [vmem:[%s2024] sm:$0xff]
    %v2026 = vld [vmem:[%s2024 + $0x8] sm:$0xff]
    %v2027 = vld [vmem:[%s2024 + $0x10] sm:$0xff]
    %v2028 = vld [vmem:[%s2024 + $0x18] sm:$0xff]
    %v2029 = vld [vmem:[%s2024 + $0x20] sm:$0xff]
    %v2030 = vld [vmem:[#allocation3] sm:$0xff]
    %v2031 = vld [vmem:[#allocation3 + $0x8] sm:$0xff]
    %v2032 = vld [vmem:[#allocation3 + $0x10] sm:$0xff]
    %v2033 = vld [vmem:[#allocation3 + $0x18] sm:$0xff]
    %v2034 = vld [vmem:[#allocation3 + $0x20] sm:$0xff]
    %v2035 = vld [vmem:[#allocation3 + $0x28] sm:$0xff]
    %v2036 = vld [vmem:[#allocation3 + $0x30] sm:$0xff]
    %v2037 = vld [vmem:[#allocation3 + $0x38] sm:$0xff]
    %v2038 = vld [vmem:[#allocation3 + $0x40] sm:$0xff]
    %v2039 = vld [vmem:[#allocation3 + $0x48] sm:$0xff]
    %v2040 = vld [vmem:[#allocation3 + $0x50] sm:$0xff]
    %v2041 = vld [vmem:[#allocation3 + $0x58] sm:$0xff]
    %v2042 = vld [vmem:[#allocation3 + $0x60] sm:$0xff]
    %v2043 = vld [vmem:[#allocation3 + $0x68] sm:$0xff]
    %v2044 = vld [vmem:[#allocation3 + $0x70] sm:$0xff]
    %v2045 = vld [vmem:[#allocation3 + $0x78] sm:$0xff]
    %v2046 = vld [vmem:[#allocation3 + $0x80] sm:$0xff]
    %v2047 = vld [vmem:[#allocation3 + $0x88] sm:$0xff]
    %v2048 = vld [vmem:[#allocation3 + $0x90] sm:$0xff]
    %v2049 = vld [vmem:[#allocation3 + $0x98] sm:$0xff]
    %v2050 = vld [vmem:[#allocation3 + $0xa0] sm:$0xff]
    %v2051 = vld [vmem:[#allocation3 + $0xa8] sm:$0xff]
    %v2052 = vld [vmem:[#allocation3 + $0xb0] sm:$0xff]
    %v2053 = vld [vmem:[#allocation3 + $0xb8] sm:$0xff]
    %v2054 = vld [vmem:[#allocation3 + $0xc0] sm:$0xff]
    %v2055 = vld [vmem:[#allocation3 + $0xc8] sm:$0xff]
    %v2056 = vld [vmem:[#allocation3 + $0xd0] sm:$0xff]
    %v2057 = vld [vmem:[#allocation3 + $0xd8] sm:$0xff]
    %v2058 = vld [vmem:[#allocation3 + $0xe0] sm:$0xff]
    %v2059 = vld [vmem:[#allocation3 + $0xe8] sm:$0xff]
    %v2060 = vld [vmem:[#allocation3 + $0xf0] sm:$0xff]
    %v2061 = vld [vmem:[#allocation3 + $0xf8] sm:$0xff]
    %v2062 = vld [vmem:[#allocation3 + $0x100] sm:$0xff]
    %v2063 = vld [vmem:[#allocation3 + $0x108] sm:$0xff]
    %v2064 = vld [vmem:[#allocation3 + $0x110] sm:$0xff]
    %v2065 = vld [vmem:[#allocation3 + $0x118] sm:$0xff]
    %v2066 = vld [vmem:[#allocation3 + $0x120] sm:$0xff]
    %v2067 = vld [vmem:[#allocation3 + $0x128] sm:$0xff]
    %v2068 = vld [vmem:[#allocation3 + $0x130] sm:$0xff]
    %v2069 = vld [vmem:[#allocation3 + $0x138] sm:$0xff]
    %v2070 = vld [vmem:[#allocation3 + $0x140] sm:$0xff]
    %v2071 = vld [vmem:[#allocation3 + $0x148] sm:$0xff]
    %v2072 = vld [vmem:[#allocation3 + $0x150] sm:$0xff]
    %v2073 = vld [vmem:[#allocation3 + $0x158] sm:$0xff]
    %v2074 = vld [vmem:[#allocation3 + $0x160] sm:$0xff]
    %v2075 = vld [vmem:[#allocation3 + $0x168] sm:$0xff]
    %v2076 = vld [vmem:[#allocation3 + $0x170] sm:$0xff]
    %v2077 = vld [vmem:[#allocation3 + $0x178] sm:$0xff]
    %v2078 = vld [vmem:[#allocation3 + $0x180] sm:$0xff]
    %v2079 = vld [vmem:[#allocation3 + $0x188] sm:$0xff]
    %v2080 = vld [vmem:[#allocation3 + $0x190] sm:$0xff]
    %v2081 = vld [vmem:[#allocation3 + $0x198] sm:$0xff]
    %v2082 = vld [vmem:[#allocation3 + $0x1a0] sm:$0xff]
    %v2083 = vld [vmem:[#allocation3 + $0x1a8] sm:$0xff]
    %v2084 = vld [vmem:[#allocation3 + $0x1b0] sm:$0xff]
    %v2085 = vld [vmem:[#allocation3 + $0x1b8] sm:$0xff]
    %v2086 = vld [vmem:[#allocation3 + $0x1c0] sm:$0xff]
    %v2087 = vld [vmem:[#allocation3 + $0x1c8] sm:$0xff]
    %v2088 = vld [vmem:[#allocation3 + $0x1d0] sm:$0xff]
    %v2089 = vld [vmem:[#allocation3 + $0x1d8] sm:$0xff]
    %v2090 = vld [vmem:[#allocation3 + $0x1e0] sm:$0xff]
    %v2091 = vld [vmem:[#allocation3 + $0x1e8] sm:$0xff]
    %v2092 = vld [vmem:[#allocation3 + $0x1f0] sm:$0xff]
    %v2093 = vld [vmem:[#allocation3 + $0x1f8] sm:$0xff]
    %v2094 = vld [vmem:[#allocation3 + $0x200] sm:$0xff]
    %v2095 = vld [vmem:[#allocation3 + $0x208] sm:$0xff]
    %v2096 = vld [vmem:[#allocation3 + $0x210] sm:$0xff]
    %v2097 = vld [vmem:[#allocation3 + $0x218] sm:$0xff]
    %v2098 = vld [vmem:[#allocation3 + $0x220] sm:$0xff]
    %v2099 = vld [vmem:[#allocation3 + $0x228] sm:$0xff]
    %v2100 = vld [vmem:[#allocation3 + $0x230] sm:$0xff]
    %v2101 = vld [vmem:[#allocation3 + $0x238] sm:$0xff]
    %v2102 = vld [vmem:[#allocation3 + $0x240] sm:$0xff]
    %v2103 = vld [vmem:[#allocation3 + $0x248] sm:$0xff]
    %v2104 = vld [vmem:[#allocation3 + $0x250] sm:$0xff]
    %v2105 = vld [vmem:[#allocation3 + $0x258] sm:$0xff]
    %v2106 = vld [vmem:[#allocation3 + $0x260] sm:$0xff]
    %v2107 = vld [vmem:[#allocation3 + $0x268] sm:$0xff]
    %v2108 = vld [vmem:[#allocation3 + $0x270] sm:$0xff]
    %v2109 = vld [vmem:[#allocation3 + $0x278] sm:$0xff]
    %2110 = vmatprep.subr.mxu0 %v2031
    %2111 = vmatpush1.msra.mxu0 %v2030
    %2112 = vmatprep.subr.mxu0 %v2036
    %2113 = vmatpush1.msra.mxu0 %v2035
    %2114 = vmatprep.subr.mxu0 %v2041
    %2115 = vmatpush1.msra.mxu0 %v2040
    %2116 = vmatprep.subr.mxu0 %v2046
    %2117 = vmatpush1.msra.mxu0 %v2045
    %2118 = vmatprep.subr.mxu0 %v2051
    %2119 = vmatpush1.msra.mxu0 %v2050
    %2120 = vmatprep.subr.mxu0 %v2056
    %2121 = vmatpush1.msra.mxu0 %v2055
    %2122 = vmatprep.subr.mxu0 %v2061
    %2123 = vmatpush1.msra.mxu0 %v2060
    %2124 = vmatprep.subr.mxu0 %v2066
    %2125 = vmatpush1.msra.mxu0 %v2065
    %2126 = vmatprep.subr.mxu0 %v2071
    %2127 = vmatpush1.msra.mxu0 %v2070
    %2128 = vmatprep.subr.mxu0 %v2076
    %2129 = vmatpush1.msra.mxu0 %v2075
    %2130 = vmatprep.subr.mxu0 %v2081
    %2131 = vmatpush1.msra.mxu0 %v2080
    %2132 = vmatprep.subr.mxu0 %v2086
    %2133 = vmatpush1.msra.mxu0 %v2085
    %2134 = vmatprep.subr.mxu0 %v2091
    %2135 = vmatpush1.msra.mxu0 %v2090
    %2136 = vmatprep.subr.mxu0 %v2096
    %2137 = vmatpush1.msra.mxu0 %v2095
    %2138 = vmatprep.subr.mxu0 %v2101
    %2139 = vmatpush1.msra.mxu0 %v2100
    %2140 = vmatprep.subr.mxu0 %v2106
    %2141 = vmatpush1.msra.mxu0 %v2105
    %2142 = vmatprep.subr.mxu0 0.0
    %2143 = vmatpush1.msra.mxu0 0.0
    %2144 = vmatprep.subr.mxu0 0.0
    %2145 = vmatpush1.msra.mxu0 0.0
    %2146 = vmatprep.subr.mxu0 0.0
    %2147 = vmatpush1.msra.mxu0 0.0
    %2148 = vmatprep.subr.mxu0 0.0
    %2149 = vmatpush1.msra.mxu0 0.0
    %2150 = vmatprep.subr.mxu0 0.0
    %2151 = vmatpush1.msra.mxu0 0.0
    %2152 = vmatprep.subr.mxu0 0.0
    %2153 = vmatpush1.msra.mxu0 0.0
    %2154 = vmatprep.subr.mxu0 0.0
    %2155 = vmatpush1.msra.mxu0 0.0
    %2156 = vmatprep.subr.mxu0 0.0
    %2157 = vmatpush1.msra.mxu0 0.0
    %2158 = vmatprep.subr.mxu0 0.0
    %2159 = vmatpush1.msra.mxu0 0.0
    %2160 = vmatprep.subr.mxu0 0.0
    %2161 = vmatpush1.msra.mxu0 0.0
    %2162 = vmatprep.subr.mxu0 0.0
    %2163 = vmatpush1.msra.mxu0 0.0
    %2164 = vmatprep.subr.mxu0 0.0
    %2165 = vmatpush1.msra.mxu0 0.0
    %2166 = vmatprep.subr.mxu0 0.0
    %2167 = vmatpush1.msra.mxu0 0.0
    %2168 = vmatprep.subr.mxu0 0.0
    %2169 = vmatpush1.msra.mxu0 0.0
    %2170 = vmatprep.subr.mxu0 0.0
    %2171 = vmatpush1.msra.mxu0 0.0
    %2172 = vmatprep.subr.mxu0 0.0
    %2173 = vmatpush1.msra.mxu0 0.0
    %2174 = vmatprep.mubr.f32.mxu0 0.0
    %2175 = vmatmul.mubr.f32.gmra.mrb[0].mxu0 %v2021
    %v2176 = vpop.f32.mrb[0].mxu0
    %v2177 = vadd.f32 0.0, %v2176
    %v2178 = vpop.f32.mrb[0].mxu0
    %v2179 = vadd.f32 0.0, %v2178
    %2180 = vdwg.mxu0
    %2181 = vmatprep.subr.mxu0 %v2033
    %2182 = vmatpush1.msra.mxu0 %v2032
    %2183 = vmatprep.subr.mxu0 %v2038
    %2184 = vmatpush1.msra.mxu0 %v2037
    %2185 = vmatprep.subr.mxu0 %v2043
    %2186 = vmatpush1.msra.mxu0 %v2042
    %2187 = vmatprep.subr.mxu0 %v2048
    %2188 = vmatpush1.msra.mxu0 %v2047
    %2189 = vmatprep.subr.mxu0 %v2053
    %2190 = vmatpush1.msra.mxu0 %v2052
    %2191 = vmatprep.subr.mxu0 %v2058
    %2192 = vmatpush1.msra.mxu0 %v2057
    %2193 = vmatprep.subr.mxu0 %v2063
    %2194 = vmatpush1.msra.mxu0 %v2062
    %2195 = vmatprep.subr.mxu0 %v2068
    %2196 = vmatpush1.msra.mxu0 %v2067
    %2197 = vmatprep.subr.mxu0 %v2073
    %2198 = vmatpush1.msra.mxu0 %v2072
    %2199 = vmatprep.subr.mxu0 %v2078
    %2200 = vmatpush1.msra.mxu0 %v2077
    %2201 = vmatprep.subr.mxu0 %v2083
    %2202 = vmatpush1.msra.mxu0 %v2082
    %2203 = vmatprep.subr.mxu0 %v2088
    %2204 = vmatpush1.msra.mxu0 %v2087
    %2205 = vmatprep.subr.mxu0 %v2093
    %2206 = vmatpush1.msra.mxu0 %v2092
    %2207 = vmatprep.subr.mxu0 %v2098
    %2208 = vmatpush1.msra.mxu0 %v2097
    %2209 = vmatprep.subr.mxu0 %v2103
    %2210 = vmatpush1.msra.mxu0 %v2102
    %2211 = vmatprep.subr.mxu0 %v2108
    %2212 = vmatpush1.msra.mxu0 %v2107
    %2213 = vmatprep.subr.mxu0 0.0
    %2214 = vmatpush1.msra.mxu0 0.0
    %2215 = vmatprep.subr.mxu0 0.0
    %2216 = vmatpush1.msra.mxu0 0.0
    %2217 = vmatprep.subr.mxu0 0.0
    %2218 = vmatpush1.msra.mxu0 0.0
    %2219 = vmatprep.subr.mxu0 0.0
    %2220 = vmatpush1.msra.mxu0 0.0
    %2221 = vmatprep.subr.mxu0 0.0
    %2222 = vmatpush1.msra.mxu0 0.0
    %2223 = vmatprep.subr.mxu0 0.0
    %2224 = vmatpush1.msra.mxu0 0.0
    %2225 = vmatprep.subr.mxu0 0.0
    %2226 = vmatpush1.msra.mxu0 0.0
    %2227 = vmatprep.subr.mxu0 0.0
    %2228 = vmatpush1.msra.mxu0 0.0
    %2229 = vmatprep.subr.mxu0 0.0
    %2230 = vmatpush1.msra.mxu0 0.0
    %2231 = vmatprep.subr.mxu0 0.0
    %2232 = vmatpush1.msra.mxu0 0.0
    %2233 = vmatprep.subr.mxu0 0.0
    %2234 = vmatpush1.msra.mxu0 0.0
    %2235 = vmatprep.subr.mxu0 0.0
    %2236 = vmatpush1.msra.mxu0 0.0
    %2237 = vmatprep.subr.mxu0 0.0
    %2238 = vmatpush1.msra.mxu0 0.0
    %2239 = vmatprep.subr.mxu0 0.0
    %2240 = vmatpush1.msra.mxu0 0.0
    %2241 = vmatprep.subr.mxu0 0.0
    %2242 = vmatpush1.msra.mxu0 0.0
    %2243 = vmatprep.subr.mxu0 0.0
    %2244 = vmatpush1.msra.mxu0 0.0
    %2245 = vmatprep.mubr.f32.mxu0 0.0
    %2246 = vmatmul.mubr.f32.gmra.mrb[0].mxu0 %v2021
    %v2247 = vpop.f32.mrb[0].mxu0
    %v2248 = vadd.f32 0.0, %v2247
    %v2249 = vpop.f32.mrb[0].mxu0
    %v2250 = vadd.f32 0.0, %v2249
    %2251 = vdwg.mxu0
    %2252 = vmatprep.subr.mxu0 0.0
    %2253 = vmatpush1.msra.mxu0 %v2034
    %2254 = vmatprep.subr.mxu0 0.0
    %2255 = vmatpush1.msra.mxu0 %v2039
    %2256 = vmatprep.subr.mxu0 0.0
    %2257 = vmatpush1.msra.mxu0 %v2044
    %2258 = vmatprep.subr.mxu0 0.0
    %2259 = vmatpush1.msra.mxu0 %v2049
    %2260 = vmatprep.subr.mxu0 0.0
    %2261 = vmatpush1.msra.mxu0 %v2054
    %2262 = vmatprep.subr.mxu0 0.0
    %2263 = vmatpush1.msra.mxu0 %v2059
    %2264 = vmatprep.subr.mxu0 0.0
    %2265 = vmatpush1.msra.mxu0 %v2064
    %2266 = vmatprep.subr.mxu0 0.0
    %2267 = vmatpush1.msra.mxu0 %v2069
    %2268 = vmatprep.subr.mxu0 0.0
    %2269 = vmatpush1.msra.mxu0 %v2074
    %2270 = vmatprep.subr.mxu0 0.0
    %2271 = vmatpush1.msra.mxu0 %v2079
    %2272 = vmatprep.subr.mxu0 0.0
    %2273 = vmatpush1.msra.mxu0 %v2084
    %2274 = vmatprep.subr.mxu0 0.0
    %2275 = vmatpush1.msra.mxu0 %v2089
    %2276 = vmatprep.subr.mxu0 0.0
    %2277 = vmatpush1.msra.mxu0 %v2094
    %2278 = vmatprep.subr.mxu0 0.0
    %2279 = vmatpush1.msra.mxu0 %v2099
    %2280 = vmatprep.subr.mxu0 0.0
    %2281 = vmatpush1.msra.mxu0 %v2104
    %2282 = vmatprep.subr.mxu0 0.0
    %2283 = vmatpush1.msra.mxu0 %v2109
    %2284 = vmatprep.subr.mxu0 0.0
    %2285 = vmatpush1.msra.mxu0 0.0
    %2286 = vmatprep.subr.mxu0 0.0
    %2287 = vmatpush1.msra.mxu0 0.0
    %2288 = vmatprep.subr.mxu0 0.0
    %2289 = vmatpush1.msra.mxu0 0.0
    %2290 = vmatprep.subr.mxu0 0.0
    %2291 = vmatpush1.msra.mxu0 0.0
    %2292 = vmatprep.subr.mxu0 0.0
    %2293 = vmatpush1.msra.mxu0 0.0
    %2294 = vmatprep.subr.mxu0 0.0
    %2295 = vmatpush1.msra.mxu0 0.0
    %2296 = vmatprep.subr.mxu0 0.0
    %2297 = vmatpush1.msra.mxu0 0.0
    %2298 = vmatprep.subr.mxu0 0.0
    %2299 = vmatpush1.msra.mxu0 0.0
    %2300 = vmatprep.subr.mxu0 0.0
    %2301 = vmatpush1.msra.mxu0 0.0
    %2302 = vmatprep.subr.mxu0 0.0
    %2303 = vmatpush1.msra.mxu0 0.0
    %2304 = vmatprep.subr.mxu0 0.0
    %2305 = vmatpush1.msra.mxu0 0.0
    %2306 = vmatprep.subr.mxu0 0.0
    %2307 = vmatpush1.msra.mxu0 0.0
    %2308 = vmatprep.subr.mxu0 0.0
    %2309 = vmatpush1.msra.mxu0 0.0
    %2310 = vmatprep.subr.mxu0 0.0
    %2311 = vmatpush1.msra.mxu0 0.0
    %2312 = vmatprep.subr.mxu0 0.0
    %2313 = vmatpush1.msra.mxu0 0.0
    %2314 = vmatprep.subr.mxu0 0.0
    %2315 = vmatpush1.msra.mxu0 0.0
    %2316 = vmatprep.mubr.f32.mxu0 0.0
    %2317 = vmatmul.mubr.f32.gmra.mrb[0].mxu0 %v2021
    %v2318 = vpop.f32.mrb[0].mxu0
    %v2319 = vadd.f32 0.0, %v2318
    %v2320 = vpop.f32.mrb[0].mxu0
    %2321 = vdwg.mxu0
    %v2322 = vadd.f32 %v2025, %v2177
    %v2323 = vadd.f32 %v2026, %v2179
    %v2324 = vadd.f32 %v2027, %v2248
    %v2325 = vadd.f32 %v2028, %v2250
    %v2326 = vadd.f32 %v2029, %v2319
    %v2327 = vxor.u32 %v2322, 2147483648
    %v2328 = vmul.f32 %v2327, 1.442695
    %v2329 = vpow.pop %v2328
    %v2330 = vadd.f32 %v2329, 1.0
    %v2331 = vrcp.pop %v2330
    %v2332 = vmul.f32 1.0, %v2331
    %v2333 = vxor.u32 %v2323, 2147483648
    %v2334 = vmul.f32 %v2333, 1.442695
    %v2335 = vpow.pop %v2334
    %v2336 = vadd.f32 %v2335, 1.0
    %v2337 = vrcp.pop %v2336
    %v2338 = vmul.f32 1.0, %v2337
    %v2339 = vxor.u32 %v2324, 2147483648
    %v2340 = vmul.f32 %v2339, 1.442695
    %v2341 = vpow.pop %v2340
    %v2342 = vadd.f32 %v2341, 1.0
    %v2343 = vrcp.pop %v2342
    %v2344 = vmul.f32 1.0, %v2343
    %v2345 = vtanh.pop %v2325
    %v2346 = vxor.u32 %v2326, 2147483648
    %v2347 = vmul.f32 %v2346, 1.442695
    %v2348 = vpow.pop %v2347
    %v2349 = vadd.f32 %v2348, 1.0
    %v2350 = vrcp.pop %v2349
    %v2351 = vmul.f32 1.0, %v2350
    %v2352 = vmul.f32 %v2351, %v1929
    %v2353 = vmul.f32 %v2338, %v2019
    %v2354 = vmul.f32 %v2332, %v2345
    %v2355 = vadd.f32 %v2353, %v2354
    %v2356 = vld [vmem:[#allocation5] sm:$0xff]
    %v2357 = vld [vmem:[#allocation5 + $0x8] sm:$0xff]
    %v2358 = vld [vmem:[#allocation5 + $0x10] sm:$0xff]
    %v2359 = vld [vmem:[#allocation5 + $0x18] sm:$0xff]
    %v2360 = vld [vmem:[#allocation5 + $0x20] sm:$0xff]
    %v2361 = vld [vmem:[#allocation5 + $0x28] sm:$0xff]
    %v2362 = vld [vmem:[#allocation5 + $0x30] sm:$0xff]
    %v2363 = vld [vmem:[#allocation5 + $0x38] sm:$0xff]
    %v2364 = vld [vmem:[#allocation5 + $0x40] sm:$0xff]
    %v2365 = vld [vmem:[#allocation5 + $0x48] sm:$0xff]
    %v2366 = vld [vmem:[#allocation5 + $0x50] sm:$0xff]
    %v2367 = vld [vmem:[#allocation5 + $0x58] sm:$0xff]
    %v2368 = vld [vmem:[#allocation5 + $0x60] sm:$0xff]
    %v2369 = vld [vmem:[#allocation5 + $0x68] sm:$0xff]
    %v2370 = vld [vmem:[#allocation5 + $0x70] sm:$0xff]
    %v2371 = vld [vmem:[#allocation5 + $0x78] sm:$0xff]
    %2372 = vmatprep.subr.mxu0 0.0
    %2373 = vmatpush1.msra.mxu0 %v2356
    %2374 = vmatprep.subr.mxu0 0.0
    %2375 = vmatpush1.msra.mxu0 %v2357
    %2376 = vmatprep.subr.mxu0 0.0
    %2377 = vmatpush1.msra.mxu0 %v2358
    %2378 = vmatprep.subr.mxu0 0.0
    %2379 = vmatpush1.msra.mxu0 %v2359
    %2380 = vmatprep.subr.mxu0 0.0
    %2381 = vmatpush1.msra.mxu0 %v2360
    %2382 = vmatprep.subr.mxu0 0.0
    %2383 = vmatpush1.msra.mxu0 %v2361
    %2384 = vmatprep.subr.mxu0 0.0
    %2385 = vmatpush1.msra.mxu0 %v2362
    %2386 = vmatprep.subr.mxu0 0.0
    %2387 = vmatpush1.msra.mxu0 %v2363
    %2388 = vmatprep.subr.mxu0 0.0
    %2389 = vmatpush1.msra.mxu0 %v2364
    %2390 = vmatprep.subr.mxu0 0.0
    %2391 = vmatpush1.msra.mxu0 %v2365
    %2392 = vmatprep.subr.mxu0 0.0
    %2393 = vmatpush1.msra.mxu0 %v2366
    %2394 = vmatprep.subr.mxu0 0.0
    %2395 = vmatpush1.msra.mxu0 %v2367
    %2396 = vmatprep.subr.mxu0 0.0
    %2397 = vmatpush1.msra.mxu0 %v2368
    %2398 = vmatprep.subr.mxu0 0.0
    %2399 = vmatpush1.msra.mxu0 %v2369
    %2400 = vmatprep.subr.mxu0 0.0
    %2401 = vmatpush1.msra.mxu0 %v2370
    %2402 = vmatprep.subr.mxu0 0.0
    %2403 = vmatpush1.msra.mxu0 %v2371
    %2404 = vmatprep.subr.mxu0 0.0
    %2405 = vmatpush1.msra.mxu0 0.0
    %2406 = vmatprep.subr.mxu0 0.0
    %2407 = vmatpush1.msra.mxu0 0.0
    %2408 = vmatprep.subr.mxu0 0.0
    %2409 = vmatpush1.msra.mxu0 0.0
    %2410 = vmatprep.subr.mxu0 0.0
    %2411 = vmatpush1.msra.mxu0 0.0
    %2412 = vmatprep.subr.mxu0 0.0
    %2413 = vmatpush1.msra.mxu0 0.0
    %2414 = vmatprep.subr.mxu0 0.0
    %2415 = vmatpush1.msra.mxu0 0.0
    %2416 = vmatprep.subr.mxu0 0.0
    %2417 = vmatpush1.msra.mxu0 0.0
    %2418 = vmatprep.subr.mxu0 0.0
    %2419 = vmatpush1.msra.mxu0 0.0
    %2420 = vmatprep.subr.mxu0 0.0
    %2421 = vmatpush1.msra.mxu0 0.0
    %2422 = vmatprep.subr.mxu0 0.0
    %2423 = vmatpush1.msra.mxu0 0.0
    %2424 = vmatprep.subr.mxu0 0.0
    %2425 = vmatpush1.msra.mxu0 0.0
    %2426 = vmatprep.subr.mxu0 0.0
    %2427 = vmatpush1.msra.mxu0 0.0
    %2428 = vmatprep.subr.mxu0 0.0
    %2429 = vmatpush1.msra.mxu0 0.0
    %2430 = vmatprep.subr.mxu0 0.0
    %2431 = vmatpush1.msra.mxu0 0.0
    %2432 = vmatprep.subr.mxu0 0.0
    %2433 = vmatpush1.msra.mxu0 0.0
    %2434 = vmatprep.subr.mxu0 0.0
    %2435 = vmatpush1.msra.mxu0 0.0
    %2436 = vmatprep.mubr.f32.mxu0 0.0
    %2437 = vmatmul.mubr.f32.gmra.mrb[0].mxu0 %v2352
    %v2438 = vpop.f32.mrb[0].mxu0
    %v2439 = vadd.f32 0.0, %v2438
    %v2440 = vpop.f32.mrb[0].mxu0
    %2441 = vdwg.mxu0
    %v2442 = vadd.f32 %v2355, %v2439
    %v2443 = vtanh.pop %v2442
    %v2444 = vmul.f32 %v2344, %v2443
    %s2445 = scalar_lea.vmem [#allocation12], 24
    %2446 = vst [vmem:[%s2445] sm:$0xff] %v2444
    %s2447 = scalar_lea.vmem [#allocation11], 160
    %v2448 = vld [vmem:[%s2447] sm:$0xff]
    %v2449 = vld [vmem:[%s2447 + $0x8] sm:$0xff]
    %v2450 = vld [vmem:[%s2447 + $0x10] sm:$0xff]
    %v2451 = vld [vmem:[%s2447 + $0x18] sm:$0xff]
    %v2452 = vld [vmem:[%s2447 + $0x20] sm:$0xff]
    %v2453 = vld [vmem:[#allocation3] sm:$0xff]
    %v2454 = vld [vmem:[#allocation3 + $0x8] sm:$0xff]
    %v2455 = vld [vmem:[#allocation3 + $0x10] sm:$0xff]
    %v2456 = vld [vmem:[#allocation3 + $0x18] sm:$0xff]
    %v2457 = vld [vmem:[#allocation3 + $0x20] sm:$0xff]
    %v2458 = vld [vmem:[#allocation3 + $0x28] sm:$0xff]
    %v2459 = vld [vmem:[#allocation3 + $0x30] sm:$0xff]
    %v2460 = vld [vmem:[#allocation3 + $0x38] sm:$0xff]
    %v2461 = vld [vmem:[#allocation3 + $0x40] sm:$0xff]
    %v2462 = vld [vmem:[#allocation3 + $0x48] sm:$0xff]
    %v2463 = vld [vmem:[#allocation3 + $0x50] sm:$0xff]
    %v2464 = vld [vmem:[#allocation3 + $0x58] sm:$0xff]
    %v2465 = vld [vmem:[#allocation3 + $0x60] sm:$0xff]
    %v2466 = vld [vmem:[#allocation3 + $0x68] sm:$0xff]
    %v2467 = vld [vmem:[#allocation3 + $0x70] sm:$0xff]
    %v2468 = vld [vmem:[#allocation3 + $0x78] sm:$0xff]
    %v2469 = vld [vmem:[#allocation3 + $0x80] sm:$0xff]
    %v2470 = vld [vmem:[#allocation3 + $0x88] sm:$0xff]
    %v2471 = vld [vmem:[#allocation3 + $0x90] sm:$0xff]
    %v2472 = vld [vmem:[#allocation3 + $0x98] sm:$0xff]
    %v2473 = vld [vmem:[#allocation3 + $0xa0] sm:$0xff]
    %v2474 = vld [vmem:[#allocation3 + $0xa8] sm:$0xff]
    %v2475 = vld [vmem:[#allocation3 + $0xb0] sm:$0xff]
    %v2476 = vld [vmem:[#allocation3 + $0xb8] sm:$0xff]
    %v2477 = vld [vmem:[#allocation3 + $0xc0] sm:$0xff]
    %v2478 = vld [vmem:[#allocation3 + $0xc8] sm:$0xff]
    %v2479 = vld [vmem:[#allocation3 + $0xd0] sm:$0xff]
    %v2480 = vld [vmem:[#allocation3 + $0xd8] sm:$0xff]
    %v2481 = vld [vmem:[#allocation3 + $0xe0] sm:$0xff]
    %v2482 = vld [vmem:[#allocation3 + $0xe8] sm:$0xff]
    %v2483 = vld [vmem:[#allocation3 + $0xf0] sm:$0xff]
    %v2484 = vld [vmem:[#allocation3 + $0xf8] sm:$0xff]
    %v2485 = vld [vmem:[#allocation3 + $0x100] sm:$0xff]
    %v2486 = vld [vmem:[#allocation3 + $0x108] sm:$0xff]
    %v2487 = vld [vmem:[#allocation3 + $0x110] sm:$0xff]
    %v2488 = vld [vmem:[#allocation3 + $0x118] sm:$0xff]
    %v2489 = vld [vmem:[#allocation3 + $0x120] sm:$0xff]
    %v2490 = vld [vmem:[#allocation3 + $0x128] sm:$0xff]
    %v2491 = vld [vmem:[#allocation3 + $0x130] sm:$0xff]
    %v2492 = vld [vmem:[#allocation3 + $0x138] sm:$0xff]
    %v2493 = vld [vmem:[#allocation3 + $0x140] sm:$0xff]
    %v2494 = vld [vmem:[#allocation3 + $0x148] sm:$0xff]
    %v2495 = vld [vmem:[#allocation3 + $0x150] sm:$0xff]
    %v2496 = vld [vmem:[#allocation3 + $0x158] sm:$0xff]
    %v2497 = vld [vmem:[#allocation3 + $0x160] sm:$0xff]
    %v2498 = vld [vmem:[#allocation3 + $0x168] sm:$0xff]
    %v2499 = vld [vmem:[#allocation3 + $0x170] sm:$0xff]
    %v2500 = vld [vmem:[#allocation3 + $0x178] sm:$0xff]
    %v2501 = vld [vmem:[#allocation3 + $0x180] sm:$0xff]
    %v2502 = vld [vmem:[#allocation3 + $0x188] sm:$0xff]
    %v2503 = vld [vmem:[#allocation3 + $0x190] sm:$0xff]
    %v2504 = vld [vmem:[#allocation3 + $0x198] sm:$0xff]
    %v2505 = vld [vmem:[#allocation3 + $0x1a0] sm:$0xff]
    %v2506 = vld [vmem:[#allocation3 + $0x1a8] sm:$0xff]
    %v2507 = vld [vmem:[#allocation3 + $0x1b0] sm:$0xff]
    %v2508 = vld [vmem:[#allocation3 + $0x1b8] sm:$0xff]
    %v2509 = vld [vmem:[#allocation3 + $0x1c0] sm:$0xff]
    %v2510 = vld [vmem:[#allocation3 + $0x1c8] sm:$0xff]
    %v2511 = vld [vmem:[#allocation3 + $0x1d0] sm:$0xff]
    %v2512 = vld [vmem:[#allocation3 + $0x1d8] sm:$0xff]
    %v2513 = vld [vmem:[#allocation3 + $0x1e0] sm:$0xff]
    %v2514 = vld [vmem:[#allocation3 + $0x1e8] sm:$0xff]
    %v2515 = vld [vmem:[#allocation3 + $0x1f0] sm:$0xff]
    %v2516 = vld [vmem:[#allocation3 + $0x1f8] sm:$0xff]
    %v2517 = vld [vmem:[#allocation3 + $0x200] sm:$0xff]
    %v2518 = vld [vmem:[#allocation3 + $0x208] sm:$0xff]
    %v2519 = vld [vmem:[#allocation3 + $0x210] sm:$0xff]
    %v2520 = vld [vmem:[#allocation3 + $0x218] sm:$0xff]
    %v2521 = vld [vmem:[#allocation3 + $0x220] sm:$0xff]
    %v2522 = vld [vmem:[#allocation3 + $0x228] sm:$0xff]
    %v2523 = vld [vmem:[#allocation3 + $0x230] sm:$0xff]
    %v2524 = vld [vmem:[#allocation3 + $0x238] sm:$0xff]
    %v2525 = vld [vmem:[#allocation3 + $0x240] sm:$0xff]
    %v2526 = vld [vmem:[#allocation3 + $0x248] sm:$0xff]
    %v2527 = vld [vmem:[#allocation3 + $0x250] sm:$0xff]
    %v2528 = vld [vmem:[#allocation3 + $0x258] sm:$0xff]
    %v2529 = vld [vmem:[#allocation3 + $0x260] sm:$0xff]
    %v2530 = vld [vmem:[#allocation3 + $0x268] sm:$0xff]
    %v2531 = vld [vmem:[#allocation3 + $0x270] sm:$0xff]
    %v2532 = vld [vmem:[#allocation3 + $0x278] sm:$0xff]
    %2533 = vmatprep.subr.mxu0 %v2454
    %2534 = vmatpush1.msra.mxu0 %v2453
    %2535 = vmatprep.subr.mxu0 %v2459
    %2536 = vmatpush1.msra.mxu0 %v2458
    %2537 = vmatprep.subr.mxu0 %v2464
    %2538 = vmatpush1.msra.mxu0 %v2463
    %2539 = vmatprep.subr.mxu0 %v2469
    %2540 = vmatpush1.msra.mxu0 %v2468
    %2541 = vmatprep.subr.mxu0 %v2474
    %2542 = vmatpush1.msra.mxu0 %v2473
    %2543 = vmatprep.subr.mxu0 %v2479
    %2544 = vmatpush1.msra.mxu0 %v2478
    %2545 = vmatprep.subr.mxu0 %v2484
    %2546 = vmatpush1.msra.mxu0 %v2483
    %2547 = vmatprep.subr.mxu0 %v2489
    %2548 = vmatpush1.msra.mxu0 %v2488
    %2549 = vmatprep.subr.mxu0 %v2494
    %2550 = vmatpush1.msra.mxu0 %v2493
    %2551 = vmatprep.subr.mxu0 %v2499
    %2552 = vmatpush1.msra.mxu0 %v2498
    %2553 = vmatprep.subr.mxu0 %v2504
    %2554 = vmatpush1.msra.mxu0 %v2503
    %2555 = vmatprep.subr.mxu0 %v2509
    %2556 = vmatpush1.msra.mxu0 %v2508
    %2557 = vmatprep.subr.mxu0 %v2514
    %2558 = vmatpush1.msra.mxu0 %v2513
    %2559 = vmatprep.subr.mxu0 %v2519
    %2560 = vmatpush1.msra.mxu0 %v2518
    %2561 = vmatprep.subr.mxu0 %v2524
    %2562 = vmatpush1.msra.mxu0 %v2523
    %2563 = vmatprep.subr.mxu0 %v2529
    %2564 = vmatpush1.msra.mxu0 %v2528
    %2565 = vmatprep.subr.mxu0 0.0
    %2566 = vmatpush1.msra.mxu0 0.0
    %2567 = vmatprep.subr.mxu0 0.0
    %2568 = vmatpush1.msra.mxu0 0.0
    %2569 = vmatprep.subr.mxu0 0.0
    %2570 = vmatpush1.msra.mxu0 0.0
    %2571 = vmatprep.subr.mxu0 0.0
    %2572 = vmatpush1.msra.mxu0 0.0
    %2573 = vmatprep.subr.mxu0 0.0
    %2574 = vmatpush1.msra.mxu0 0.0
    %2575 = vmatprep.subr.mxu0 0.0
    %2576 = vmatpush1.msra.mxu0 0.0
    %2577 = vmatprep.subr.mxu0 0.0
    %2578 = vmatpush1.msra.mxu0 0.0
    %2579 = vmatprep.subr.mxu0 0.0
    %2580 = vmatpush1.msra.mxu0 0.0
    %2581 = vmatprep.subr.mxu0 0.0
    %2582 = vmatpush1.msra.mxu0 0.0
    %2583 = vmatprep.subr.mxu0 0.0
    %2584 = vmatpush1.msra.mxu0 0.0
    %2585 = vmatprep.subr.mxu0 0.0
    %2586 = vmatpush1.msra.mxu0 0.0
    %2587 = vmatprep.subr.mxu0 0.0
    %2588 = vmatpush1.msra.mxu0 0.0
    %2589 = vmatprep.subr.mxu0 0.0
    %2590 = vmatpush1.msra.mxu0 0.0
    %2591 = vmatprep.subr.mxu0 0.0
    %2592 = vmatpush1.msra.mxu0 0.0
    %2593 = vmatprep.subr.mxu0 0.0
    %2594 = vmatpush1.msra.mxu0 0.0
    %2595 = vmatprep.subr.mxu0 0.0
    %2596 = vmatpush1.msra.mxu0 0.0
    %2597 = vmatprep.mubr.f32.mxu0 0.0
    %2598 = vmatmul.mubr.f32.gmra.mrb[0].mxu0 %v2444
    %v2599 = vpop.f32.mrb[0].mxu0
    %v2600 = vadd.f32 0.0, %v2599
    %v2601 = vpop.f32.mrb[0].mxu0
    %v2602 = vadd.f32 0.0, %v2601
    %2603 = vdwg.mxu0
    %2604 = vmatprep.subr.mxu0 %v2456
    %2605 = vmatpush1.msra.mxu0 %v2455
    %2606 = vmatprep.subr.mxu0 %v2461
    %2607 = vmatpush1.msra.mxu0 %v2460
    %2608 = vmatprep.subr.mxu0 %v2466
    %2609 = vmatpush1.msra.mxu0 %v2465
    %2610 = vmatprep.subr.mxu0 %v2471
    %2611 = vmatpush1.msra.mxu0 %v2470
    %2612 = vmatprep.subr.mxu0 %v2476
    %2613 = vmatpush1.msra.mxu0 %v2475
    %2614 = vmatprep.subr.mxu0 %v2481
    %2615 = vmatpush1.msra.mxu0 %v2480
    %2616 = vmatprep.subr.mxu0 %v2486
    %2617 = vmatpush1.msra.mxu0 %v2485
    %2618 = vmatprep.subr.mxu0 %v2491
    %2619 = vmatpush1.msra.mxu0 %v2490
    %2620 = vmatprep.subr.mxu0 %v2496
    %2621 = vmatpush1.msra.mxu0 %v2495
    %2622 = vmatprep.subr.mxu0 %v2501
    %2623 = vmatpush1.msra.mxu0 %v2500
    %2624 = vmatprep.subr.mxu0 %v2506
    %2625 = vmatpush1.msra.mxu0 %v2505
    %2626 = vmatprep.subr.mxu0 %v2511
    %2627 = vmatpush1.msra.mxu0 %v2510
    %2628 = vmatprep.subr.mxu0 %v2516
    %2629 = vmatpush1.msra.mxu0 %v2515
    %2630 = vmatprep.subr.mxu0 %v2521
    %2631 = vmatpush1.msra.mxu0 %v2520
    %2632 = vmatprep.subr.mxu0 %v2526
    %2633 = vmatpush1.msra.mxu0 %v2525
    %2634 = vmatprep.subr.mxu0 %v2531
    %2635 = vmatpush1.msra.mxu0 %v2530
    %2636 = vmatprep.subr.mxu0 0.0
    %2637 = vmatpush1.msra.mxu0 0.0
    %2638 = vmatprep.subr.mxu0 0.0
    %2639 = vmatpush1.msra.mxu0 0.0
    %2640 = vmatprep.subr.mxu0 0.0
    %2641 = vmatpush1.msra.mxu0 0.0
    %2642 = vmatprep.subr.mxu0 0.0
    %2643 = vmatpush1.msra.mxu0 0.0
    %2644 = vmatprep.subr.mxu0 0.0
    %2645 = vmatpush1.msra.mxu0 0.0
    %2646 = vmatprep.subr.mxu0 0.0
    %2647 = vmatpush1.msra.mxu0 0.0
    %2648 = vmatprep.subr.mxu0 0.0
    %2649 = vmatpush1.msra.mxu0 0.0
    %2650 = vmatprep.subr.mxu0 0.0
    %2651 = vmatpush1.msra.mxu0 0.0
    %2652 = vmatprep.subr.mxu0 0.0
    %2653 = vmatpush1.msra.mxu0 0.0
    %2654 = vmatprep.subr.mxu0 0.0
    %2655 = vmatpush1.msra.mxu0 0.0
    %2656 = vmatprep.subr.mxu0 0.0
    %2657 = vmatpush1.msra.mxu0 0.0
    %2658 = vmatprep.subr.mxu0 0.0
    %2659 = vmatpush1.msra.mxu0 0.0
    %2660 = vmatprep.subr.mxu0 0.0
    %2661 = vmatpush1.msra.mxu0 0.0
    %2662 = vmatprep.subr.mxu0 0.0
    %2663 = vmatpush1.msra.mxu0 0.0
    %2664 = vmatprep.subr.mxu0 0.0
    %2665 = vmatpush1.msra.mxu0 0.0
    %2666 = vmatprep.subr.mxu0 0.0
    %2667 = vmatpush1.msra.mxu0 0.0
    %2668 = vmatprep.mubr.f32.mxu0 0.0
    %2669 = vmatmul.mubr.f32.gmra.mrb[0].mxu0 %v2444
    %v2670 = vpop.f32.mrb[0].mxu0
    %v2671 = vadd.f32 0.0, %v2670
    %v2672 = vpop.f32.mrb[0].mxu0
    %v2673 = vadd.f32 0.0, %v2672
    %2674 = vdwg.mxu0
    %2675 = vmatprep.subr.mxu0 0.0
    %2676 = vmatpush1.msra.mxu0 %v2457
    %2677 = vmatprep.subr.mxu0 0.0
    %2678 = vmatpush1.msra.mxu0 %v2462
    %2679 = vmatprep.subr.mxu0 0.0
    %2680 = vmatpush1.msra.mxu0 %v2467
    %2681 = vmatprep.subr.mxu0 0.0
    %2682 = vmatpush1.msra.mxu0 %v2472
    %2683 = vmatprep.subr.mxu0 0.0
    %2684 = vmatpush1.msra.mxu0 %v2477
    %2685 = vmatprep.subr.mxu0 0.0
    %2686 = vmatpush1.msra.mxu0 %v2482
    %2687 = vmatprep.subr.mxu0 0.0
    %2688 = vmatpush1.msra.mxu0 %v2487
    %2689 = vmatprep.subr.mxu0 0.0
    %2690 = vmatpush1.msra.mxu0 %v2492
    %2691 = vmatprep.subr.mxu0 0.0
    %2692 = vmatpush1.msra.mxu0 %v2497
    %2693 = vmatprep.subr.mxu0 0.0
    %2694 = vmatpush1.msra.mxu0 %v2502
    %2695 = vmatprep.subr.mxu0 0.0
    %2696 = vmatpush1.msra.mxu0 %v2507
    %2697 = vmatprep.subr.mxu0 0.0
    %2698 = vmatpush1.msra.mxu0 %v2512
    %2699 = vmatprep.subr.mxu0 0.0
    %2700 = vmatpush1.msra.mxu0 %v2517
    %2701 = vmatprep.subr.mxu0 0.0
    %2702 = vmatpush1.msra.mxu0 %v2522
    %2703 = vmatprep.subr.mxu0 0.0
    %2704 = vmatpush1.msra.mxu0 %v2527
    %2705 = vmatprep.subr.mxu0 0.0
    %2706 = vmatpush1.msra.mxu0 %v2532
    %2707 = vmatprep.subr.mxu0 0.0
    %2708 = vmatpush1.msra.mxu0 0.0
    %2709 = vmatprep.subr.mxu0 0.0
    %2710 = vmatpush1.msra.mxu0 0.0
    %2711 = vmatprep.subr.mxu0 0.0
    %2712 = vmatpush1.msra.mxu0 0.0
    %2713 = vmatprep.subr.mxu0 0.0
    %2714 = vmatpush1.msra.mxu0 0.0
    %2715 = vmatprep.subr.mxu0 0.0
    %2716 = vmatpush1.msra.mxu0 0.0
    %2717 = vmatprep.subr.mxu0 0.0
    %2718 = vmatpush1.msra.mxu0 0.0
    %2719 = vmatprep.subr.mxu0 0.0
    %2720 = vmatpush1.msra.mxu0 0.0
    %2721 = vmatprep.subr.mxu0 0.0
    %2722 = vmatpush1.msra.mxu0 0.0
    %2723 = vmatprep.subr.mxu0 0.0
    %2724 = vmatpush1.msra.mxu0 0.0
    %2725 = vmatprep.subr.mxu0 0.0
    %2726 = vmatpush1.msra.mxu0 0.0
    %2727 = vmatprep.subr.mxu0 0.0
    %2728 = vmatpush1.msra.mxu0 0.0
    %2729 = vmatprep.subr.mxu0 0.0
    %2730 = vmatpush1.msra.mxu0 0.0
    %2731 = vmatprep.subr.mxu0 0.0
    %2732 = vmatpush1.msra.mxu0 0.0
    %2733 = vmatprep.subr.mxu0 0.0
    %2734 = vmatpush1.msra.mxu0 0.0
    %2735 = vmatprep.subr.mxu0 0.0
    %2736 = vmatpush1.msra.mxu0 0.0
    %2737 = vmatprep.subr.mxu0 0.0
    %2738 = vmatpush1.msra.mxu0 0.0
    %2739 = vmatprep.mubr.f32.mxu0 0.0
    %2740 = vmatmul.mubr.f32.gmra.mrb[0].mxu0 %v2444
    %v2741 = vpop.f32.mrb[0].mxu0
    %v2742 = vadd.f32 0.0, %v2741
    %v2743 = vpop.f32.mrb[0].mxu0
    %2744 = vdwg.mxu0
    %v2745 = vadd.f32 %v2448, %v2600
    %v2746 = vadd.f32 %v2449, %v2602
    %v2747 = vadd.f32 %v2450, %v2671
    %v2748 = vadd.f32 %v2451, %v2673
    %v2749 = vadd.f32 %v2452, %v2742
    %v2750 = vxor.u32 %v2745, 2147483648
    %v2751 = vmul.f32 %v2750, 1.442695
    %v2752 = vpow.pop %v2751
    %v2753 = vadd.f32 %v2752, 1.0
    %v2754 = vrcp.pop %v2753
    %v2755 = vmul.f32 1.0, %v2754
    %v2756 = vxor.u32 %v2746, 2147483648
    %v2757 = vmul.f32 %v2756, 1.442695
    %v2758 = vpow.pop %v2757
    %v2759 = vadd.f32 %v2758, 1.0
    %v2760 = vrcp.pop %v2759
    %v2761 = vmul.f32 1.0, %v2760
    %v2762 = vxor.u32 %v2747, 2147483648
    %v2763 = vmul.f32 %v2762, 1.442695
    %v2764 = vpow.pop %v2763
    %v2765 = vadd.f32 %v2764, 1.0
    %v2766 = vrcp.pop %v2765
    %v2767 = vmul.f32 1.0, %v2766
    %v2768 = vtanh.pop %v2748
    %v2769 = vxor.u32 %v2749, 2147483648
    %v2770 = vmul.f32 %v2769, 1.442695
    %v2771 = vpow.pop %v2770
    %v2772 = vadd.f32 %v2771, 1.0
    %v2773 = vrcp.pop %v2772
    %v2774 = vmul.f32 1.0, %v2773
    %v2775 = vmul.f32 %v2774, %v2352
    %v2776 = vmul.f32 %v2761, %v2442
    %v2777 = vmul.f32 %v2755, %v2768
    %v2778 = vadd.f32 %v2776, %v2777
    %v2779 = vld [vmem:[#allocation5] sm:$0xff]
    %v2780 = vld [vmem:[#allocation5 + $0x8] sm:$0xff]
    %v2781 = vld [vmem:[#allocation5 + $0x10] sm:$0xff]
    %v2782 = vld [vmem:[#allocation5 + $0x18] sm:$0xff]
    %v2783 = vld [vmem:[#allocation5 + $0x20] sm:$0xff]
    %v2784 = vld [vmem:[#allocation5 + $0x28] sm:$0xff]
    %v2785 = vld [vmem:[#allocation5 + $0x30] sm:$0xff]
    %v2786 = vld [vmem:[#allocation5 + $0x38] sm:$0xff]
    %v2787 = vld [vmem:[#allocation5 + $0x40] sm:$0xff]
    %v2788 = vld [vmem:[#allocation5 + $0x48] sm:$0xff]
    %v2789 = vld [vmem:[#allocation5 + $0x50] sm:$0xff]
    %v2790 = vld [vmem:[#allocation5 + $0x58] sm:$0xff]
    %v2791 = vld [vmem:[#allocation5 + $0x60] sm:$0xff]
    %v2792 = vld [vmem:[#allocation5 + $0x68] sm:$0xff]
    %v2793 = vld [vmem:[#allocation5 + $0x70] sm:$0xff]
    %v2794 = vld [vmem:[#allocation5 + $0x78] sm:$0xff]
    %2795 = vmatprep.subr.mxu0 0.0
    %2796 = vmatpush1.msra.mxu0 %v2779
    %2797 = vmatprep.subr.mxu0 0.0
    %2798 = vmatpush1.msra.mxu0 %v2780
    %2799 = vmatprep.subr.mxu0 0.0
    %2800 = vmatpush1.msra.mxu0 %v2781
    %2801 = vmatprep.subr.mxu0 0.0
    %2802 = vmatpush1.msra.mxu0 %v2782
    %2803 = vmatprep.subr.mxu0 0.0
    %2804 = vmatpush1.msra.mxu0 %v2783
    %2805 = vmatprep.subr.mxu0 0.0
    %2806 = vmatpush1.msra.mxu0 %v2784
    %2807 = vmatprep.subr.mxu0 0.0
    %2808 = vmatpush1.msra.mxu0 %v2785
    %2809 = vmatprep.subr.mxu0 0.0
    %2810 = vmatpush1.msra.mxu0 %v2786
    %2811 = vmatprep.subr.mxu0 0.0
    %2812 = vmatpush1.msra.mxu0 %v2787
    %2813 = vmatprep.subr.mxu0 0.0
    %2814 = vmatpush1.msra.mxu0 %v2788
    %2815 = vmatprep.subr.mxu0 0.0
    %2816 = vmatpush1.msra.mxu0 %v2789
    %2817 = vmatprep.subr.mxu0 0.0
    %2818 = vmatpush1.msra.mxu0 %v2790
    %2819 = vmatprep.subr.mxu0 0.0
    %2820 = vmatpush1.msra.mxu0 %v2791
    %2821 = vmatprep.subr.mxu0 0.0
    %2822 = vmatpush1.msra.mxu0 %v2792
    %2823 = vmatprep.subr.mxu0 0.0
    %2824 = vmatpush1.msra.mxu0 %v2793
    %2825 = vmatprep.subr.mxu0 0.0
    %2826 = vmatpush1.msra.mxu0 %v2794
    %2827 = vmatprep.subr.mxu0 0.0
    %2828 = vmatpush1.msra.mxu0 0.0
    %2829 = vmatprep.subr.mxu0 0.0
    %2830 = vmatpush1.msra.mxu0 0.0
    %2831 = vmatprep.subr.mxu0 0.0
    %2832 = vmatpush1.msra.mxu0 0.0
    %2833 = vmatprep.subr.mxu0 0.0
    %2834 = vmatpush1.msra.mxu0 0.0
    %2835 = vmatprep.subr.mxu0 0.0
    %2836 = vmatpush1.msra.mxu0 0.0
    %2837 = vmatprep.subr.mxu0 0.0
    %2838 = vmatpush1.msra.mxu0 0.0
    %2839 = vmatprep.subr.mxu0 0.0
    %2840 = vmatpush1.msra.mxu0 0.0
    %2841 = vmatprep.subr.mxu0 0.0
    %2842 = vmatpush1.msra.mxu0 0.0
    %2843 = vmatprep.subr.mxu0 0.0
    %2844 = vmatpush1.msra.mxu0 0.0
    %2845 = vmatprep.subr.mxu0 0.0
    %2846 = vmatpush1.msra.mxu0 0.0
    %2847 = vmatprep.subr.mxu0 0.0
    %2848 = vmatpush1.msra.mxu0 0.0
    %2849 = vmatprep.subr.mxu0 0.0
    %2850 = vmatpush1.msra.mxu0 0.0
    %2851 = vmatprep.subr.mxu0 0.0
    %2852 = vmatpush1.msra.mxu0 0.0
    %2853 = vmatprep.subr.mxu0 0.0
    %2854 = vmatpush1.msra.mxu0 0.0
    %2855 = vmatprep.subr.mxu0 0.0
    %2856 = vmatpush1.msra.mxu0 0.0
    %2857 = vmatprep.subr.mxu0 0.0
    %2858 = vmatpush1.msra.mxu0 0.0
    %2859 = vmatprep.mubr.f32.mxu0 0.0
    %2860 = vmatmul.mubr.f32.gmra.mrb[0].mxu0 %v2775
    %v2861 = vpop.f32.mrb[0].mxu0
    %v2862 = vadd.f32 0.0, %v2861
    %v2863 = vpop.f32.mrb[0].mxu0
    %2864 = vdwg.mxu0
    %v2865 = vadd.f32 %v2778, %v2862
    %v2866 = vtanh.pop %v2865
    %v2867 = vmul.f32 %v2767, %v2866
    %s2868 = scalar_lea.vmem [#allocation12], 32
    %2869 = vst [vmem:[%s2868] sm:$0xff] %v2867
    %s2870 = scalar_lea.vmem [#allocation11], 200
    %v2871 = vld [vmem:[%s2870] sm:$0xff]
    %v2872 = vld [vmem:[%s2870 + $0x8] sm:$0xff]
    %v2873 = vld [vmem:[%s2870 + $0x10] sm:$0xff]
    %v2874 = vld [vmem:[%s2870 + $0x18] sm:$0xff]
    %v2875 = vld [vmem:[%s2870 + $0x20] sm:$0xff]
    %v2876 = vld [vmem:[#allocation3] sm:$0xff]
    %v2877 = vld [vmem:[#allocation3 + $0x8] sm:$0xff]
    %v2878 = vld [vmem:[#allocation3 + $0x10] sm:$0xff]
    %v2879 = vld [vmem:[#allocation3 + $0x18] sm:$0xff]
    %v2880 = vld [vmem:[#allocation3 + $0x20] sm:$0xff]
    %v2881 = vld [vmem:[#allocation3 + $0x28] sm:$0xff]
    %v2882 = vld [vmem:[#allocation3 + $0x30] sm:$0xff]
    %v2883 = vld [vmem:[#allocation3 + $0x38] sm:$0xff]
    %v2884 = vld [vmem:[#allocation3 + $0x40] sm:$0xff]
    %v2885 = vld [vmem:[#allocation3 + $0x48] sm:$0xff]
    %v2886 = vld [vmem:[#allocation3 + $0x50] sm:$0xff]
    %v2887 = vld [vmem:[#allocation3 + $0x58] sm:$0xff]
    %v2888 = vld [vmem:[#allocation3 + $0x60] sm:$0xff]
    %v2889 = vld [vmem:[#allocation3 + $0x68] sm:$0xff]
    %v2890 = vld [vmem:[#allocation3 + $0x70] sm:$0xff]
    %v2891 = vld [vmem:[#allocation3 + $0x78] sm:$0xff]
    %v2892 = vld [vmem:[#allocation3 + $0x80] sm:$0xff]
    %v2893 = vld [vmem:[#allocation3 + $0x88] sm:$0xff]
    %v2894 = vld [vmem:[#allocation3 + $0x90] sm:$0xff]
    %v2895 = vld [vmem:[#allocation3 + $0x98] sm:$0xff]
    %v2896 = vld [vmem:[#allocation3 + $0xa0] sm:$0xff]
    %v2897 = vld [vmem:[#allocation3 + $0xa8] sm:$0xff]
    %v2898 = vld [vmem:[#allocation3 + $0xb0] sm:$0xff]
    %v2899 = vld [vmem:[#allocation3 + $0xb8] sm:$0xff]
    %v2900 = vld [vmem:[#allocation3 + $0xc0] sm:$0xff]
    %v2901 = vld [vmem:[#allocation3 + $0xc8] sm:$0xff]
    %v2902 = vld [vmem:[#allocation3 + $0xd0] sm:$0xff]
    %v2903 = vld [vmem:[#allocation3 + $0xd8] sm:$0xff]
    %v2904 = vld [vmem:[#allocation3 + $0xe0] sm:$0xff]
    %v2905 = vld [vmem:[#allocation3 + $0xe8] sm:$0xff]
    %v2906 = vld [vmem:[#allocation3 + $0xf0] sm:$0xff]
    %v2907 = vld [vmem:[#allocation3 + $0xf8] sm:$0xff]
    %v2908 = vld [vmem:[#allocation3 + $0x100] sm:$0xff]
    %v2909 = vld [vmem:[#allocation3 + $0x108] sm:$0xff]
    %v2910 = vld [vmem:[#allocation3 + $0x110] sm:$0xff]
    %v2911 = vld [vmem:[#allocation3 + $0x118] sm:$0xff]
    %v2912 = vld [vmem:[#allocation3 + $0x120] sm:$0xff]
    %v2913 = vld [vmem:[#allocation3 + $0x128] sm:$0xff]
    %v2914 = vld [vmem:[#allocation3 + $0x130] sm:$0xff]
    %v2915 = vld [vmem:[#allocation3 + $0x138] sm:$0xff]
    %v2916 = vld [vmem:[#allocation3 + $0x140] sm:$0xff]
    %v2917 = vld [vmem:[#allocation3 + $0x148] sm:$0xff]
    %v2918 = vld [vmem:[#allocation3 + $0x150] sm:$0xff]
    %v2919 = vld [vmem:[#allocation3 + $0x158] sm:$0xff]
    %v2920 = vld [vmem:[#allocation3 + $0x160] sm:$0xff]
    %v2921 = vld [vmem:[#allocation3 + $0x168] sm:$0xff]
    %v2922 = vld [vmem:[#allocation3 + $0x170] sm:$0xff]
    %v2923 = vld [vmem:[#allocation3 + $0x178] sm:$0xff]
    %v2924 = vld [vmem:[#allocation3 + $0x180] sm:$0xff]
    %v2925 = vld [vmem:[#allocation3 + $0x188] sm:$0xff]
    %v2926 = vld [vmem:[#allocation3 + $0x190] sm:$0xff]
    %v2927 = vld [vmem:[#allocation3 + $0x198] sm:$0xff]
    %v2928 = vld [vmem:[#allocation3 + $0x1a0] sm:$0xff]
    %v2929 = vld [vmem:[#allocation3 + $0x1a8] sm:$0xff]
    %v2930 = vld [vmem:[#allocation3 + $0x1b0] sm:$0xff]
    %v2931 = vld [vmem:[#allocation3 + $0x1b8] sm:$0xff]
    %v2932 = vld [vmem:[#allocation3 + $0x1c0] sm:$0xff]
    %v2933 = vld [vmem:[#allocation3 + $0x1c8] sm:$0xff]
    %v2934 = vld [vmem:[#allocation3 + $0x1d0] sm:$0xff]
    %v2935 = vld [vmem:[#allocation3 + $0x1d8] sm:$0xff]
    %v2936 = vld [vmem:[#allocation3 + $0x1e0] sm:$0xff]
    %v2937 = vld [vmem:[#allocation3 + $0x1e8] sm:$0xff]
    %v2938 = vld [vmem:[#allocation3 + $0x1f0] sm:$0xff]
    %v2939 = vld [vmem:[#allocation3 + $0x1f8] sm:$0xff]
    %v2940 = vld [vmem:[#allocation3 + $0x200] sm:$0xff]
    %v2941 = vld [vmem:[#allocation3 + $0x208] sm:$0xff]
    %v2942 = vld [vmem:[#allocation3 + $0x210] sm:$0xff]
    %v2943 = vld [vmem:[#allocation3 + $0x218] sm:$0xff]
    %v2944 = vld [vmem:[#allocation3 + $0x220] sm:$0xff]
    %v2945 = vld [vmem:[#allocation3 + $0x228] sm:$0xff]
    %v2946 = vld [vmem:[#allocation3 + $0x230] sm:$0xff]
    %v2947 = vld [vmem:[#allocation3 + $0x238] sm:$0xff]
    %v2948 = vld [vmem:[#allocation3 + $0x240] sm:$0xff]
    %v2949 = vld [vmem:[#allocation3 + $0x248] sm:$0xff]
    %v2950 = vld [vmem:[#allocation3 + $0x250] sm:$0xff]
    %v2951 = vld [vmem:[#allocation3 + $0x258] sm:$0xff]
    %v2952 = vld [vmem:[#allocation3 + $0x260] sm:$0xff]
    %v2953 = vld [vmem:[#allocation3 + $0x268] sm:$0xff]
    %v2954 = vld [vmem:[#allocation3 + $0x270] sm:$0xff]
    %v2955 = vld [vmem:[#allocation3 + $0x278] sm:$0xff]
    %2956 = vmatprep.subr.mxu0 %v2877
    %2957 = vmatpush1.msra.mxu0 %v2876
    %2958 = vmatprep.subr.mxu0 %v2882
    %2959 = vmatpush1.msra.mxu0 %v2881
    %2960 = vmatprep.subr.mxu0 %v2887
    %2961 = vmatpush1.msra.mxu0 %v2886
    %2962 = vmatprep.subr.mxu0 %v2892
    %2963 = vmatpush1.msra.mxu0 %v2891
    %2964 = vmatprep.subr.mxu0 %v2897
    %2965 = vmatpush1.msra.mxu0 %v2896
    %2966 = vmatprep.subr.mxu0 %v2902
    %2967 = vmatpush1.msra.mxu0 %v2901
    %2968 = vmatprep.subr.mxu0 %v2907
    %2969 = vmatpush1.msra.mxu0 %v2906
    %2970 = vmatprep.subr.mxu0 %v2912
    %2971 = vmatpush1.msra.mxu0 %v2911
    %2972 = vmatprep.subr.mxu0 %v2917
    %2973 = vmatpush1.msra.mxu0 %v2916
    %2974 = vmatprep.subr.mxu0 %v2922
    %2975 = vmatpush1.msra.mxu0 %v2921
    %2976 = vmatprep.subr.mxu0 %v2927
    %2977 = vmatpush1.msra.mxu0 %v2926
    %2978 = vmatprep.subr.mxu0 %v2932
    %2979 = vmatpush1.msra.mxu0 %v2931
    %2980 = vmatprep.subr.mxu0 %v2937
    %2981 = vmatpush1.msra.mxu0 %v2936
    %2982 = vmatprep.subr.mxu0 %v2942
    %2983 = vmatpush1.msra.mxu0 %v2941
    %2984 = vmatprep.subr.mxu0 %v2947
    %2985 = vmatpush1.msra.mxu0 %v2946
    %2986 = vmatprep.subr.mxu0 %v2952
    %2987 = vmatpush1.msra.mxu0 %v2951
    %2988 = vmatprep.subr.mxu0 0.0
    %2989 = vmatpush1.msra.mxu0 0.0
    %2990 = vmatprep.subr.mxu0 0.0
    %2991 = vmatpush1.msra.mxu0 0.0
    %2992 = vmatprep.subr.mxu0 0.0
    %2993 = vmatpush1.msra.mxu0 0.0
    %2994 = vmatprep.subr.mxu0 0.0
    %2995 = vmatpush1.msra.mxu0 0.0
    %2996 = vmatprep.subr.mxu0 0.0
    %2997 = vmatpush1.msra.mxu0 0.0
    %2998 = vmatprep.subr.mxu0 0.0
    %2999 = vmatpush1.msra.mxu0 0.0
    %3000 = vmatprep.subr.mxu0 0.0
    %3001 = vmatpush1.msra.mxu0 0.0
    %3002 = vmatprep.subr.mxu0 0.0
    %3003 = vmatpush1.msra.mxu0 0.0
    %3004 = vmatprep.subr.mxu0 0.0
    %3005 = vmatpush1.msra.mxu0 0.0
    %3006 = vmatprep.subr.mxu0 0.0
    %3007 = vmatpush1.msra.mxu0 0.0
    %3008 = vmatprep.subr.mxu0 0.0
    %3009 = vmatpush1.msra.mxu0 0.0
    %3010 = vmatprep.subr.mxu0 0.0
    %3011 = vmatpush1.msra.mxu0 0.0
    %3012 = vmatprep.subr.mxu0 0.0
    %3013 = vmatpush1.msra.mxu0 0.0
    %3014 = vmatprep.subr.mxu0 0.0
    %3015 = vmatpush1.msra.mxu0 0.0
    %3016 = vmatprep.subr.mxu0 0.0
    %3017 = vmatpush1.msra.mxu0 0.0
    %3018 = vmatprep.subr.mxu0 0.0
    %3019 = vmatpush1.msra.mxu0 0.0
    %3020 = vmatprep.mubr.f32.mxu0 0.0
    %3021 = vmatmul.mubr.f32.gmra.mrb[0].mxu0 %v2867
    %v3022 = vpop.f32.mrb[0].mxu0
    %v3023 = vadd.f32 0.0, %v3022
    %v3024 = vpop.f32.mrb[0].mxu0
    %v3025 = vadd.f32 0.0, %v3024
    %3026 = vdwg.mxu0
    %3027 = vmatprep.subr.mxu0 %v2879
    %3028 = vmatpush1.msra.mxu0 %v2878
    %3029 = vmatprep.subr.mxu0 %v2884
    %3030 = vmatpush1.msra.mxu0 %v2883
    %3031 = vmatprep.subr.mxu0 %v2889
    %3032 = vmatpush1.msra.mxu0 %v2888
    %3033 = vmatprep.subr.mxu0 %v2894
    %3034 = vmatpush1.msra.mxu0 %v2893
    %3035 = vmatprep.subr.mxu0 %v2899
    %3036 = vmatpush1.msra.mxu0 %v2898
    %3037 = vmatprep.subr.mxu0 %v2904
    %3038 = vmatpush1.msra.mxu0 %v2903
    %3039 = vmatprep.subr.mxu0 %v2909
    %3040 = vmatpush1.msra.mxu0 %v2908
    %3041 = vmatprep.subr.mxu0 %v2914
    %3042 = vmatpush1.msra.mxu0 %v2913
    %3043 = vmatprep.subr.mxu0 %v2919
    %3044 = vmatpush1.msra.mxu0 %v2918
    %3045 = vmatprep.subr.mxu0 %v2924
    %3046 = vmatpush1.msra.mxu0 %v2923
    %3047 = vmatprep.subr.mxu0 %v2929
    %3048 = vmatpush1.msra.mxu0 %v2928
    %3049 = vmatprep.subr.mxu0 %v2934
    %3050 = vmatpush1.msra.mxu0 %v2933
    %3051 = vmatprep.subr.mxu0 %v2939
    %3052 = vmatpush1.msra.mxu0 %v2938
    %3053 = vmatprep.subr.mxu0 %v2944
    %3054 = vmatpush1.msra.mxu0 %v2943
    %3055 = vmatprep.subr.mxu0 %v2949
    %3056 = vmatpush1.msra.mxu0 %v2948
    %3057 = vmatprep.subr.mxu0 %v2954
    %3058 = vmatpush1.msra.mxu0 %v2953
    %3059 = vmatprep.subr.mxu0 0.0
    %3060 = vmatpush1.msra.mxu0 0.0
    %3061 = vmatprep.subr.mxu0 0.0
    %3062 = vmatpush1.msra.mxu0 0.0
    %3063 = vmatprep.subr.mxu0 0.0
    %3064 = vmatpush1.msra.mxu0 0.0
    %3065 = vmatprep.subr.mxu0 0.0
    %3066 = vmatpush1.msra.mxu0 0.0
    %3067 = vmatprep.subr.mxu0 0.0
    %3068 = vmatpush1.msra.mxu0 0.0
    %3069 = vmatprep.subr.mxu0 0.0
    %3070 = vmatpush1.msra.mxu0 0.0
    %3071 = vmatprep.subr.mxu0 0.0
    %3072 = vmatpush1.msra.mxu0 0.0
    %3073 = vmatprep.subr.mxu0 0.0
    %3074 = vmatpush1.msra.mxu0 0.0
    %3075 = vmatprep.subr.mxu0 0.0
    %3076 = vmatpush1.msra.mxu0 0.0
    %3077 = vmatprep.subr.mxu0 0.0
    %3078 = vmatpush1.msra.mxu0 0.0
    %3079 = vmatprep.subr.mxu0 0.0
    %3080 = vmatpush1.msra.mxu0 0.0
    %3081 = vmatprep.subr.mxu0 0.0
    %3082 = vmatpush1.msra.mxu0 0.0
    %3083 = vmatprep.subr.mxu0 0.0
    %3084 = vmatpush1.msra.mxu0 0.0
    %3085 = vmatprep.subr.mxu0 0.0
    %3086 = vmatpush1.msra.mxu0 0.0
    %3087 = vmatprep.subr.mxu0 0.0
    %3088 = vmatpush1.msra.mxu0 0.0
    %3089 = vmatprep.subr.mxu0 0.0
    %3090 = vmatpush1.msra.mxu0 0.0
    %3091 = vmatprep.mubr.f32.mxu0 0.0
    %3092 = vmatmul.mubr.f32.gmra.mrb[0].mxu0 %v2867
    %v3093 = vpop.f32.mrb[0].mxu0
    %v3094 = vadd.f32 0.0, %v3093
    %v3095 = vpop.f32.mrb[0].mxu0
    %v3096 = vadd.f32 0.0, %v3095
    %3097 = vdwg.mxu0
    %3098 = vmatprep.subr.mxu0 0.0
    %3099 = vmatpush1.msra.mxu0 %v2880
    %3100 = vmatprep.subr.mxu0 0.0
    %3101 = vmatpush1.msra.mxu0 %v2885
    %3102 = vmatprep.subr.mxu0 0.0
    %3103 = vmatpush1.msra.mxu0 %v2890
    %3104 = vmatprep.subr.mxu0 0.0
    %3105 = vmatpush1.msra.mxu0 %v2895
    %3106 = vmatprep.subr.mxu0 0.0
    %3107 = vmatpush1.msra.mxu0 %v2900
    %3108 = vmatprep.subr.mxu0 0.0
    %3109 = vmatpush1.msra.mxu0 %v2905
    %3110 = vmatprep.subr.mxu0 0.0
    %3111 = vmatpush1.msra.mxu0 %v2910
    %3112 = vmatprep.subr.mxu0 0.0
    %3113 = vmatpush1.msra.mxu0 %v2915
    %3114 = vmatprep.subr.mxu0 0.0
    %3115 = vmatpush1.msra.mxu0 %v2920
    %3116 = vmatprep.subr.mxu0 0.0
    %3117 = vmatpush1.msra.mxu0 %v2925
    %3118 = vmatprep.subr.mxu0 0.0
    %3119 = vmatpush1.msra.mxu0 %v2930
    %3120 = vmatprep.subr.mxu0 0.0
    %3121 = vmatpush1.msra.mxu0 %v2935
    %3122 = vmatprep.subr.mxu0 0.0
    %3123 = vmatpush1.msra.mxu0 %v2940
    %3124 = vmatprep.subr.mxu0 0.0
    %3125 = vmatpush1.msra.mxu0 %v2945
    %3126 = vmatprep.subr.mxu0 0.0
    %3127 = vmatpush1.msra.mxu0 %v2950
    %3128 = vmatprep.subr.mxu0 0.0
    %3129 = vmatpush1.msra.mxu0 %v2955
    %3130 = vmatprep.subr.mxu0 0.0
    %3131 = vmatpush1.msra.mxu0 0.0
    %3132 = vmatprep.subr.mxu0 0.0
    %3133 = vmatpush1.msra.mxu0 0.0
    %3134 = vmatprep.subr.mxu0 0.0
    %3135 = vmatpush1.msra.mxu0 0.0
    %3136 = vmatprep.subr.mxu0 0.0
    %3137 = vmatpush1.msra.mxu0 0.0
    %3138 = vmatprep.subr.mxu0 0.0
    %3139 = vmatpush1.msra.mxu0 0.0
    %3140 = vmatprep.subr.mxu0 0.0
    %3141 = vmatpush1.msra.mxu0 0.0
    %3142 = vmatprep.subr.mxu0 0.0
    %3143 = vmatpush1.msra.mxu0 0.0
    %3144 = vmatprep.subr.mxu0 0.0
    %3145 = vmatpush1.msra.mxu0 0.0
    %3146 = vmatprep.subr.mxu0 0.0
    %3147 = vmatpush1.msra.mxu0 0.0
    %3148 = vmatprep.subr.mxu0 0.0
    %3149 = vmatpush1.msra.mxu0 0.0
    %3150 = vmatprep.subr.mxu0 0.0
    %3151 = vmatpush1.msra.mxu0 0.0
    %3152 = vmatprep.subr.mxu0 0.0
    %3153 = vmatpush1.msra.mxu0 0.0
    %3154 = vmatprep.subr.mxu0 0.0
    %3155 = vmatpush1.msra.mxu0 0.0
    %3156 = vmatprep.subr.mxu0 0.0
    %3157 = vmatpush1.msra.mxu0 0.0
    %3158 = vmatprep.subr.mxu0 0.0
    %3159 = vmatpush1.msra.mxu0 0.0
    %3160 = vmatprep.subr.mxu0 0.0
    %3161 = vmatpush1.msra.mxu0 0.0
    %3162 = vmatprep.mubr.f32.mxu0 0.0
    %3163 = vmatmul.mubr.f32.gmra.mrb[0].mxu0 %v2867
    %v3164 = vpop.f32.mrb[0].mxu0
    %v3165 = vadd.f32 0.0, %v3164
    %v3166 = vpop.f32.mrb[0].mxu0
    %3167 = vdwg.mxu0
    %v3168 = vadd.f32 %v2871, %v3023
    %v3169 = vadd.f32 %v2872, %v3025
    %v3170 = vadd.f32 %v2873, %v3094
    %v3171 = vadd.f32 %v2874, %v3096
    %v3172 = vadd.f32 %v2875, %v3165
    %v3173 = vxor.u32 %v3168, 2147483648
    %v3174 = vmul.f32 %v3173, 1.442695
    %v3175 = vpow.pop %v3174
    %v3176 = vadd.f32 %v3175, 1.0
    %v3177 = vrcp.pop %v3176
    %v3178 = vmul.f32 1.0, %v3177
    %v3179 = vxor.u32 %v3169, 2147483648
    %v3180 = vmul.f32 %v3179, 1.442695
    %v3181 = vpow.pop %v3180
    %v3182 = vadd.f32 %v3181, 1.0
    %v3183 = vrcp.pop %v3182
    %v3184 = vmul.f32 1.0, %v3183
    %v3185 = vxor.u32 %v3170, 2147483648
    %v3186 = vmul.f32 %v3185, 1.442695
    %v3187 = vpow.pop %v3186
    %v3188 = vadd.f32 %v3187, 1.0
    %v3189 = vrcp.pop %v3188
    %v3190 = vmul.f32 1.0, %v3189
    %v3191 = vtanh.pop %v3171
    %v3192 = vxor.u32 %v3172, 2147483648
    %v3193 = vmul.f32 %v3192, 1.442695
    %v3194 = vpow.pop %v3193
    %v3195 = vadd.f32 %v3194, 1.0
    %v3196 = vrcp.pop %v3195
    %v3197 = vmul.f32 1.0, %v3196
    %v3198 = vmul.f32 %v3197, %v2775
    %v3199 = vmul.f32 %v3184, %v2865
    %v3200 = vmul.f32 %v3178, %v3191
    %v3201 = vadd.f32 %v3199, %v3200
    %v3202 = vld [vmem:[#allocation5] sm:$0xff]
    %v3203 = vld [vmem:[#allocation5 + $0x8] sm:$0xff]
    %v3204 = vld [vmem:[#allocation5 + $0x10] sm:$0xff]
    %v3205 = vld [vmem:[#allocation5 + $0x18] sm:$0xff]
    %v3206 = vld [vmem:[#allocation5 + $0x20] sm:$0xff]
    %v3207 = vld [vmem:[#allocation5 + $0x28] sm:$0xff]
    %v3208 = vld [vmem:[#allocation5 + $0x30] sm:$0xff]
    %v3209 = vld [vmem:[#allocation5 + $0x38] sm:$0xff]
    %v3210 = vld [vmem:[#allocation5 + $0x40] sm:$0xff]
    %v3211 = vld [vmem:[#allocation5 + $0x48] sm:$0xff]
    %v3212 = vld [vmem:[#allocation5 + $0x50] sm:$0xff]
    %v3213 = vld [vmem:[#allocation5 + $0x58] sm:$0xff]
    %v3214 = vld [vmem:[#allocation5 + $0x60] sm:$0xff]
    %v3215 = vld [vmem:[#allocation5 + $0x68] sm:$0xff]
    %v3216 = vld [vmem:[#allocation5 + $0x70] sm:$0xff]
    %v3217 = vld [vmem:[#allocation5 + $0x78] sm:$0xff]
    %3218 = vmatprep.subr.mxu0 0.0
    %3219 = vmatpush1.msra.mxu0 %v3202
    %3220 = vmatprep.subr.mxu0 0.0
    %3221 = vmatpush1.msra.mxu0 %v3203
    %3222 = vmatprep.subr.mxu0 0.0
    %3223 = vmatpush1.msra.mxu0 %v3204
    %3224 = vmatprep.subr.mxu0 0.0
    %3225 = vmatpush1.msra.mxu0 %v3205
    %3226 = vmatprep.subr.mxu0 0.0
    %3227 = vmatpush1.msra.mxu0 %v3206
    %3228 = vmatprep.subr.mxu0 0.0
    %3229 = vmatpush1.msra.mxu0 %v3207
    %3230 = vmatprep.subr.mxu0 0.0
    %3231 = vmatpush1.msra.mxu0 %v3208
    %3232 = vmatprep.subr.mxu0 0.0
    %3233 = vmatpush1.msra.mxu0 %v3209
    %3234 = vmatprep.subr.mxu0 0.0
    %3235 = vmatpush1.msra.mxu0 %v3210
    %3236 = vmatprep.subr.mxu0 0.0
    %3237 = vmatpush1.msra.mxu0 %v3211
    %3238 = vmatprep.subr.mxu0 0.0
    %3239 = vmatpush1.msra.mxu0 %v3212
    %3240 = vmatprep.subr.mxu0 0.0
    %3241 = vmatpush1.msra.mxu0 %v3213
    %3242 = vmatprep.subr.mxu0 0.0
    %3243 = vmatpush1.msra.mxu0 %v3214
    %3244 = vmatprep.subr.mxu0 0.0
    %3245 = vmatpush1.msra.mxu0 %v3215
    %3246 = vmatprep.subr.mxu0 0.0
    %3247 = vmatpush1.msra.mxu0 %v3216
    %3248 = vmatprep.subr.mxu0 0.0
    %3249 = vmatpush1.msra.mxu0 %v3217
    %3250 = vmatprep.subr.mxu0 0.0
    %3251 = vmatpush1.msra.mxu0 0.0
    %3252 = vmatprep.subr.mxu0 0.0
    %3253 = vmatpush1.msra.mxu0 0.0
    %3254 = vmatprep.subr.mxu0 0.0
    %3255 = vmatpush1.msra.mxu0 0.0
    %3256 = vmatprep.subr.mxu0 0.0
    %3257 = vmatpush1.msra.mxu0 0.0
    %3258 = vmatprep.subr.mxu0 0.0
    %3259 = vmatpush1.msra.mxu0 0.0
    %3260 = vmatprep.subr.mxu0 0.0
    %3261 = vmatpush1.msra.mxu0 0.0
    %3262 = vmatprep.subr.mxu0 0.0
    %3263 = vmatpush1.msra.mxu0 0.0
    %3264 = vmatprep.subr.mxu0 0.0
    %3265 = vmatpush1.msra.mxu0 0.0
    %3266 = vmatprep.subr.mxu0 0.0
    %3267 = vmatpush1.msra.mxu0 0.0
    %3268 = vmatprep.subr.mxu0 0.0
    %3269 = vmatpush1.msra.mxu0 0.0
    %3270 = vmatprep.subr.mxu0 0.0
    %3271 = vmatpush1.msra.mxu0 0.0
    %3272 = vmatprep.subr.mxu0 0.0
    %3273 = vmatpush1.msra.mxu0 0.0
    %3274 = vmatprep.subr.mxu0 0.0
    %3275 = vmatpush1.msra.mxu0 0.0
    %3276 = vmatprep.subr.mxu0 0.0
    %3277 = vmatpush1.msra.mxu0 0.0
    %3278 = vmatprep.subr.mxu0 0.0
    %3279 = vmatpush1.msra.mxu0 0.0
    %3280 = vmatprep.subr.mxu0 0.0
    %3281 = vmatpush1.msra.mxu0 0.0
    %3282 = vmatprep.mubr.f32.mxu0 0.0
    %3283 = vmatmul.mubr.f32.gmra.mrb[0].mxu0 %v3198
    %v3284 = vpop.f32.mrb[0].mxu0
    %v3285 = vadd.f32 0.0, %v3284
    %v3286 = vpop.f32.mrb[0].mxu0
    %3287 = vdwg.mxu0
    %v3288 = vadd.f32 %v3201, %v3285
    %v3289 = vtanh.pop %v3288
    %v3290 = vmul.f32 %v3190, %v3289
    %s3291 = scalar_lea.vmem [#allocation12], 40
    %3292 = vst [vmem:[%s3291] sm:$0xff] %v3290
    %s3293 = scalar_lea.vmem [#allocation11], 240
    %v3294 = vld [vmem:[%s3293] sm:$0xff]
    %v3295 = vld [vmem:[%s3293 + $0x8] sm:$0xff]
    %v3296 = vld [vmem:[%s3293 + $0x10] sm:$0xff]
    %v3297 = vld [vmem:[%s3293 + $0x18] sm:$0xff]
    %v3298 = vld [vmem:[%s3293 + $0x20] sm:$0xff]
    %v3299 = vld [vmem:[#allocation3] sm:$0xff]
    %v3300 = vld [vmem:[#allocation3 + $0x8] sm:$0xff]
    %v3301 = vld [vmem:[#allocation3 + $0x10] sm:$0xff]
    %v3302 = vld [vmem:[#allocation3 + $0x18] sm:$0xff]
    %v3303 = vld [vmem:[#allocation3 + $0x20] sm:$0xff]
    %v3304 = vld [vmem:[#allocation3 + $0x28] sm:$0xff]
    %v3305 = vld [vmem:[#allocation3 + $0x30] sm:$0xff]
    %v3306 = vld [vmem:[#allocation3 + $0x38] sm:$0xff]
    %v3307 = vld [vmem:[#allocation3 + $0x40] sm:$0xff]
    %v3308 = vld [vmem:[#allocation3 + $0x48] sm:$0xff]
    %v3309 = vld [vmem:[#allocation3 + $0x50] sm:$0xff]
    %v3310 = vld [vmem:[#allocation3 + $0x58] sm:$0xff]
    %v3311 = vld [vmem:[#allocation3 + $0x60] sm:$0xff]
    %v3312 = vld [vmem:[#allocation3 + $0x68] sm:$0xff]
    %v3313 = vld [vmem:[#allocation3 + $0x70] sm:$0xff]
    %v3314 = vld [vmem:[#allocation3 + $0x78] sm:$0xff]
    %v3315 = vld [vmem:[#allocation3 + $0x80] sm:$0xff]
    %v3316 = vld [vmem:[#allocation3 + $0x88] sm:$0xff]
    %v3317 = vld [vmem:[#allocation3 + $0x90] sm:$0xff]
    %v3318 = vld [vmem:[#allocation3 + $0x98] sm:$0xff]
    %v3319 = vld [vmem:[#allocation3 + $0xa0] sm:$0xff]
    %v3320 = vld [vmem:[#allocation3 + $0xa8] sm:$0xff]
    %v3321 = vld [vmem:[#allocation3 + $0xb0] sm:$0xff]
    %v3322 = vld [vmem:[#allocation3 + $0xb8] sm:$0xff]
    %v3323 = vld [vmem:[#allocation3 + $0xc0] sm:$0xff]
    %v3324 = vld [vmem:[#allocation3 + $0xc8] sm:$0xff]
    %v3325 = vld [vmem:[#allocation3 + $0xd0] sm:$0xff]
    %v3326 = vld [vmem:[#allocation3 + $0xd8] sm:$0xff]
    %v3327 = vld [vmem:[#allocation3 + $0xe0] sm:$0xff]
    %v3328 = vld [vmem:[#allocation3 + $0xe8] sm:$0xff]
    %v3329 = vld [vmem:[#allocation3 + $0xf0] sm:$0xff]
    %v3330 = vld [vmem:[#allocation3 + $0xf8] sm:$0xff]
    %v3331 = vld [vmem:[#allocation3 + $0x100] sm:$0xff]
    %v3332 = vld [vmem:[#allocation3 + $0x108] sm:$0xff]
    %v3333 = vld [vmem:[#allocation3 + $0x110] sm:$0xff]
    %v3334 = vld [vmem:[#allocation3 + $0x118] sm:$0xff]
    %v3335 = vld [vmem:[#allocation3 + $0x120] sm:$0xff]
    %v3336 = vld [vmem:[#allocation3 + $0x128] sm:$0xff]
    %v3337 = vld [vmem:[#allocation3 + $0x130] sm:$0xff]
    %v3338 = vld [vmem:[#allocation3 + $0x138] sm:$0xff]
    %v3339 = vld [vmem:[#allocation3 + $0x140] sm:$0xff]
    %v3340 = vld [vmem:[#allocation3 + $0x148] sm:$0xff]
    %v3341 = vld [vmem:[#allocation3 + $0x150] sm:$0xff]
    %v3342 = vld [vmem:[#allocation3 + $0x158] sm:$0xff]
    %v3343 = vld [vmem:[#allocation3 + $0x160] sm:$0xff]
    %v3344 = vld [vmem:[#allocation3 + $0x168] sm:$0xff]
    %v3345 = vld [vmem:[#allocation3 + $0x170] sm:$0xff]
    %v3346 = vld [vmem:[#allocation3 + $0x178] sm:$0xff]
    %v3347 = vld [vmem:[#allocation3 + $0x180] sm:$0xff]
    %v3348 = vld [vmem:[#allocation3 + $0x188] sm:$0xff]
    %v3349 = vld [vmem:[#allocation3 + $0x190] sm:$0xff]
    %v3350 = vld [vmem:[#allocation3 + $0x198] sm:$0xff]
    %v3351 = vld [vmem:[#allocation3 + $0x1a0] sm:$0xff]
    %v3352 = vld [vmem:[#allocation3 + $0x1a8] sm:$0xff]
    %v3353 = vld [vmem:[#allocation3 + $0x1b0] sm:$0xff]
    %v3354 = vld [vmem:[#allocation3 + $0x1b8] sm:$0xff]
    %v3355 = vld [vmem:[#allocation3 + $0x1c0] sm:$0xff]
    %v3356 = vld [vmem:[#allocation3 + $0x1c8] sm:$0xff]
    %v3357 = vld [vmem:[#allocation3 + $0x1d0] sm:$0xff]
    %v3358 = vld [vmem:[#allocation3 + $0x1d8] sm:$0xff]
    %v3359 = vld [vmem:[#allocation3 + $0x1e0] sm:$0xff]
    %v3360 = vld [vmem:[#allocation3 + $0x1e8] sm:$0xff]
    %v3361 = vld [vmem:[#allocation3 + $0x1f0] sm:$0xff]
    %v3362 = vld [vmem:[#allocation3 + $0x1f8] sm:$0xff]
    %v3363 = vld [vmem:[#allocation3 + $0x200] sm:$0xff]
    %v3364 = vld [vmem:[#allocation3 + $0x208] sm:$0xff]
    %v3365 = vld [vmem:[#allocation3 + $0x210] sm:$0xff]
    %v3366 = vld [vmem:[#allocation3 + $0x218] sm:$0xff]
    %v3367 = vld [vmem:[#allocation3 + $0x220] sm:$0xff]
    %v3368 = vld [vmem:[#allocation3 + $0x228] sm:$0xff]
    %v3369 = vld [vmem:[#allocation3 + $0x230] sm:$0xff]
    %v3370 = vld [vmem:[#allocation3 + $0x238] sm:$0xff]
    %v3371 = vld [vmem:[#allocation3 + $0x240] sm:$0xff]
    %v3372 = vld [vmem:[#allocation3 + $0x248] sm:$0xff]
    %v3373 = vld [vmem:[#allocation3 + $0x250] sm:$0xff]
    %v3374 = vld [vmem:[#allocation3 + $0x258] sm:$0xff]
    %v3375 = vld [vmem:[#allocation3 + $0x260] sm:$0xff]
    %v3376 = vld [vmem:[#allocation3 + $0x268] sm:$0xff]
    %v3377 = vld [vmem:[#allocation3 + $0x270] sm:$0xff]
    %v3378 = vld [vmem:[#allocation3 + $0x278] sm:$0xff]
    %3379 = vmatprep.subr.mxu0 %v3300
    %3380 = vmatpush1.msra.mxu0 %v3299
    %3381 = vmatprep.subr.mxu0 %v3305
    %3382 = vmatpush1.msra.mxu0 %v3304
    %3383 = vmatprep.subr.mxu0 %v3310
    %3384 = vmatpush1.msra.mxu0 %v3309
    %3385 = vmatprep.subr.mxu0 %v3315
    %3386 = vmatpush1.msra.mxu0 %v3314
    %3387 = vmatprep.subr.mxu0 %v3320
    %3388 = vmatpush1.msra.mxu0 %v3319
    %3389 = vmatprep.subr.mxu0 %v3325
    %3390 = vmatpush1.msra.mxu0 %v3324
    %3391 = vmatprep.subr.mxu0 %v3330
    %3392 = vmatpush1.msra.mxu0 %v3329
    %3393 = vmatprep.subr.mxu0 %v3335
    %3394 = vmatpush1.msra.mxu0 %v3334
    %3395 = vmatprep.subr.mxu0 %v3340
    %3396 = vmatpush1.msra.mxu0 %v3339
    %3397 = vmatprep.subr.mxu0 %v3345
    %3398 = vmatpush1.msra.mxu0 %v3344
    %3399 = vmatprep.subr.mxu0 %v3350
    %3400 = vmatpush1.msra.mxu0 %v3349
    %3401 = vmatprep.subr.mxu0 %v3355
    %3402 = vmatpush1.msra.mxu0 %v3354
    %3403 = vmatprep.subr.mxu0 %v3360
    %3404 = vmatpush1.msra.mxu0 %v3359
    %3405 = vmatprep.subr.mxu0 %v3365
    %3406 = vmatpush1.msra.mxu0 %v3364
    %3407 = vmatprep.subr.mxu0 %v3370
    %3408 = vmatpush1.msra.mxu0 %v3369
    %3409 = vmatprep.subr.mxu0 %v3375
    %3410 = vmatpush1.msra.mxu0 %v3374
    %3411 = vmatprep.subr.mxu0 0.0
    %3412 = vmatpush1.msra.mxu0 0.0
    %3413 = vmatprep.subr.mxu0 0.0
    %3414 = vmatpush1.msra.mxu0 0.0
    %3415 = vmatprep.subr.mxu0 0.0
    %3416 = vmatpush1.msra.mxu0 0.0
    %3417 = vmatprep.subr.mxu0 0.0
    %3418 = vmatpush1.msra.mxu0 0.0
    %3419 = vmatprep.subr.mxu0 0.0
    %3420 = vmatpush1.msra.mxu0 0.0
    %3421 = vmatprep.subr.mxu0 0.0
    %3422 = vmatpush1.msra.mxu0 0.0
    %3423 = vmatprep.subr.mxu0 0.0
    %3424 = vmatpush1.msra.mxu0 0.0
    %3425 = vmatprep.subr.mxu0 0.0
    %3426 = vmatpush1.msra.mxu0 0.0
    %3427 = vmatprep.subr.mxu0 0.0
    %3428 = vmatpush1.msra.mxu0 0.0
    %3429 = vmatprep.subr.mxu0 0.0
    %3430 = vmatpush1.msra.mxu0 0.0
    %3431 = vmatprep.subr.mxu0 0.0
    %3432 = vmatpush1.msra.mxu0 0.0
    %3433 = vmatprep.subr.mxu0 0.0
    %3434 = vmatpush1.msra.mxu0 0.0
    %3435 = vmatprep.subr.mxu0 0.0
    %3436 = vmatpush1.msra.mxu0 0.0
    %3437 = vmatprep.subr.mxu0 0.0
    %3438 = vmatpush1.msra.mxu0 0.0
    %3439 = vmatprep.subr.mxu0 0.0
    %3440 = vmatpush1.msra.mxu0 0.0
    %3441 = vmatprep.subr.mxu0 0.0
    %3442 = vmatpush1.msra.mxu0 0.0
    %3443 = vmatprep.mubr.f32.mxu0 0.0
    %3444 = vmatmul.mubr.f32.gmra.mrb[0].mxu0 %v3290
    %v3445 = vpop.f32.mrb[0].mxu0
    %v3446 = vadd.f32 0.0, %v3445
    %v3447 = vpop.f32.mrb[0].mxu0
    %v3448 = vadd.f32 0.0, %v3447
    %3449 = vdwg.mxu0
    %3450 = vmatprep.subr.mxu0 %v3302
    %3451 = vmatpush1.msra.mxu0 %v3301
    %3452 = vmatprep.subr.mxu0 %v3307
    %3453 = vmatpush1.msra.mxu0 %v3306
    %3454 = vmatprep.subr.mxu0 %v3312
    %3455 = vmatpush1.msra.mxu0 %v3311
    %3456 = vmatprep.subr.mxu0 %v3317
    %3457 = vmatpush1.msra.mxu0 %v3316
    %3458 = vmatprep.subr.mxu0 %v3322
    %3459 = vmatpush1.msra.mxu0 %v3321
    %3460 = vmatprep.subr.mxu0 %v3327
    %3461 = vmatpush1.msra.mxu0 %v3326
    %3462 = vmatprep.subr.mxu0 %v3332
    %3463 = vmatpush1.msra.mxu0 %v3331
    %3464 = vmatprep.subr.mxu0 %v3337
    %3465 = vmatpush1.msra.mxu0 %v3336
    %3466 = vmatprep.subr.mxu0 %v3342
    %3467 = vmatpush1.msra.mxu0 %v3341
    %3468 = vmatprep.subr.mxu0 %v3347
    %3469 = vmatpush1.msra.mxu0 %v3346
    %3470 = vmatprep.subr.mxu0 %v3352
    %3471 = vmatpush1.msra.mxu0 %v3351
    %3472 = vmatprep.subr.mxu0 %v3357
    %3473 = vmatpush1.msra.mxu0 %v3356
    %3474 = vmatprep.subr.mxu0 %v3362
    %3475 = vmatpush1.msra.mxu0 %v3361
    %3476 = vmatprep.subr.mxu0 %v3367
    %3477 = vmatpush1.msra.mxu0 %v3366
    %3478 = vmatprep.subr.mxu0 %v3372
    %3479 = vmatpush1.msra.mxu0 %v3371
    %3480 = vmatprep.subr.mxu0 %v3377
    %3481 = vmatpush1.msra.mxu0 %v3376
    %3482 = vmatprep.subr.mxu0 0.0
    %3483 = vmatpush1.msra.mxu0 0.0
    %3484 = vmatprep.subr.mxu0 0.0
    %3485 = vmatpush1.msra.mxu0 0.0
    %3486 = vmatprep.subr.mxu0 0.0
    %3487 = vmatpush1.msra.mxu0 0.0
    %3488 = vmatprep.subr.mxu0 0.0
    %3489 = vmatpush1.msra.mxu0 0.0
    %3490 = vmatprep.subr.mxu0 0.0
    %3491 = vmatpush1.msra.mxu0 0.0
    %3492 = vmatprep.subr.mxu0 0.0
    %3493 = vmatpush1.msra.mxu0 0.0
    %3494 = vmatprep.subr.mxu0 0.0
    %3495 = vmatpush1.msra.mxu0 0.0
    %3496 = vmatprep.subr.mxu0 0.0
    %3497 = vmatpush1.msra.mxu0 0.0
    %3498 = vmatprep.subr.mxu0 0.0
    %3499 = vmatpush1.msra.mxu0 0.0
    %3500 = vmatprep.subr.mxu0 0.0
    %3501 = vmatpush1.msra.mxu0 0.0
    %3502 = vmatprep.subr.mxu0 0.0
    %3503 = vmatpush1.msra.mxu0 0.0
    %3504 = vmatprep.subr.mxu0 0.0
    %3505 = vmatpush1.msra.mxu0 0.0
    %3506 = vmatprep.subr.mxu0 0.0
    %3507 = vmatpush1.msra.mxu0 0.0
    %3508 = vmatprep.subr.mxu0 0.0
    %3509 = vmatpush1.msra.mxu0 0.0
    %3510 = vmatprep.subr.mxu0 0.0
    %3511 = vmatpush1.msra.mxu0 0.0
    %3512 = vmatprep.subr.mxu0 0.0
    %3513 = vmatpush1.msra.mxu0 0.0
    %3514 = vmatprep.mubr.f32.mxu0 0.0
    %3515 = vmatmul.mubr.f32.gmra.mrb[0].mxu0 %v3290
    %v3516 = vpop.f32.mrb[0].mxu0
    %v3517 = vadd.f32 0.0, %v3516
    %v3518 = vpop.f32.mrb[0].mxu0
    %v3519 = vadd.f32 0.0, %v3518
    %3520 = vdwg.mxu0
    %3521 = vmatprep.subr.mxu0 0.0
    %3522 = vmatpush1.msra.mxu0 %v3303
    %3523 = vmatprep.subr.mxu0 0.0
    %3524 = vmatpush1.msra.mxu0 %v3308
    %3525 = vmatprep.subr.mxu0 0.0
    %3526 = vmatpush1.msra.mxu0 %v3313
    %3527 = vmatprep.subr.mxu0 0.0
    %3528 = vmatpush1.msra.mxu0 %v3318
    %3529 = vmatprep.subr.mxu0 0.0
    %3530 = vmatpush1.msra.mxu0 %v3323
    %3531 = vmatprep.subr.mxu0 0.0
    %3532 = vmatpush1.msra.mxu0 %v3328
    %3533 = vmatprep.subr.mxu0 0.0
    %3534 = vmatpush1.msra.mxu0 %v3333
    %3535 = vmatprep.subr.mxu0 0.0
    %3536 = vmatpush1.msra.mxu0 %v3338
    %3537 = vmatprep.subr.mxu0 0.0
    %3538 = vmatpush1.msra.mxu0 %v3343
    %3539 = vmatprep.subr.mxu0 0.0
    %3540 = vmatpush1.msra.mxu0 %v3348
    %3541 = vmatprep.subr.mxu0 0.0
    %3542 = vmatpush1.msra.mxu0 %v3353
    %3543 = vmatprep.subr.mxu0 0.0
    %3544 = vmatpush1.msra.mxu0 %v3358
    %3545 = vmatprep.subr.mxu0 0.0
    %3546 = vmatpush1.msra.mxu0 %v3363
    %3547 = vmatprep.subr.mxu0 0.0
    %3548 = vmatpush1.msra.mxu0 %v3368
    %3549 = vmatprep.subr.mxu0 0.0
    %3550 = vmatpush1.msra.mxu0 %v3373
    %3551 = vmatprep.subr.mxu0 0.0
    %3552 = vmatpush1.msra.mxu0 %v3378
    %3553 = vmatprep.subr.mxu0 0.0
    %3554 = vmatpush1.msra.mxu0 0.0
    %3555 = vmatprep.subr.mxu0 0.0
    %3556 = vmatpush1.msra.mxu0 0.0
    %3557 = vmatprep.subr.mxu0 0.0
    %3558 = vmatpush1.msra.mxu0 0.0
    %3559 = vmatprep.subr.mxu0 0.0
    %3560 = vmatpush1.msra.mxu0 0.0
    %3561 = vmatprep.subr.mxu0 0.0
    %3562 = vmatpush1.msra.mxu0 0.0
    %3563 = vmatprep.subr.mxu0 0.0
    %3564 = vmatpush1.msra.mxu0 0.0
    %3565 = vmatprep.subr.mxu0 0.0
    %3566 = vmatpush1.msra.mxu0 0.0
    %3567 = vmatprep.subr.mxu0 0.0
    %3568 = vmatpush1.msra.mxu0 0.0
    %3569 = vmatprep.subr.mxu0 0.0
    %3570 = vmatpush1.msra.mxu0 0.0
    %3571 = vmatprep.subr.mxu0 0.0
    %3572 = vmatpush1.msra.mxu0 0.0
    %3573 = vmatprep.subr.mxu0 0.0
    %3574 = vmatpush1.msra.mxu0 0.0
    %3575 = vmatprep.subr.mxu0 0.0
    %3576 = vmatpush1.msra.mxu0 0.0
    %3577 = vmatprep.subr.mxu0 0.0
    %3578 = vmatpush1.msra.mxu0 0.0
    %3579 = vmatprep.subr.mxu0 0.0
    %3580 = vmatpush1.msra.mxu0 0.0
    %3581 = vmatprep.subr.mxu0 0.0
    %3582 = vmatpush1.msra.mxu0 0.0
    %3583 = vmatprep.subr.mxu0 0.0
    %3584 = vmatpush1.msra.mxu0 0.0
    %3585 = vmatprep.mubr.f32.mxu0 0.0
    %3586 = vmatmul.mubr.f32.gmra.mrb[0].mxu0 %v3290
    %v3587 = vpop.f32.mrb[0].mxu0
    %v3588 = vadd.f32 0.0, %v3587
    %v3589 = vpop.f32.mrb[0].mxu0
    %3590 = vdwg.mxu0
    %v3591 = vadd.f32 %v3294, %v3446
    %v3592 = vadd.f32 %v3295, %v3448
    %v3593 = vadd.f32 %v3296, %v3517
    %v3594 = vadd.f32 %v3297, %v3519
    %v3595 = vadd.f32 %v3298, %v3588
    %v3596 = vxor.u32 %v3591, 2147483648
    %v3597 = vmul.f32 %v3596, 1.442695
    %v3598 = vpow.pop %v3597
    %v3599 = vadd.f32 %v3598, 1.0
    %v3600 = vrcp.pop %v3599
    %v3601 = vmul.f32 1.0, %v3600
    %v3602 = vxor.u32 %v3592, 2147483648
    %v3603 = vmul.f32 %v3602, 1.442695
    %v3604 = vpow.pop %v3603
    %v3605 = vadd.f32 %v3604, 1.0
    %v3606 = vrcp.pop %v3605
    %v3607 = vmul.f32 1.0, %v3606
    %v3608 = vxor.u32 %v3593, 2147483648
    %v3609 = vmul.f32 %v3608, 1.442695
    %v3610 = vpow.pop %v3609
    %v3611 = vadd.f32 %v3610, 1.0
    %v3612 = vrcp.pop %v3611
    %v3613 = vmul.f32 1.0, %v3612
    %v3614 = vtanh.pop %v3594
    %v3615 = vxor.u32 %v3595, 2147483648
    %v3616 = vmul.f32 %v3615, 1.442695
    %v3617 = vpow.pop %v3616
    %v3618 = vadd.f32 %v3617, 1.0
    %v3619 = vrcp.pop %v3618
    %v3620 = vmul.f32 1.0, %v3619
    %v3621 = vmul.f32 %v3620, %v3198
    %v3622 = vmul.f32 %v3607, %v3288
    %v3623 = vmul.f32 %v3601, %v3614
    %v3624 = vadd.f32 %v3622, %v3623
    %v3625 = vld [vmem:[#allocation5] sm:$0xff]
    %v3626 = vld [vmem:[#allocation5 + $0x8] sm:$0xff]
    %v3627 = vld [vmem:[#allocation5 + $0x10] sm:$0xff]
    %v3628 = vld [vmem:[#allocation5 + $0x18] sm:$0xff]
    %v3629 = vld [vmem:[#allocation5 + $0x20] sm:$0xff]
    %v3630 = vld [vmem:[#allocation5 + $0x28] sm:$0xff]
    %v3631 = vld [vmem:[#allocation5 + $0x30] sm:$0xff]
    %v3632 = vld [vmem:[#allocation5 + $0x38] sm:$0xff]
    %v3633 = vld [vmem:[#allocation5 + $0x40] sm:$0xff]
    %v3634 = vld [vmem:[#allocation5 + $0x48] sm:$0xff]
    %v3635 = vld [vmem:[#allocation5 + $0x50] sm:$0xff]
    %v3636 = vld [vmem:[#allocation5 + $0x58] sm:$0xff]
    %v3637 = vld [vmem:[#allocation5 + $0x60] sm:$0xff]
    %v3638 = vld [vmem:[#allocation5 + $0x68] sm:$0xff]
    %v3639 = vld [vmem:[#allocation5 + $0x70] sm:$0xff]
    %v3640 = vld [vmem:[#allocation5 + $0x78] sm:$0xff]
    %3641 = vmatprep.subr.mxu0 0.0
    %3642 = vmatpush1.msra.mxu0 %v3625
    %3643 = vmatprep.subr.mxu0 0.0
    %3644 = vmatpush1.msra.mxu0 %v3626
    %3645 = vmatprep.subr.mxu0 0.0
    %3646 = vmatpush1.msra.mxu0 %v3627
    %3647 = vmatprep.subr.mxu0 0.0
    %3648 = vmatpush1.msra.mxu0 %v3628
    %3649 = vmatprep.subr.mxu0 0.0
    %3650 = vmatpush1.msra.mxu0 %v3629
    %3651 = vmatprep.subr.mxu0 0.0
    %3652 = vmatpush1.msra.mxu0 %v3630
    %3653 = vmatprep.subr.mxu0 0.0
    %3654 = vmatpush1.msra.mxu0 %v3631
    %3655 = vmatprep.subr.mxu0 0.0
    %3656 = vmatpush1.msra.mxu0 %v3632
    %3657 = vmatprep.subr.mxu0 0.0
    %3658 = vmatpush1.msra.mxu0 %v3633
    %3659 = vmatprep.subr.mxu0 0.0
    %3660 = vmatpush1.msra.mxu0 %v3634
    %3661 = vmatprep.subr.mxu0 0.0
    %3662 = vmatpush1.msra.mxu0 %v3635
    %3663 = vmatprep.subr.mxu0 0.0
    %3664 = vmatpush1.msra.mxu0 %v3636
    %3665 = vmatprep.subr.mxu0 0.0
    %3666 = vmatpush1.msra.mxu0 %v3637
    %3667 = vmatprep.subr.mxu0 0.0
    %3668 = vmatpush1.msra.mxu0 %v3638
    %3669 = vmatprep.subr.mxu0 0.0
    %3670 = vmatpush1.msra.mxu0 %v3639
    %3671 = vmatprep.subr.mxu0 0.0
    %3672 = vmatpush1.msra.mxu0 %v3640
    %3673 = vmatprep.subr.mxu0 0.0
    %3674 = vmatpush1.msra.mxu0 0.0
    %3675 = vmatprep.subr.mxu0 0.0
    %3676 = vmatpush1.msra.mxu0 0.0
    %3677 = vmatprep.subr.mxu0 0.0
    %3678 = vmatpush1.msra.mxu0 0.0
    %3679 = vmatprep.subr.mxu0 0.0
    %3680 = vmatpush1.msra.mxu0 0.0
    %3681 = vmatprep.subr.mxu0 0.0
    %3682 = vmatpush1.msra.mxu0 0.0
    %3683 = vmatprep.subr.mxu0 0.0
    %3684 = vmatpush1.msra.mxu0 0.0
    %3685 = vmatprep.subr.mxu0 0.0
    %3686 = vmatpush1.msra.mxu0 0.0
    %3687 = vmatprep.subr.mxu0 0.0
    %3688 = vmatpush1.msra.mxu0 0.0
    %3689 = vmatprep.subr.mxu0 0.0
    %3690 = vmatpush1.msra.mxu0 0.0
    %3691 = vmatprep.subr.mxu0 0.0
    %3692 = vmatpush1.msra.mxu0 0.0
    %3693 = vmatprep.subr.mxu0 0.0
    %3694 = vmatpush1.msra.mxu0 0.0
    %3695 = vmatprep.subr.mxu0 0.0
    %3696 = vmatpush1.msra.mxu0 0.0
    %3697 = vmatprep.subr.mxu0 0.0
    %3698 = vmatpush1.msra.mxu0 0.0
    %3699 = vmatprep.subr.mxu0 0.0
    %3700 = vmatpush1.msra.mxu0 0.0
    %3701 = vmatprep.subr.mxu0 0.0
    %3702 = vmatpush1.msra.mxu0 0.0
    %3703 = vmatprep.subr.mxu0 0.0
    %3704 = vmatpush1.msra.mxu0 0.0
    %3705 = vmatprep.mubr.f32.mxu0 0.0
    %3706 = vmatmul.mubr.f32.gmra.mrb[0].mxu0 %v3621
    %v3707 = vpop.f32.mrb[0].mxu0
    %v3708 = vadd.f32 0.0, %v3707
    %v3709 = vpop.f32.mrb[0].mxu0
    %3710 = vdwg.mxu0
    %v3711 = vadd.f32 %v3624, %v3708
    %v3712 = vtanh.pop %v3711
    %v3713 = vmul.f32 %v3613, %v3712
    %s3714 = scalar_lea.vmem [#allocation12], 48
    %3715 = vst [vmem:[%s3714] sm:$0xff] %v3713
    %s3716 = scalar_lea.vmem [#allocation11], 280
    %v3717 = vld [vmem:[%s3716] sm:$0xff]
    %v3718 = vld [vmem:[%s3716 + $0x8] sm:$0xff]
    %v3719 = vld [vmem:[%s3716 + $0x10] sm:$0xff]
    %v3720 = vld [vmem:[%s3716 + $0x18] sm:$0xff]
    %v3721 = vld [vmem:[%s3716 + $0x20] sm:$0xff]
    %v3722 = vld [vmem:[#allocation3] sm:$0xff]
    %v3723 = vld [vmem:[#allocation3 + $0x8] sm:$0xff]
    %v3724 = vld [vmem:[#allocation3 + $0x10] sm:$0xff]
    %v3725 = vld [vmem:[#allocation3 + $0x18] sm:$0xff]
    %v3726 = vld [vmem:[#allocation3 + $0x20] sm:$0xff]
    %v3727 = vld [vmem:[#allocation3 + $0x28] sm:$0xff]
    %v3728 = vld [vmem:[#allocation3 + $0x30] sm:$0xff]
    %v3729 = vld [vmem:[#allocation3 + $0x38] sm:$0xff]
    %v3730 = vld [vmem:[#allocation3 + $0x40] sm:$0xff]
    %v3731 = vld [vmem:[#allocation3 + $0x48] sm:$0xff]
    %v3732 = vld [vmem:[#allocation3 + $0x50] sm:$0xff]
    %v3733 = vld [vmem:[#allocation3 + $0x58] sm:$0xff]
    %v3734 = vld [vmem:[#allocation3 + $0x60] sm:$0xff]
    %v3735 = vld [vmem:[#allocation3 + $0x68] sm:$0xff]
    %v3736 = vld [vmem:[#allocation3 + $0x70] sm:$0xff]
    %v3737 = vld [vmem:[#allocation3 + $0x78] sm:$0xff]
    %v3738 = vld [vmem:[#allocation3 + $0x80] sm:$0xff]
    %v3739 = vld [vmem:[#allocation3 + $0x88] sm:$0xff]
    %v3740 = vld [vmem:[#allocation3 + $0x90] sm:$0xff]
    %v3741 = vld [vmem:[#allocation3 + $0x98] sm:$0xff]
    %v3742 = vld [vmem:[#allocation3 + $0xa0] sm:$0xff]
    %v3743 = vld [vmem:[#allocation3 + $0xa8] sm:$0xff]
    %v3744 = vld [vmem:[#allocation3 + $0xb0] sm:$0xff]
    %v3745 = vld [vmem:[#allocation3 + $0xb8] sm:$0xff]
    %v3746 = vld [vmem:[#allocation3 + $0xc0] sm:$0xff]
    %v3747 = vld [vmem:[#allocation3 + $0xc8] sm:$0xff]
    %v3748 = vld [vmem:[#allocation3 + $0xd0] sm:$0xff]
    %v3749 = vld [vmem:[#allocation3 + $0xd8] sm:$0xff]
    %v3750 = vld [vmem:[#allocation3 + $0xe0] sm:$0xff]
    %v3751 = vld [vmem:[#allocation3 + $0xe8] sm:$0xff]
    %v3752 = vld [vmem:[#allocation3 + $0xf0] sm:$0xff]
    %v3753 = vld [vmem:[#allocation3 + $0xf8] sm:$0xff]
    %v3754 = vld [vmem:[#allocation3 + $0x100] sm:$0xff]
    %v3755 = vld [vmem:[#allocation3 + $0x108] sm:$0xff]
    %v3756 = vld [vmem:[#allocation3 + $0x110] sm:$0xff]
    %v3757 = vld [vmem:[#allocation3 + $0x118] sm:$0xff]
    %v3758 = vld [vmem:[#allocation3 + $0x120] sm:$0xff]
    %v3759 = vld [vmem:[#allocation3 + $0x128] sm:$0xff]
    %v3760 = vld [vmem:[#allocation3 + $0x130] sm:$0xff]
    %v3761 = vld [vmem:[#allocation3 + $0x138] sm:$0xff]
    %v3762 = vld [vmem:[#allocation3 + $0x140] sm:$0xff]
    %v3763 = vld [vmem:[#allocation3 + $0x148] sm:$0xff]
    %v3764 = vld [vmem:[#allocation3 + $0x150] sm:$0xff]
    %v3765 = vld [vmem:[#allocation3 + $0x158] sm:$0xff]
    %v3766 = vld [vmem:[#allocation3 + $0x160] sm:$0xff]
    %v3767 = vld [vmem:[#allocation3 + $0x168] sm:$0xff]
    %v3768 = vld [vmem:[#allocation3 + $0x170] sm:$0xff]
    %v3769 = vld [vmem:[#allocation3 + $0x178] sm:$0xff]
    %v3770 = vld [vmem:[#allocation3 + $0x180] sm:$0xff]
    %v3771 = vld [vmem:[#allocation3 + $0x188] sm:$0xff]
    %v3772 = vld [vmem:[#allocation3 + $0x190] sm:$0xff]
    %v3773 = vld [vmem:[#allocation3 + $0x198] sm:$0xff]
    %v3774 = vld [vmem:[#allocation3 + $0x1a0] sm:$0xff]
    %v3775 = vld [vmem:[#allocation3 + $0x1a8] sm:$0xff]
    %v3776 = vld [vmem:[#allocation3 + $0x1b0] sm:$0xff]
    %v3777 = vld [vmem:[#allocation3 + $0x1b8] sm:$0xff]
    %v3778 = vld [vmem:[#allocation3 + $0x1c0] sm:$0xff]
    %v3779 = vld [vmem:[#allocation3 + $0x1c8] sm:$0xff]
    %v3780 = vld [vmem:[#allocation3 + $0x1d0] sm:$0xff]
    %v3781 = vld [vmem:[#allocation3 + $0x1d8] sm:$0xff]
    %v3782 = vld [vmem:[#allocation3 + $0x1e0] sm:$0xff]
    %v3783 = vld [vmem:[#allocation3 + $0x1e8] sm:$0xff]
    %v3784 = vld [vmem:[#allocation3 + $0x1f0] sm:$0xff]
    %v3785 = vld [vmem:[#allocation3 + $0x1f8] sm:$0xff]
    %v3786 = vld [vmem:[#allocation3 + $0x200] sm:$0xff]
    %v3787 = vld [vmem:[#allocation3 + $0x208] sm:$0xff]
    %v3788 = vld [vmem:[#allocation3 + $0x210] sm:$0xff]
    %v3789 = vld [vmem:[#allocation3 + $0x218] sm:$0xff]
    %v3790 = vld [vmem:[#allocation3 + $0x220] sm:$0xff]
    %v3791 = vld [vmem:[#allocation3 + $0x228] sm:$0xff]
    %v3792 = vld [vmem:[#allocation3 + $0x230] sm:$0xff]
    %v3793 = vld [vmem:[#allocation3 + $0x238] sm:$0xff]
    %v3794 = vld [vmem:[#allocation3 + $0x240] sm:$0xff]
    %v3795 = vld [vmem:[#allocation3 + $0x248] sm:$0xff]
    %v3796 = vld [vmem:[#allocation3 + $0x250] sm:$0xff]
    %v3797 = vld [vmem:[#allocation3 + $0x258] sm:$0xff]
    %v3798 = vld [vmem:[#allocation3 + $0x260] sm:$0xff]
    %v3799 = vld [vmem:[#allocation3 + $0x268] sm:$0xff]
    %v3800 = vld [vmem:[#allocation3 + $0x270] sm:$0xff]
    %v3801 = vld [vmem:[#allocation3 + $0x278] sm:$0xff]
    %3802 = vmatprep.subr.mxu0 %v3723
    %3803 = vmatpush1.msra.mxu0 %v3722
    %3804 = vmatprep.subr.mxu0 %v3728
    %3805 = vmatpush1.msra.mxu0 %v3727
    %3806 = vmatprep.subr.mxu0 %v3733
    %3807 = vmatpush1.msra.mxu0 %v3732
    %3808 = vmatprep.subr.mxu0 %v3738
    %3809 = vmatpush1.msra.mxu0 %v3737
    %3810 = vmatprep.subr.mxu0 %v3743
    %3811 = vmatpush1.msra.mxu0 %v3742
    %3812 = vmatprep.subr.mxu0 %v3748
    %3813 = vmatpush1.msra.mxu0 %v3747
    %3814 = vmatprep.subr.mxu0 %v3753
    %3815 = vmatpush1.msra.mxu0 %v3752
    %3816 = vmatprep.subr.mxu0 %v3758
    %3817 = vmatpush1.msra.mxu0 %v3757
    %3818 = vmatprep.subr.mxu0 %v3763
    %3819 = vmatpush1.msra.mxu0 %v3762
    %3820 = vmatprep.subr.mxu0 %v3768
    %3821 = vmatpush1.msra.mxu0 %v3767
    %3822 = vmatprep.subr.mxu0 %v3773
    %3823 = vmatpush1.msra.mxu0 %v3772
    %3824 = vmatprep.subr.mxu0 %v3778
    %3825 = vmatpush1.msra.mxu0 %v3777
    %3826 = vmatprep.subr.mxu0 %v3783
    %3827 = vmatpush1.msra.mxu0 %v3782
    %3828 = vmatprep.subr.mxu0 %v3788
    %3829 = vmatpush1.msra.mxu0 %v3787
    %3830 = vmatprep.subr.mxu0 %v3793
    %3831 = vmatpush1.msra.mxu0 %v3792
    %3832 = vmatprep.subr.mxu0 %v3798
    %3833 = vmatpush1.msra.mxu0 %v3797
    %3834 = vmatprep.subr.mxu0 0.0
    %3835 = vmatpush1.msra.mxu0 0.0
    %3836 = vmatprep.subr.mxu0 0.0
    %3837 = vmatpush1.msra.mxu0 0.0
    %3838 = vmatprep.subr.mxu0 0.0
    %3839 = vmatpush1.msra.mxu0 0.0
    %3840 = vmatprep.subr.mxu0 0.0
    %3841 = vmatpush1.msra.mxu0 0.0
    %3842 = vmatprep.subr.mxu0 0.0
    %3843 = vmatpush1.msra.mxu0 0.0
    %3844 = vmatprep.subr.mxu0 0.0
    %3845 = vmatpush1.msra.mxu0 0.0
    %3846 = vmatprep.subr.mxu0 0.0
    %3847 = vmatpush1.msra.mxu0 0.0
    %3848 = vmatprep.subr.mxu0 0.0
    %3849 = vmatpush1.msra.mxu0 0.0
    %3850 = vmatprep.subr.mxu0 0.0
    %3851 = vmatpush1.msra.mxu0 0.0
    %3852 = vmatprep.subr.mxu0 0.0
    %3853 = vmatpush1.msra.mxu0 0.0
    %3854 = vmatprep.subr.mxu0 0.0
    %3855 = vmatpush1.msra.mxu0 0.0
    %3856 = vmatprep.subr.mxu0 0.0
    %3857 = vmatpush1.msra.mxu0 0.0
    %3858 = vmatprep.subr.mxu0 0.0
    %3859 = vmatpush1.msra.mxu0 0.0
    %3860 = vmatprep.subr.mxu0 0.0
    %3861 = vmatpush1.msra.mxu0 0.0
    %3862 = vmatprep.subr.mxu0 0.0
    %3863 = vmatpush1.msra.mxu0 0.0
    %3864 = vmatprep.subr.mxu0 0.0
    %3865 = vmatpush1.msra.mxu0 0.0
    %3866 = vmatprep.mubr.f32.mxu0 0.0
    %3867 = vmatmul.mubr.f32.gmra.mrb[0].mxu0 %v3713
    %v3868 = vpop.f32.mrb[0].mxu0
    %v3869 = vadd.f32 0.0, %v3868
    %v3870 = vpop.f32.mrb[0].mxu0
    %v3871 = vadd.f32 0.0, %v3870
    %3872 = vdwg.mxu0
    %3873 = vmatprep.subr.mxu0 %v3725
    %3874 = vmatpush1.msra.mxu0 %v3724
    %3875 = vmatprep.subr.mxu0 %v3730
    %3876 = vmatpush1.msra.mxu0 %v3729
    %3877 = vmatprep.subr.mxu0 %v3735
    %3878 = vmatpush1.msra.mxu0 %v3734
    %3879 = vmatprep.subr.mxu0 %v3740
    %3880 = vmatpush1.msra.mxu0 %v3739
    %3881 = vmatprep.subr.mxu0 %v3745
    %3882 = vmatpush1.msra.mxu0 %v3744
    %3883 = vmatprep.subr.mxu0 %v3750
    %3884 = vmatpush1.msra.mxu0 %v3749
    %3885 = vmatprep.subr.mxu0 %v3755
    %3886 = vmatpush1.msra.mxu0 %v3754
    %3887 = vmatprep.subr.mxu0 %v3760
    %3888 = vmatpush1.msra.mxu0 %v3759
    %3889 = vmatprep.subr.mxu0 %v3765
    %3890 = vmatpush1.msra.mxu0 %v3764
    %3891 = vmatprep.subr.mxu0 %v3770
    %3892 = vmatpush1.msra.mxu0 %v3769
    %3893 = vmatprep.subr.mxu0 %v3775
    %3894 = vmatpush1.msra.mxu0 %v3774
    %3895 = vmatprep.subr.mxu0 %v3780
    %3896 = vmatpush1.msra.mxu0 %v3779
    %3897 = vmatprep.subr.mxu0 %v3785
    %3898 = vmatpush1.msra.mxu0 %v3784
    %3899 = vmatprep.subr.mxu0 %v3790
    %3900 = vmatpush1.msra.mxu0 %v3789
    %3901 = vmatprep.subr.mxu0 %v3795
    %3902 = vmatpush1.msra.mxu0 %v3794
    %3903 = vmatprep.subr.mxu0 %v3800
    %3904 = vmatpush1.msra.mxu0 %v3799
    %3905 = vmatprep.subr.mxu0 0.0
    %3906 = vmatpush1.msra.mxu0 0.0
    %3907 = vmatprep.subr.mxu0 0.0
    %3908 = vmatpush1.msra.mxu0 0.0
    %3909 = vmatprep.subr.mxu0 0.0
    %3910 = vmatpush1.msra.mxu0 0.0
    %3911 = vmatprep.subr.mxu0 0.0
    %3912 = vmatpush1.msra.mxu0 0.0
    %3913 = vmatprep.subr.mxu0 0.0
    %3914 = vmatpush1.msra.mxu0 0.0
    %3915 = vmatprep.subr.mxu0 0.0
    %3916 = vmatpush1.msra.mxu0 0.0
    %3917 = vmatprep.subr.mxu0 0.0
    %3918 = vmatpush1.msra.mxu0 0.0
    %3919 = vmatprep.subr.mxu0 0.0
    %3920 = vmatpush1.msra.mxu0 0.0
    %3921 = vmatprep.subr.mxu0 0.0
    %3922 = vmatpush1.msra.mxu0 0.0
    %3923 = vmatprep.subr.mxu0 0.0
    %3924 = vmatpush1.msra.mxu0 0.0
    %3925 = vmatprep.subr.mxu0 0.0
    %3926 = vmatpush1.msra.mxu0 0.0
    %3927 = vmatprep.subr.mxu0 0.0
    %3928 = vmatpush1.msra.mxu0 0.0
    %3929 = vmatprep.subr.mxu0 0.0
    %3930 = vmatpush1.msra.mxu0 0.0
    %3931 = vmatprep.subr.mxu0 0.0
    %3932 = vmatpush1.msra.mxu0 0.0
    %3933 = vmatprep.subr.mxu0 0.0
    %3934 = vmatpush1.msra.mxu0 0.0
    %3935 = vmatprep.subr.mxu0 0.0
    %3936 = vmatpush1.msra.mxu0 0.0
    %3937 = vmatprep.mubr.f32.mxu0 0.0
    %3938 = vmatmul.mubr.f32.gmra.mrb[0].mxu0 %v3713
    %v3939 = vpop.f32.mrb[0].mxu0
    %v3940 = vadd.f32 0.0, %v3939
    %v3941 = vpop.f32.mrb[0].mxu0
    %v3942 = vadd.f32 0.0, %v3941
    %3943 = vdwg.mxu0
    %3944 = vmatprep.subr.mxu0 0.0
    %3945 = vmatpush1.msra.mxu0 %v3726
    %3946 = vmatprep.subr.mxu0 0.0
    %3947 = vmatpush1.msra.mxu0 %v3731
    %3948 = vmatprep.subr.mxu0 0.0
    %3949 = vmatpush1.msra.mxu0 %v3736
    %3950 = vmatprep.subr.mxu0 0.0
    %3951 = vmatpush1.msra.mxu0 %v3741
    %3952 = vmatprep.subr.mxu0 0.0
    %3953 = vmatpush1.msra.mxu0 %v3746
    %3954 = vmatprep.subr.mxu0 0.0
    %3955 = vmatpush1.msra.mxu0 %v3751
    %3956 = vmatprep.subr.mxu0 0.0
    %3957 = vmatpush1.msra.mxu0 %v3756
    %3958 = vmatprep.subr.mxu0 0.0
    %3959 = vmatpush1.msra.mxu0 %v3761
    %3960 = vmatprep.subr.mxu0 0.0
    %3961 = vmatpush1.msra.mxu0 %v3766
    %3962 = vmatprep.subr.mxu0 0.0
    %3963 = vmatpush1.msra.mxu0 %v3771
    %3964 = vmatprep.subr.mxu0 0.0
    %3965 = vmatpush1.msra.mxu0 %v3776
    %3966 = vmatprep.subr.mxu0 0.0
    %3967 = vmatpush1.msra.mxu0 %v3781
    %3968 = vmatprep.subr.mxu0 0.0
    %3969 = vmatpush1.msra.mxu0 %v3786
    %3970 = vmatprep.subr.mxu0 0.0
    %3971 = vmatpush1.msra.mxu0 %v3791
    %3972 = vmatprep.subr.mxu0 0.0
    %3973 = vmatpush1.msra.mxu0 %v3796
    %3974 = vmatprep.subr.mxu0 0.0
    %3975 = vmatpush1.msra.mxu0 %v3801
    %3976 = vmatprep.subr.mxu0 0.0
    %3977 = vmatpush1.msra.mxu0 0.0
    %3978 = vmatprep.subr.mxu0 0.0
    %3979 = vmatpush1.msra.mxu0 0.0
    %3980 = vmatprep.subr.mxu0 0.0
    %3981 = vmatpush1.msra.mxu0 0.0
    %3982 = vmatprep.subr.mxu0 0.0
    %3983 = vmatpush1.msra.mxu0 0.0
    %3984 = vmatprep.subr.mxu0 0.0
    %3985 = vmatpush1.msra.mxu0 0.0
    %3986 = vmatprep.subr.mxu0 0.0
    %3987 = vmatpush1.msra.mxu0 0.0
    %3988 = vmatprep.subr.mxu0 0.0
    %3989 = vmatpush1.msra.mxu0 0.0
    %3990 = vmatprep.subr.mxu0 0.0
    %3991 = vmatpush1.msra.mxu0 0.0
    %3992 = vmatprep.subr.mxu0 0.0
    %3993 = vmatpush1.msra.mxu0 0.0
    %3994 = vmatprep.subr.mxu0 0.0
    %3995 = vmatpush1.msra.mxu0 0.0
    %3996 = vmatprep.subr.mxu0 0.0
    %3997 = vmatpush1.msra.mxu0 0.0
    %3998 = vmatprep.subr.mxu0 0.0
    %3999 = vmatpush1.msra.mxu0 0.0
    %4000 = vmatprep.subr.mxu0 0.0
    %4001 = vmatpush1.msra.mxu0 0.0
    %4002 = vmatprep.subr.mxu0 0.0
    %4003 = vmatpush1.msra.mxu0 0.0
    %4004 = vmatprep.subr.mxu0 0.0
    %4005 = vmatpush1.msra.mxu0 0.0
    %4006 = vmatprep.subr.mxu0 0.0
    %4007 = vmatpush1.msra.mxu0 0.0
    %4008 = vmatprep.mubr.f32.mxu0 0.0
    %4009 = vmatmul.mubr.f32.gmra.mrb[0].mxu0 %v3713
    %v4010 = vpop.f32.mrb[0].mxu0
    %v4011 = vadd.f32 0.0, %v4010
    %v4012 = vpop.f32.mrb[0].mxu0
    %4013 = vdwg.mxu0
    %v4014 = vadd.f32 %v3717, %v3869
    %v4015 = vadd.f32 %v3718, %v3871
    %v4016 = vadd.f32 %v3719, %v3940
    %v4017 = vadd.f32 %v3720, %v3942
    %v4018 = vadd.f32 %v3721, %v4011
    %v4019 = vxor.u32 %v4014, 2147483648
    %v4020 = vmul.f32 %v4019, 1.442695
    %v4021 = vpow.pop %v4020
    %v4022 = vadd.f32 %v4021, 1.0
    %v4023 = vrcp.pop %v4022
    %v4024 = vmul.f32 1.0, %v4023
    %v4025 = vxor.u32 %v4015, 2147483648
    %v4026 = vmul.f32 %v4025, 1.442695
    %v4027 = vpow.pop %v4026
    %v4028 = vadd.f32 %v4027, 1.0
    %v4029 = vrcp.pop %v4028
    %v4030 = vmul.f32 1.0, %v4029
    %v4031 = vxor.u32 %v4016, 2147483648
    %v4032 = vmul.f32 %v4031, 1.442695
    %v4033 = vpow.pop %v4032
    %v4034 = vadd.f32 %v4033, 1.0
    %v4035 = vrcp.pop %v4034
    %v4036 = vmul.f32 1.0, %v4035
    %v4037 = vtanh.pop %v4017
    %v4038 = vxor.u32 %v4018, 2147483648
    %v4039 = vmul.f32 %v4038, 1.442695
    %v4040 = vpow.pop %v4039
    %v4041 = vadd.f32 %v4040, 1.0
    %v4042 = vrcp.pop %v4041
    %v4043 = vmul.f32 1.0, %v4042
    %v4044 = vmul.f32 %v4043, %v3621
    %v4045 = vmul.f32 %v4030, %v3711
    %v4046 = vmul.f32 %v4024, %v4037
    %v4047 = vadd.f32 %v4045, %v4046
    %v4048 = vld [vmem:[#allocation5] sm:$0xff]
    %v4049 = vld [vmem:[#allocation5 + $0x8] sm:$0xff]
    %v4050 = vld [vmem:[#allocation5 + $0x10] sm:$0xff]
    %v4051 = vld [vmem:[#allocation5 + $0x18] sm:$0xff]
    %v4052 = vld [vmem:[#allocation5 + $0x20] sm:$0xff]
    %v4053 = vld [vmem:[#allocation5 + $0x28] sm:$0xff]
    %v4054 = vld [vmem:[#allocation5 + $0x30] sm:$0xff]
    %v4055 = vld [vmem:[#allocation5 + $0x38] sm:$0xff]
    %v4056 = vld [vmem:[#allocation5 + $0x40] sm:$0xff]
    %v4057 = vld [vmem:[#allocation5 + $0x48] sm:$0xff]
    %v4058 = vld [vmem:[#allocation5 + $0x50] sm:$0xff]
    %v4059 = vld [vmem:[#allocation5 + $0x58] sm:$0xff]
    %v4060 = vld [vmem:[#allocation5 + $0x60] sm:$0xff]
    %v4061 = vld [vmem:[#allocation5 + $0x68] sm:$0xff]
    %v4062 = vld [vmem:[#allocation5 + $0x70] sm:$0xff]
    %v4063 = vld [vmem:[#allocation5 + $0x78] sm:$0xff]
    %4064 = vmatprep.subr.mxu0 0.0
    %4065 = vmatpush1.msra.mxu0 %v4048
    %4066 = vmatprep.subr.mxu0 0.0
    %4067 = vmatpush1.msra.mxu0 %v4049
    %4068 = vmatprep.subr.mxu0 0.0
    %4069 = vmatpush1.msra.mxu0 %v4050
    %4070 = vmatprep.subr.mxu0 0.0
    %4071 = vmatpush1.msra.mxu0 %v4051
    %4072 = vmatprep.subr.mxu0 0.0
    %4073 = vmatpush1.msra.mxu0 %v4052
    %4074 = vmatprep.subr.mxu0 0.0
    %4075 = vmatpush1.msra.mxu0 %v4053
    %4076 = vmatprep.subr.mxu0 0.0
    %4077 = vmatpush1.msra.mxu0 %v4054
    %4078 = vmatprep.subr.mxu0 0.0
    %4079 = vmatpush1.msra.mxu0 %v4055
    %4080 = vmatprep.subr.mxu0 0.0
    %4081 = vmatpush1.msra.mxu0 %v4056
    %4082 = vmatprep.subr.mxu0 0.0
    %4083 = vmatpush1.msra.mxu0 %v4057
    %4084 = vmatprep.subr.mxu0 0.0
    %4085 = vmatpush1.msra.mxu0 %v4058
    %4086 = vmatprep.subr.mxu0 0.0
    %4087 = vmatpush1.msra.mxu0 %v4059
    %4088 = vmatprep.subr.mxu0 0.0
    %4089 = vmatpush1.msra.mxu0 %v4060
    %4090 = vmatprep.subr.mxu0 0.0
    %4091 = vmatpush1.msra.mxu0 %v4061
    %4092 = vmatprep.subr.mxu0 0.0
    %4093 = vmatpush1.msra.mxu0 %v4062
    %4094 = vmatprep.subr.mxu0 0.0
    %4095 = vmatpush1.msra.mxu0 %v4063
    %4096 = vmatprep.subr.mxu0 0.0
    %4097 = vmatpush1.msra.mxu0 0.0
    %4098 = vmatprep.subr.mxu0 0.0
    %4099 = vmatpush1.msra.mxu0 0.0
    %4100 = vmatprep.subr.mxu0 0.0
    %4101 = vmatpush1.msra.mxu0 0.0
    %4102 = vmatprep.subr.mxu0 0.0
    %4103 = vmatpush1.msra.mxu0 0.0
    %4104 = vmatprep.subr.mxu0 0.0
    %4105 = vmatpush1.msra.mxu0 0.0
    %4106 = vmatprep.subr.mxu0 0.0
    %4107 = vmatpush1.msra.mxu0 0.0
    %4108 = vmatprep.subr.mxu0 0.0
    %4109 = vmatpush1.msra.mxu0 0.0
    %4110 = vmatprep.subr.mxu0 0.0
    %4111 = vmatpush1.msra.mxu0 0.0
    %4112 = vmatprep.subr.mxu0 0.0
    %4113 = vmatpush1.msra.mxu0 0.0
    %4114 = vmatprep.subr.mxu0 0.0
    %4115 = vmatpush1.msra.mxu0 0.0
    %4116 = vmatprep.subr.mxu0 0.0
    %4117 = vmatpush1.msra.mxu0 0.0
    %4118 = vmatprep.subr.mxu0 0.0
    %4119 = vmatpush1.msra.mxu0 0.0
    %4120 = vmatprep.subr.mxu0 0.0
    %4121 = vmatpush1.msra.mxu0 0.0
    %4122 = vmatprep.subr.mxu0 0.0
    %4123 = vmatpush1.msra.mxu0 0.0
    %4124 = vmatprep.subr.mxu0 0.0
    %4125 = vmatpush1.msra.mxu0 0.0
    %4126 = vmatprep.subr.mxu0 0.0
    %4127 = vmatpush1.msra.mxu0 0.0
    %4128 = vmatprep.mubr.f32.mxu0 0.0
    %4129 = vmatmul.mubr.f32.gmra.mrb[0].mxu0 %v4044
    %v4130 = vpop.f32.mrb[0].mxu0
    %v4131 = vadd.f32 0.0, %v4130
    %v4132 = vpop.f32.mrb[0].mxu0
    %4133 = vdwg.mxu0
    %v4134 = vadd.f32 %v4047, %v4131
    %v4135 = vtanh.pop %v4134
    %v4136 = vmul.f32 %v4036, %v4135
    %s4137 = scalar_lea.vmem [#allocation12], 56
    %4138 = vst [vmem:[%s4137] sm:$0xff] %v4136
    %4139 = vst [vmem:[#allocation8] sm:$0xff] %v4136
    %4140 = vst [vmem:[#allocation9] sm:$0xff] %v4134
    %4141 = vst [vmem:[#allocation10] sm:$0xff] %v4044
    // Predicated region
    $region154: #{tpu_custom_call.1} parent=1 // pred_check
      %p4142 = pneg %p32
    $region155: #{tpu_custom_call.1} parent=1 // pred_check_branch
      %4144 = sbr.rel (%p4142) target = $region157
    $region156: #{tpu_custom_call.1} parent=1 // pred_region
      %s4145 = scalar_lea.sflag [#allocation13], 4
      %s4146 = smul.u32 128, 1
      %s4147 = sshll.u32 %s4146, 4
      %4148 = dma.done %s4145, %s4147
      %s4149 = scalar_lea.sflag [#allocation13], 5
      %s4150 = smul.u32 1, 1
      %s4151 = sshll.u32 %s4150, 4
      %4152 = dma.done %s4149, %s4151
    $region157: #{tpu_custom_call.1} parent=1 // pred_fallthru
      _
    %v4153 = vld [vmem:[#allocation12] sm:$0xff]
    %v4154 = vld [vmem:[#allocation12 + $0x8] sm:$0xff]
    %v4155 = vld [vmem:[#allocation12 + $0x10] sm:$0xff]
    %v4156 = vld [vmem:[#allocation12 + $0x18] sm:$0xff]
    %v4157 = vld [vmem:[#allocation12 + $0x20] sm:$0xff]
    %v4158 = vld [vmem:[#allocation12 + $0x28] sm:$0xff]
    %v4159 = vld [vmem:[#allocation12 + $0x30] sm:$0xff]
    %v4160 = vld [vmem:[#allocation12 + $0x38] sm:$0xff]
    %v4161 = vld [vmem:[#allocation6] sm:$0xff]
    %v4162 = vld [vmem:[#allocation6 + $0x8] sm:$0xff]
    %v4163 = vld [vmem:[#allocation6 + $0x10] sm:$0xff]
    %v4164 = vld [vmem:[#allocation6 + $0x18] sm:$0xff]
    %v4165 = vld [vmem:[#allocation6 + $0x20] sm:$0xff]
    %v4166 = vld [vmem:[#allocation6 + $0x28] sm:$0xff]
    %v4167 = vld [vmem:[#allocation6 + $0x30] sm:$0xff]
    %v4168 = vld [vmem:[#allocation6 + $0x38] sm:$0xff]
    %v4169 = vld [vmem:[#allocation6 + $0x40] sm:$0xff]
    %v4170 = vld [vmem:[#allocation6 + $0x48] sm:$0xff]
    %v4171 = vld [vmem:[#allocation6 + $0x50] sm:$0xff]
    %v4172 = vld [vmem:[#allocation6 + $0x58] sm:$0xff]
    %v4173 = vld [vmem:[#allocation6 + $0x60] sm:$0xff]
    %v4174 = vld [vmem:[#allocation6 + $0x68] sm:$0xff]
    %v4175 = vld [vmem:[#allocation6 + $0x70] sm:$0xff]
    %v4176 = vld [vmem:[#allocation6 + $0x78] sm:$0xff]
    %v4177 = vld [vmem:[#allocation7] sm:$0x1]
    %v4179 = vlaneseq
    %v4180 = vshrl.u32 %v4179, 7
    %v4181 = vsub.s32 0, %v4180
    %v4182 = vrot.slane %v4177, %v4181
    %4184 = vmatprep.subr.mxu0 0.0
    %4185 = vmatpush1.msra.mxu0 %v4161
    %4186 = vmatprep.subr.mxu0 0.0
    %4187 = vmatpush1.msra.mxu0 %v4162
    %4188 = vmatprep.subr.mxu0 0.0
    %4189 = vmatpush1.msra.mxu0 %v4163
    %4190 = vmatprep.subr.mxu0 0.0
    %4191 = vmatpush1.msra.mxu0 %v4164
    %4192 = vmatprep.subr.mxu0 0.0
    %4193 = vmatpush1.msra.mxu0 %v4165
    %4194 = vmatprep.subr.mxu0 0.0
    %4195 = vmatpush1.msra.mxu0 %v4166
    %4196 = vmatprep.subr.mxu0 0.0
    %4197 = vmatpush1.msra.mxu0 %v4167
    %4198 = vmatprep.subr.mxu0 0.0
    %4199 = vmatpush1.msra.mxu0 %v4168
    %4200 = vmatprep.subr.mxu0 0.0
    %4201 = vmatpush1.msra.mxu0 %v4169
    %4202 = vmatprep.subr.mxu0 0.0
    %4203 = vmatpush1.msra.mxu0 %v4170
    %4204 = vmatprep.subr.mxu0 0.0
    %4205 = vmatpush1.msra.mxu0 %v4171
    %4206 = vmatprep.subr.mxu0 0.0
    %4207 = vmatpush1.msra.mxu0 %v4172
    %4208 = vmatprep.subr.mxu0 0.0
    %4209 = vmatpush1.msra.mxu0 %v4173
    %4210 = vmatprep.subr.mxu0 0.0
    %4211 = vmatpush1.msra.mxu0 %v4174
    %4212 = vmatprep.subr.mxu0 0.0
    %4213 = vmatpush1.msra.mxu0 %v4175
    %4214 = vmatprep.subr.mxu0 0.0
    %4215 = vmatpush1.msra.mxu0 %v4176
    %4216 = vmatprep.subr.mxu0 0.0
    %4217 = vmatpush1.msra.mxu0 0.0
    %4218 = vmatprep.subr.mxu0 0.0
    %4219 = vmatpush1.msra.mxu0 0.0
    %4220 = vmatprep.subr.mxu0 0.0
    %4221 = vmatpush1.msra.mxu0 0.0
    %4222 = vmatprep.subr.mxu0 0.0
    %4223 = vmatpush1.msra.mxu0 0.0
    %4224 = vmatprep.subr.mxu0 0.0
    %4225 = vmatpush1.msra.mxu0 0.0
    %4226 = vmatprep.subr.mxu0 0.0
    %4227 = vmatpush1.msra.mxu0 0.0
    %4228 = vmatprep.subr.mxu0 0.0
    %4229 = vmatpush1.msra.mxu0 0.0
    %4230 = vmatprep.subr.mxu0 0.0
    %4231 = vmatpush1.msra.mxu0 0.0
    %4232 = vmatprep.subr.mxu0 0.0
    %4233 = vmatpush1.msra.mxu0 0.0
    %4234 = vmatprep.subr.mxu0 0.0
    %4235 = vmatpush1.msra.mxu0 0.0
    %4236 = vmatprep.subr.mxu0 0.0
    %4237 = vmatpush1.msra.mxu0 0.0
    %4238 = vmatprep.subr.mxu0 0.0
    %4239 = vmatpush1.msra.mxu0 0.0
    %4240 = vmatprep.subr.mxu0 0.0
    %4241 = vmatpush1.msra.mxu0 0.0
    %4242 = vmatprep.subr.mxu0 0.0
    %4243 = vmatpush1.msra.mxu0 0.0
    %4244 = vmatprep.subr.mxu0 0.0
    %4245 = vmatpush1.msra.mxu0 0.0
    %4246 = vmatprep.subr.mxu0 0.0
    %4247 = vmatpush1.msra.mxu0 0.0
    %4248 = vmatprep.mubr.f32.mxu0 0.0
    %4249 = vmatmul.mubr.f32.gmra.mrb[0].mxu0 %v4153
    %v4250 = vpop.f32.mrb[0].mxu0
    %v4251 = vadd.f32 %v4182, %v4250
    %v4252 = vpop.f32.mrb[0].mxu0
    %4253 = vmatprep.mubr.f32.mxu0 0.0
    %4254 = vmatmul.mubr.f32.gmra.mrb[0].mxu0 %v4154
    %v4255 = vpop.f32.mrb[0].mxu0
    %v4256 = vadd.f32 %v4182, %v4255
    %v4257 = vpop.f32.mrb[0].mxu0
    %4258 = vmatprep.mubr.f32.mxu0 0.0
    %4259 = vmatmul.mubr.f32.gmra.mrb[0].mxu0 %v4155
    %v4260 = vpop.f32.mrb[0].mxu0
    %v4261 = vadd.f32 %v4182, %v4260
    %v4262 = vpop.f32.mrb[0].mxu0
    %4263 = vmatprep.mubr.f32.mxu0 0.0
    %4264 = vmatmul.mubr.f32.gmra.mrb[0].mxu0 %v4156
    %v4265 = vpop.f32.mrb[0].mxu0
    %v4266 = vadd.f32 %v4182, %v4265
    %v4267 = vpop.f32.mrb[0].mxu0
    %4268 = vmatprep.mubr.f32.mxu0 0.0
    %4269 = vmatmul.mubr.f32.gmra.mrb[0].mxu0 %v4157
    %v4270 = vpop.f32.mrb[0].mxu0
    %v4271 = vadd.f32 %v4182, %v4270
    %v4272 = vpop.f32.mrb[0].mxu0
    %4273 = vmatprep.mubr.f32.mxu0 0.0
    %4274 = vmatmul.mubr.f32.gmra.mrb[0].mxu0 %v4158
    %v4275 = vpop.f32.mrb[0].mxu0
    %v4276 = vadd.f32 %v4182, %v4275
    %v4277 = vpop.f32.mrb[0].mxu0
    %4278 = vmatprep.mubr.f32.mxu0 0.0
    %4279 = vmatmul.mubr.f32.gmra.mrb[0].mxu0 %v4159
    %v4280 = vpop.f32.mrb[0].mxu0
    %v4281 = vadd.f32 %v4182, %v4280
    %v4282 = vpop.f32.mrb[0].mxu0
    %4283 = vmatprep.mubr.f32.mxu0 0.0
    %4284 = vmatmul.mubr.f32.gmra.mrb[0].mxu0 %v4160
    %v4285 = vpop.f32.mrb[0].mxu0
    %v4286 = vadd.f32 %v4182, %v4285
    %v4287 = vpop.f32.mrb[0].mxu0
    %4288 = vdwg.mxu0
    %4289 = vst.msk [vmem:[#allocation17] sm:$0xff] %vm358, %v4251
    %4290 = vst.msk [vmem:[#allocation17 + $0x8] sm:$0xff] %vm358, %v4256
    %4291 = vst.msk [vmem:[#allocation17 + $0x10] sm:$0xff] %vm358, %v4261
    %4292 = vst.msk [vmem:[#allocation17 + $0x18] sm:$0xff] %vm358, %v4266
    %4293 = vst.msk [vmem:[#allocation17 + $0x20] sm:$0xff] %vm358, %v4271
    %4294 = vst.msk [vmem:[#allocation17 + $0x28] sm:$0xff] %vm358, %v4276
    %4295 = vst.msk [vmem:[#allocation17 + $0x30] sm:$0xff] %vm358, %v4281
    %4296 = vst.msk [vmem:[#allocation17 + $0x38] sm:$0xff] %vm358, %v4286
    // Predicated region
    $region158: #{tpu_custom_call.1} parent=1 // pred_check
      _
    $region159: #{tpu_custom_call.1} parent=1 // pred_check_branch
      %4298 = sbr.rel (0) target = $region161
    $region160: #{tpu_custom_call.1} parent=1 // pred_region
      %s4300 = ssub.s32 1024, 1024
      %4301 = vsyncadd [#allocation16], %s4300
      %s4302 = sshll.u32 [#allocation17], 4
      %s4303 = int_to_ptr.vmem [resolvable:$true] %s4302
      %4308 = dma.vmem_to_hbm [thread:$0]  %s4303, 1024, %s8, [#allocation16], 128, 128, 8
    $region161: #{tpu_custom_call.1} parent=1 // pred_fallthru
      _
    // Predicated region
    $region162: #{tpu_custom_call.1} parent=1 // pred_check
      _
    $region163: #{tpu_custom_call.1} parent=1 // pred_check_branch
      %4310 = sbr.rel (0) target = $region165
    $region164: #{tpu_custom_call.1} parent=1 // pred_region
      %4311 = dma.done [#allocation16], 1024
    $region165: #{tpu_custom_call.1} parent=1 // pred_fallthru
      _
    %4312 = vsyncpa [#allocation15], 1
    %4313 = vsyncpa [#allocation16], 1
  %4314 = vsyncmov [#allocation13]
  %s4315 = vpop.sfrf %4314
  %p4316 = scmp.eq.s32.totalorder %s4315, 0
  %p4317 = pneg %p4316
  %4319 = shalt.err (%p4317)
  %s4320 = scalar_lea.sflag [#allocation13], 1
  %4321 = vsyncmov %s4320
  %s4322 = vpop.sfrf %4321
  %p4323 = scmp.eq.s32.totalorder %s4322, 0
  %p4324 = pneg %p4323
  %4326 = shalt.err (%p4324)
  %s4327 = scalar_lea.sflag [#allocation13], 2
  %4328 = vsyncmov %s4327
  %s4329 = vpop.sfrf %4328
  %p4330 = scmp.eq.s32.totalorder %s4329, 0
  %p4331 = pneg %p4330
  %4333 = shalt.err (%p4331)
  %s4334 = scalar_lea.sflag [#allocation13], 3
  %4335 = vsyncmov %s4334
  %s4336 = vpop.sfrf %4335
  %p4337 = scmp.eq.s32.totalorder %s4336, 0
  %p4338 = pneg %p4337
  %4340 = shalt.err (%p4338)
  %s4341 = scalar_lea.sflag [#allocation13], 4
  %4342 = vsyncmov %s4341
  %s4343 = vpop.sfrf %4342
  %p4344 = scmp.eq.s32.totalorder %s4343, 0
  %p4345 = pneg %p4344
  %4347 = shalt.err (%p4345)
  %s4348 = scalar_lea.sflag [#allocation13], 5
  %4349 = vsyncmov %s4348
  %s4350 = vpop.sfrf %4349
  %p4351 = scmp.eq.s32.totalorder %s4350, 0
  %p4352 = pneg %p4351
  %4354 = shalt.err (%p4352)

</llo_original>
